<compile_context>
chip_gen: v5e
topology: v5e:2x2
jax: 0.10.0
libtpu: 0.0.40
codegen_flags: <defaults>
</compile_context>

<pallas_src>
import functools
import math

import numpy as np
import jax
import jax.numpy as jnp
from jax.experimental import pallas as pl
from jax.experimental.pallas import tpu as pltpu

# ----------------------------- configuration --------------------------------
IMG_C, IMG_HW = 3, 16                      # input image: (B, 3, 16, 16) NCHW
PATCH = 2                                  # stand-in backbone: 2x2 / stride-2 "conv"
FEAT_HW = IMG_HW // PATCH                  # model_feature_map_size = 8
MODEL_CH = 128                             # model_channels_shape
N_WINDOWS = 2                              # n_attention_windows
NUM_FEATURES = 1 + N_WINDOWS * N_WINDOWS   # avg feature + w*w windows = 5
HIDDEN = 128                               # output_channels_shape == decoder hidden_dim
EMBED = 128                                # decoder embed_dim
VOCAB = 256                                # decoder vocab_size
SOS = 0                                    # <sos> token index


def _vmem_spec():
    return pl.BlockSpec(memory_space=pltpu.MemorySpace.VMEM)


# ------------------------------- fused kernel --------------------------------
def image2text_kernel(patches_ref, pool_ref, mean_ref, abias_ref,
                      wb_ref, bb_ref, wr_ref, br_ref,
                      wkv_ref, winit_ref, binit_ref,
                      wbig_ref, wtokctx_ref, bgate_ref, blm_ref,
                      out_ref, *, num_steps):
    """Encoder + initializers + hoisted K/V + full greedy decode loop, one launch."""
    H = wr_ref.shape[1]
    B = mean_ref.shape[0]
    V = blm_ref.shape[1]
    inv_sqrt_h = 1.0 / math.sqrt(float(H))

    # ---- encoder: stand-in conv backbone (+ReLU), pooling matmul, LeakyReLU, reshape ----
    feat = jnp.dot(patches_ref[...], wb_ref[...].astype(jnp.float32),
                   preferred_element_type=jnp.float32) + bb_ref[...]
    feat = jnp.maximum(feat, 0.0)                                          # (B*64, C)
    pooled = jnp.dot(pool_ref[...], feat, preferred_element_type=jnp.float32)   # (BFP, C)
    act = jnp.where(pooled >= 0.0, pooled, 0.1 * pooled)                   # LeakyReLU(0.1)
    enc = jnp.dot(act, wr_ref[...].astype(jnp.float32),
                  preferred_element_type=jnp.float32) + br_ref[...]        # (BFP, H)

    # ---- hoisted attention K/V projections (encoder output is decode-step invariant) ----
    kv = jnp.dot(enc, wkv_ref[...].astype(jnp.float32),
                 preferred_element_type=jnp.float32)                       # (BFP, 2H)
    k_t = kv[:, :H].T                                # (H, BFP): one XLU transpose, pre-loop
    v_mat = kv[:, H:]                                # (BFP, H)

    # ---- initializer_h / initializer_c on the per-batch feature mean ----
    mean_feat = jnp.dot(mean_ref[...], enc, preferred_element_type=jnp.float32)  # (B, H)
    hc = jnp.dot(mean_feat, winit_ref[...].astype(jnp.float32),
                 preferred_element_type=jnp.float32) + binit_ref[...]      # (B, 2H)
    h0, c0 = hc[:, :H], hc[:, H:]

    # ---- decode-loop invariants (single bf16->f32 upcast, hoisted) ----
    w_big = wbig_ref[...].astype(jnp.float32)        # (H, 4H + H + V) = [w_hh | w_q | w_lm]
    w_tokctx = wtokctx_ref[...].astype(jnp.float32)  # (V + H, 4H)     = [emb@w_ih_tok ; w_ih_ctx]
    b_gate = bgate_ref[...]                          # (1, 4H)  b_ih + b_hh, gate order i,f,o,g
    b_lm = blm_ref[...]                              # (1, V)
    attn_bias = abias_ref[...]                       # (B, BFP) 0 / -1e30 per-batch mask

    vocab_iota = jax.lax.broadcasted_iota(jnp.int32, (B, V), 1)
    onehot0 = (vocab_iota == SOS).astype(jnp.float32)                      # <sos> one-hot

    # Fused h -> [gates_h | q | logits] projection; the logits part of hproj0 is unused.
    hproj0 = jnp.dot(h0, w_big, preferred_element_type=jnp.float32)        # (B, 5H + V)

    def step(t, carry):
        hproj, c_prev, onehot = carry
        gates_h = hproj[:, :4 * H]
        q = hproj[:, 4 * H:5 * H]

        # Attention (dropout == identity); softmax over this batch's encoder features.
        scores = jnp.dot(q, k_t, preferred_element_type=jnp.float32) * inv_sqrt_h + attn_bias
        scores = scores - jnp.max(scores, axis=-1, keepdims=True)          # keep: makes -1e30 safe
        e = jnp.exp(scores)
        attn = e * pl.reciprocal(jnp.sum(e, axis=-1, keepdims=True), approx=True)
        ctx = jnp.dot(attn, v_mat, preferred_element_type=jnp.float32)     # (B, H)

        # LSTMCell: token one-hot + context folded through a single stacked matmul.
        x_cat = jnp.concatenate([onehot, ctx], axis=-1)                    # (B, V + H)
        gates = (gates_h
                 + jnp.dot(x_cat, w_tokctx, preferred_element_type=jnp.float32)
                 + b_gate)                                                 # (B, 4H) order i,f,o,g
        sig = jax.nn.sigmoid(gates[:, :3 * H])
        i_g, f_g, o_g = sig[:, :H], sig[:, H:2 * H], sig[:, 2 * H:]
        g_g = jnp.tanh(gates[:, 3 * H:])
        c_next = f_g * c_prev + i_g * g_g
        h_next = o_g * jnp.tanh(c_next)

        # Fused projection of h_{t+1}: this step's logits + next step's gates_h / query.
        hproj_next = jnp.dot(h_next, w_big, preferred_element_type=jnp.float32)
        logits = hproj_next[:, 5 * H:] + b_lm                              # (B, V)
        out_ref[t] = logits

        # Greedy next token (first index achieving the max) as a one-hot for the next step.
        m = jnp.max(logits, axis=-1, keepdims=True)
        first = jnp.min(jnp.where(logits >= m, vocab_iota, V), axis=-1, keepdims=True)
        onehot_next = (vocab_iota == first).astype(jnp.float32)
        return hproj_next, c_next, onehot_next

    jax.lax.fori_loop(0, num_steps, step, (hproj0, c0, onehot0), unroll=True)


# ------------------------------ constant matrices -----------------------------
def _encoder_constants(batch_size):
    """Constant matrices: AvgPool2d + AdaptiveAvgPool2d and the per-batch feature mean as
    lane-dense matmuls over flat (B*HF*WF, C) features, plus the per-batch attention mask.
    The feature axis is padded to a multiple of 8 (sublane alignment)."""
    hw = FEAT_HW
    npos = hw * hw
    sh = hw // N_WINDOWS
    bf = batch_size * NUM_FEATURES
    bfp = ((bf + 7) // 8) * 8
    pool = np.zeros((bfp, batch_size * npos), np.float32)
    mean = np.zeros((batch_size, bfp), np.float32)
    abias = np.full((batch_size, bfp), -1e30, np.float32)
    for b in range(batch_size):
        base_r, base_c = b * NUM_FEATURES, b * npos
        pool[base_r, base_c:base_c + npos] = 1.0 / npos                  # AvgPool2d(full map)
        r = 1
        for wi in range(N_WINDOWS):                                      # AdaptiveAvgPool2d
            for wj in range(N_WINDOWS):                                  # row-major windows
                for i in range(wi * sh, (wi + 1) * sh):
                    for j in range(wj * sh, (wj + 1) * sh):
                        pool[base_r + r, base_c + i * hw + j] = 1.0 / (sh * sh)
                r += 1
        mean[b, base_r:base_r + NUM_FEATURES] = 1.0 / NUM_FEATURES
        abias[b, base_r:base_r + NUM_FEATURES] = 0.0
    return jnp.asarray(pool), jnp.asarray(mean), jnp.asarray(abias)


# ------------------------------ full forward ----------------------------------
def image2text_forward(image_nchw, real_caption, params):
    """Image2Text.forward with teacher_forcing_ratio=None (greedy decoding)."""
    B = image_nchw.shape[0]
    T = real_caption.shape[1]

    # glue: NCHW -> NHWC, then flat non-overlapping 2x2 patches for the stand-in conv
    image = jnp.transpose(image_nchw, (0, 2, 3, 1)).astype(jnp.float32)      # (B, 16, 16, 3)
    patches = image.reshape(B, FEAT_HW, PATCH, FEAT_HW, PATCH, IMG_C)
    patches = patches.transpose(0, 1, 3, 2, 4, 5).reshape(
        B * FEAT_HW * FEAT_HW, PATCH * PATCH * IMG_C)                        # (B*64, 12)

    pool_mat, mean_mat, abias = _encoder_constants(B)                        # constants

    # ---- trace-time weight fusion (pure layout / constant folding, no math change) ----
    def permute_gates(x):        # columns ordered [i | f | g | o]  ->  [i | f | o | g]
        i, f, g, o = jnp.split(x, 4, axis=-1)
        return jnp.concatenate([i, f, o, g], axis=-1)

    wdt = jnp.bfloat16           # weight matrices DMA'd as bf16; accumulation stays f32
    w_kv = jnp.concatenate([params['w_k'], params['w_v']], axis=1).astype(wdt)       # (H, 2H)
    w_init = jnp.concatenate([params['w_init_h'], params['w_init_c']], axis=1).astype(wdt)
    b_init = jnp.concatenate([params['b_init_h'], params['b_init_c']], axis=0)[None, :]

    w_ih_p = permute_gates(params['w_ih'])                                   # (E+H, 4H)
    w_hh_p = permute_gates(params['w_hh'])                                   # (H, 4H)
    b_gate = permute_gates((params['b_ih'] + params['b_hh'])[None, :])       # (1, 4H)
    emb_gates = params['embedding'] @ w_ih_p[:EMBED]         # (V, 4H): hoisted out of kernel
    w_tokctx = jnp.concatenate([emb_gates, w_ih_p[EMBED:]], axis=0).astype(wdt)      # (V+H, 4H)
    w_big = jnp.concatenate([w_hh_p, params['w_q'], params['w_lm']],
                            axis=1).astype(wdt)                              # (H, 4H+H+V)
    b_lm = params['b_lm'][None, :]

    wb = params['w_backbone'].astype(wdt)
    bb = params['b_backbone'][None, :]
    wr = params['w_reshape'].astype(wdt)
    br = params['b_reshape'][None, :]

    args = (patches, pool_mat, mean_mat, abias, wb, bb, wr, br,
            w_kv, w_init, b_init, w_big, w_tokctx, b_gate, b_lm)

    kern = functools.partial(image2text_kernel, num_steps=T)
    logits_tbv = pl.pallas_call(                        # single launch, whole model in VMEM
        kern,
        in_specs=[_vmem_spec() for _ in args],
        out_specs=_vmem_spec(),
        out_shape=jax.ShapeDtypeStruct((T, B, VOCAB), jnp.float32),
    )(*args)
    return jnp.transpose(logits_tbv, (1, 0, 2))                              # (B, T, VOCAB)


# ------------------------------ parameter init ---------------------------------
def make_params(key):
    def linear(k, fan_in, fan_out):
        # stored pre-transposed to (in, out) so kernels compute x @ W + b directly
        kw, kb = jax.random.split(k)
        s = 1.0 / math.sqrt(fan_in)
        w = jax.random.uniform(kw, (fan_in, fan_out), jnp.float32, -s, s)
        b = jax.random.uniform(kb, (fan_out,), jnp.float32, -s, s)
        return w, b

    ks = jax.random.split(key, 12)
    p = {}
    p['w_backbone'], p['b_backbone'] = linear(ks[0], PATCH * PATCH * IMG_C, MODEL_CH)
    p['w_reshape'], p['b_reshape'] = linear(ks[1], MODEL_CH, HIDDEN)
    p['w_init_h'], p['b_init_h'] = linear(ks[2], HIDDEN, HIDDEN)
    p['w_init_c'], p['b_init_c'] = linear(ks[3], HIDDEN, HIDDEN)
    p['embedding'] = 0.02 * jax.random.normal(ks[4], (VOCAB, EMBED), jnp.float32)
    p['w_q'], _ = linear(ks[5], HIDDEN, HIDDEN)              # bias=False
    p['w_k'], _ = linear(ks[6], HIDDEN, HIDDEN)
    p['w_v'], _ = linear(ks[7], HIDDEN, HIDDEN)
    p['w_ih'], p['b_ih'] = linear(ks[8], EMBED + HIDDEN, 4 * HIDDEN)   # gate order: i, f, g, o
    p['w_hh'], p['b_hh'] = linear(ks[9], HIDDEN, 4 * HIDDEN)
    p['w_lm'], p['b_lm'] = linear(ks[10], HIDDEN, VOCAB)
    return p


# ----------------------------------- main ---------------------------------------
if __name__ == "__main__":
    key = jax.random.PRNGKey(0)
    k_img, k_cap, k_par = jax.random.split(key, 3)

    batch, seq_len = 2, 8
    image = jax.random.normal(k_img, (batch, IMG_C, IMG_HW, IMG_HW), jnp.float32)  # NCHW input
    real_caption = jax.random.randint(k_cap, (batch, seq_len), 0, VOCAB, jnp.int32)
    params = make_params(k_par)

    fwd = jax.jit(image2text_forward)
    predictions = fwd(image, real_caption, params)
    jax.block_until_ready(predictions)

    assert predictions.shape == (batch, seq_len, VOCAB)
    assert bool(jnp.all(jnp.isfinite(predictions)))
    print("KERNEL_OK")
</pallas_src>

<mosaic_0001>
module attributes {stable_mosaic.version = 11 : i64} {
  func.func @image2text_kernel(%arg0: memref<128x12xf32, #tpu.memory_space<vmem>>, %arg1: memref<16x128xf32, #tpu.memory_space<vmem>>, %arg2: memref<2x16xf32, #tpu.memory_space<vmem>>, %arg3: memref<2x16xf32, #tpu.memory_space<vmem>>, %arg4: memref<12x128xbf16, #tpu.memory_space<vmem>>, %arg5: memref<1x128xf32, #tpu.memory_space<vmem>>, %arg6: memref<128x128xbf16, #tpu.memory_space<vmem>>, %arg7: memref<1x128xf32, #tpu.memory_space<vmem>>, %arg8: memref<128x256xbf16, #tpu.memory_space<vmem>>, %arg9: memref<128x256xbf16, #tpu.memory_space<vmem>>, %arg10: memref<1x256xf32, #tpu.memory_space<vmem>>, %arg11: memref<128x896xbf16, #tpu.memory_space<vmem>>, %arg12: memref<384x512xbf16, #tpu.memory_space<vmem>>, %arg13: memref<1x512xf32, #tpu.memory_space<vmem>>, %arg14: memref<1x256xf32, #tpu.memory_space<vmem>>, %arg15: memref<8x2x256xf32, #tpu.memory_space<vmem>>) attributes {dimension_semantics = [], scalar_prefetch = 0 : i64, scratch_operands = 0 : i64, tpu.core_type = #tpu.core_type<tc>} {
    %c0 = arith.constant 0 : index
    %c0_0 = arith.constant 0 : index
    %0 = vector.load %arg0[%c0, %c0_0] : memref<128x12xf32, #tpu.memory_space<vmem>>, vector<128x12xf32>
    %c0_1 = arith.constant 0 : index
    %c0_2 = arith.constant 0 : index
    %1 = vector.load %arg4[%c0_1, %c0_2] : memref<12x128xbf16, #tpu.memory_space<vmem>>, vector<12x128xbf16>
    %2 = arith.extf %1 : vector<12x128xbf16> to vector<12x128xf32>
    %cst = arith.constant dense<0.000000e+00> : vector<128x128xf32>
    %3 = tpu.matmul %0, %2, %cst {dimension_numbers = #tpu.dot_dimension_numbers<[1], [0], [0], [1], [0, 0, 1, 1], [], []>} : vector<128x12xf32>, vector<12x128xf32>, vector<128x128xf32> -> vector<128x128xf32>
    %c0_3 = arith.constant 0 : index
    %c0_4 = arith.constant 0 : index
    %4 = vector.load %arg5[%c0_3, %c0_4] : memref<1x128xf32, #tpu.memory_space<vmem>>, vector<1x128xf32>
    %5 = vector.broadcast %4 : vector<1x128xf32> to vector<128x128xf32>
    %6 = arith.addf %3, %5 : vector<128x128xf32>
    %cst_5 = arith.constant 0.000000e+00 : f32
    %7 = vector.broadcast %cst_5 : f32 to vector<128x128xf32>
    %8 = arith.maximumf %6, %7 : vector<128x128xf32>
    %c0_6 = arith.constant 0 : index
    %c0_7 = arith.constant 0 : index
    %9 = vector.load %arg1[%c0_6, %c0_7] : memref<16x128xf32, #tpu.memory_space<vmem>>, vector<16x128xf32>
    %cst_8 = arith.constant dense<0.000000e+00> : vector<16x128xf32>
    %10 = tpu.matmul %9, %8, %cst_8 {dimension_numbers = #tpu.dot_dimension_numbers<[1], [0], [0], [1], [0, 0, 1, 1], [], []>} : vector<16x128xf32>, vector<128x128xf32>, vector<16x128xf32> -> vector<16x128xf32>
    %cst_9 = arith.constant 0.000000e+00 : f32
    %11 = vector.broadcast %cst_9 : f32 to vector<16x128xf32>
    %12 = arith.cmpf oge, %10, %11 : vector<16x128xf32>
    %cst_10 = arith.constant 1.000000e-01 : f32
    %13 = vector.broadcast %cst_10 : f32 to vector<16x128xf32>
    %14 = arith.mulf %13, %10 : vector<16x128xf32>
    %15 = arith.select %12, %10, %14 : vector<16x128xi1>, vector<16x128xf32>
    %c0_11 = arith.constant 0 : index
    %c0_12 = arith.constant 0 : index
    %16 = vector.load %arg6[%c0_11, %c0_12] : memref<128x128xbf16, #tpu.memory_space<vmem>>, vector<128x128xbf16>
    %17 = arith.extf %16 : vector<128x128xbf16> to vector<128x128xf32>
    %cst_13 = arith.constant dense<0.000000e+00> : vector<16x128xf32>
    %18 = tpu.matmul %15, %17, %cst_13 {dimension_numbers = #tpu.dot_dimension_numbers<[1], [0], [0], [1], [0, 0, 1, 1], [], []>} : vector<16x128xf32>, vector<128x128xf32>, vector<16x128xf32> -> vector<16x128xf32>
    %c0_14 = arith.constant 0 : index
    %c0_15 = arith.constant 0 : index
    %19 = vector.load %arg7[%c0_14, %c0_15] : memref<1x128xf32, #tpu.memory_space<vmem>>, vector<1x128xf32>
    %20 = vector.broadcast %19 : vector<1x128xf32> to vector<16x128xf32>
    %21 = arith.addf %18, %20 : vector<16x128xf32>
    %c0_16 = arith.constant 0 : index
    %c0_17 = arith.constant 0 : index
    %22 = vector.load %arg8[%c0_16, %c0_17] : memref<128x256xbf16, #tpu.memory_space<vmem>>, vector<128x256xbf16>
    %23 = arith.extf %22 : vector<128x256xbf16> to vector<128x256xf32>
    %cst_18 = arith.constant dense<0.000000e+00> : vector<16x256xf32>
    %24 = tpu.matmul %21, %23, %cst_18 {dimension_numbers = #tpu.dot_dimension_numbers<[1], [0], [0], [1], [0, 0, 1, 1], [], []>} : vector<16x128xf32>, vector<128x256xf32>, vector<16x256xf32> -> vector<16x256xf32>
    %25 = vector.extract_strided_slice %24 {offsets = [0, 0], sizes = [16, 128], strides = [1, 1]} : vector<16x256xf32> to vector<16x128xf32>
    %26 = tpu.transpose %25, [1, 0] : vector<16x128xf32> -> vector<128x16xf32>
    %27 = vector.extract_strided_slice %24 {offsets = [0, 128], sizes = [16, 128], strides = [1, 1]} : vector<16x256xf32> to vector<16x128xf32>
    %c0_19 = arith.constant 0 : index
    %c0_20 = arith.constant 0 : index
    %28 = vector.load %arg2[%c0_19, %c0_20] : memref<2x16xf32, #tpu.memory_space<vmem>>, vector<2x16xf32>
    %cst_21 = arith.constant dense<0.000000e+00> : vector<2x128xf32>
    %29 = tpu.matmul %28, %21, %cst_21 {dimension_numbers = #tpu.dot_dimension_numbers<[1], [0], [0], [1], [0, 0, 1, 1], [], []>} : vector<2x16xf32>, vector<16x128xf32>, vector<2x128xf32> -> vector<2x128xf32>
    %c0_22 = arith.constant 0 : index
    %c0_23 = arith.constant 0 : index
    %30 = vector.load %arg9[%c0_22, %c0_23] : memref<128x256xbf16, #tpu.memory_space<vmem>>, vector<128x256xbf16>
    %31 = arith.extf %30 : vector<128x256xbf16> to vector<128x256xf32>
    %cst_24 = arith.constant dense<0.000000e+00> : vector<2x256xf32>
    %32 = tpu.matmul %29, %31, %cst_24 {dimension_numbers = #tpu.dot_dimension_numbers<[1], [0], [0], [1], [0, 0, 1, 1], [], []>} : vector<2x128xf32>, vector<128x256xf32>, vector<2x256xf32> -> vector<2x256xf32>
    %c0_25 = arith.constant 0 : index
    %c0_26 = arith.constant 0 : index
    %33 = vector.load %arg10[%c0_25, %c0_26] : memref<1x256xf32, #tpu.memory_space<vmem>>, vector<1x256xf32>
    %34 = vector.broadcast %33 : vector<1x256xf32> to vector<2x256xf32>
    %35 = arith.addf %32, %34 : vector<2x256xf32>
    %36 = vector.extract_strided_slice %35 {offsets = [0, 0], sizes = [2, 128], strides = [1, 1]} : vector<2x256xf32> to vector<2x128xf32>
    %37 = vector.extract_strided_slice %35 {offsets = [0, 128], sizes = [2, 128], strides = [1, 1]} : vector<2x256xf32> to vector<2x128xf32>
    %c0_27 = arith.constant 0 : index
    %c0_28 = arith.constant 0 : index
    %38 = vector.load %arg11[%c0_27, %c0_28] : memref<128x896xbf16, #tpu.memory_space<vmem>>, vector<128x896xbf16>
    %39 = arith.extf %38 : vector<128x896xbf16> to vector<128x896xf32>
    %c0_29 = arith.constant 0 : index
    %c0_30 = arith.constant 0 : index
    %40 = vector.load %arg12[%c0_29, %c0_30] : memref<384x512xbf16, #tpu.memory_space<vmem>>, vector<384x512xbf16>
    %41 = arith.extf %40 : vector<384x512xbf16> to vector<384x512xf32>
    %c0_31 = arith.constant 0 : index
    %c0_32 = arith.constant 0 : index
    %42 = vector.load %arg13[%c0_31, %c0_32] : memref<1x512xf32, #tpu.memory_space<vmem>>, vector<1x512xf32>
    %c0_33 = arith.constant 0 : index
    %c0_34 = arith.constant 0 : index
    %43 = vector.load %arg14[%c0_33, %c0_34] : memref<1x256xf32, #tpu.memory_space<vmem>>, vector<1x256xf32>
    %c0_35 = arith.constant 0 : index
    %c0_36 = arith.constant 0 : index
    %44 = vector.load %arg3[%c0_35, %c0_36] : memref<2x16xf32, #tpu.memory_space<vmem>>, vector<2x16xf32>
    %45 = tpu.iota {dimensions = array<i32: 1>} : vector<2x256xi32>
    %c0_i32 = arith.constant 0 : i32
    %46 = vector.broadcast %c0_i32 : i32 to vector<2x256xi32>
    %47 = arith.cmpi eq, %45, %46 : vector<2x256xi32>
    %48 = arith.extui %47 : vector<2x256xi1> to vector<2x256xi32>
    %49 = arith.sitofp %48 : vector<2x256xi32> to vector<2x256xf32>
    %cst_37 = arith.constant dense<0.000000e+00> : vector<2x896xf32>
    %50 = tpu.matmul %36, %39, %cst_37 {dimension_numbers = #tpu.dot_dimension_numbers<[1], [0], [0], [1], [0, 0, 1, 1], [], []>} : vector<2x128xf32>, vector<128x896xf32>, vector<2x896xf32> -> vector<2x896xf32>
    %c0_i32_38 = arith.constant 0 : i32
    %51 = vector.extract_strided_slice %50 {offsets = [0, 0], sizes = [2, 512], strides = [1, 1]} : vector<2x896xf32> to vector<2x512xf32>
    %52 = vector.extract_strided_slice %50 {offsets = [0, 512], sizes = [2, 128], strides = [1, 1]} : vector<2x896xf32> to vector<2x128xf32>
    %cst_39 = arith.constant dense<0.000000e+00> : vector<2x16xf32>
    %53 = tpu.matmul %52, %26, %cst_39 {dimension_numbers = #tpu.dot_dimension_numbers<[1], [0], [0], [1], [0, 0, 1, 1], [], []>} : vector<2x128xf32>, vector<128x16xf32>, vector<2x16xf32> -> vector<2x16xf32>
    %cst_40 = arith.constant 0.0883883461 : f32
    %54 = vector.broadcast %cst_40 : f32 to vector<2x16xf32>
    %55 = arith.mulf %53, %54 : vector<2x16xf32>
    %56 = arith.addf %55, %44 : vector<2x16xf32>
    %cst_41 = arith.constant dense<0xFF800000> : vector<2xf32>
    %57 = vector.multi_reduction <maximumf>, %56, %cst_41 [1] : vector<2x16xf32> to vector<2xf32>
    %58 = vector.shape_cast %57 : vector<2xf32> to vector<2x1xf32>
    %59 = vector.broadcast %58 : vector<2x1xf32> to vector<2x16xf32>
    %60 = arith.subf %56, %59 : vector<2x16xf32>
    %61 = math.exp %60 : vector<2x16xf32>
    %cst_42 = arith.constant dense<0.000000e+00> : vector<2xf32>
    %62 = vector.multi_reduction <add>, %61, %cst_42 [1] : vector<2x16xf32> to vector<2xf32>
    %63 = vector.shape_cast %62 : vector<2xf32> to vector<2x1xf32>
    %64 = tpu.reciprocal %63 {approx = true} : vector<2x1xf32> -> vector<2x1xf32>
    %65 = vector.broadcast %64 : vector<2x1xf32> to vector<2x16xf32>
    %66 = arith.mulf %61, %65 : vector<2x16xf32>
    %cst_43 = arith.constant dense<0.000000e+00> : vector<2x128xf32>
    %67 = tpu.matmul %66, %27, %cst_43 {dimension_numbers = #tpu.dot_dimension_numbers<[1], [0], [0], [1], [0, 0, 1, 1], [], []>} : vector<2x16xf32>, vector<16x128xf32>, vector<2x128xf32> -> vector<2x128xf32>
    %68 = tpu.concatenate %49, %67 in 1 : vector<2x256xf32>, vector<2x128xf32> -> vector<2x384xf32>
    %cst_44 = arith.constant dense<0.000000e+00> : vector<2x512xf32>
    %69 = tpu.matmul %68, %41, %cst_44 {dimension_numbers = #tpu.dot_dimension_numbers<[1], [0], [0], [1], [0, 0, 1, 1], [], []>} : vector<2x384xf32>, vector<384x512xf32>, vector<2x512xf32> -> vector<2x512xf32>
    %70 = arith.addf %51, %69 : vector<2x512xf32>
    %71 = vector.broadcast %42 : vector<1x512xf32> to vector<2x512xf32>
    %72 = arith.addf %70, %71 : vector<2x512xf32>
    %73 = vector.extract_strided_slice %72 {offsets = [0, 0], sizes = [2, 384], strides = [1, 1]} : vector<2x512xf32> to vector<2x384xf32>
    %74 = arith.negf %73 : vector<2x384xf32>
    %75 = math.exp %74 : vector<2x384xf32>
    %cst_45 = arith.constant 1.000000e+00 : f32
    %76 = vector.broadcast %cst_45 : f32 to vector<2x384xf32>
    %77 = arith.addf %76, %75 : vector<2x384xf32>
    %78 = arith.divf %76, %77 : vector<2x384xf32>
    %79 = vector.extract_strided_slice %78 {offsets = [0, 0], sizes = [2, 128], strides = [1, 1]} : vector<2x384xf32> to vector<2x128xf32>
    %80 = vector.extract_strided_slice %78 {offsets = [0, 128], sizes = [2, 128], strides = [1, 1]} : vector<2x384xf32> to vector<2x128xf32>
    %81 = vector.extract_strided_slice %78 {offsets = [0, 256], sizes = [2, 128], strides = [1, 1]} : vector<2x384xf32> to vector<2x128xf32>
    %82 = vector.extract_strided_slice %72 {offsets = [0, 384], sizes = [2, 128], strides = [1, 1]} : vector<2x512xf32> to vector<2x128xf32>
    %83 = math.tanh %82 : vector<2x128xf32>
    %84 = arith.mulf %80, %37 : vector<2x128xf32>
    %85 = arith.mulf %79, %83 : vector<2x128xf32>
    %86 = arith.addf %84, %85 : vector<2x128xf32>
    %87 = math.tanh %86 : vector<2x128xf32>
    %88 = arith.mulf %81, %87 : vector<2x128xf32>
    %cst_46 = arith.constant dense<0.000000e+00> : vector<2x896xf32>
    %89 = tpu.matmul %88, %39, %cst_46 {dimension_numbers = #tpu.dot_dimension_numbers<[1], [0], [0], [1], [0, 0, 1, 1], [], []>} : vector<2x128xf32>, vector<128x896xf32>, vector<2x896xf32> -> vector<2x896xf32>
    %90 = vector.extract_strided_slice %89 {offsets = [0, 640], sizes = [2, 256], strides = [1, 1]} : vector<2x896xf32> to vector<2x256xf32>
    %91 = vector.broadcast %43 : vector<1x256xf32> to vector<2x256xf32>
    %92 = arith.addf %90, %91 : vector<2x256xf32>
    %93 = arith.index_cast %c0_i32_38 : i32 to index
    %c0_47 = arith.constant 0 : index
    %c0_48 = arith.constant 0 : index
    %94 = vector.load %arg15[%93, %c0_47, %c0_48] : memref<8x2x256xf32, #tpu.memory_space<vmem>>, vector<1x2x256xf32>
    %95 = vector.shape_cast %94 : vector<1x2x256xf32> to vector<2x256xf32>
    %96 = vector.shape_cast %92 : vector<2x256xf32> to vector<1x2x256xf32>
    tpu.vector_store %arg15[%93, %c0_47, %c0_48], %96 {strides = array<i32>} : memref<8x2x256xf32, #tpu.memory_space<vmem>>, vector<1x2x256xf32>,
    %cst_49 = arith.constant dense<0xFF800000> : vector<2xf32>
    %97 = vector.multi_reduction <maximumf>, %92, %cst_49 [1] : vector<2x256xf32> to vector<2xf32>
    %98 = vector.shape_cast %97 : vector<2xf32> to vector<2x1xf32>
    %99 = vector.broadcast %98 : vector<2x1xf32> to vector<2x256xf32>
    %100 = arith.cmpf oge, %92, %99 : vector<2x256xf32>
    %c256_i32 = arith.constant 256 : i32
    %101 = vector.broadcast %c256_i32 : i32 to vector<2x256xi32>
    %102 = arith.select %100, %45, %101 : vector<2x256xi1>, vector<2x256xi32>
    %cst_50 = arith.constant dense<2147483647> : vector<2xi32>
    %103 = vector.multi_reduction <minsi>, %102, %cst_50 [1] : vector<2x256xi32> to vector<2xi32>
    %104 = vector.shape_cast %103 : vector<2xi32> to vector<2x1xi32>
    %105 = vector.broadcast %104 : vector<2x1xi32> to vector<2x256xi32>
    %106 = arith.cmpi eq, %45, %105 : vector<2x256xi32>
    %107 = arith.extui %106 : vector<2x256xi1> to vector<2x256xi32>
    %108 = arith.sitofp %107 : vector<2x256xi32> to vector<2x256xf32>
    %c1_i32 = arith.constant 1 : i32
    %109 = vector.extract_strided_slice %89 {offsets = [0, 0], sizes = [2, 512], strides = [1, 1]} : vector<2x896xf32> to vector<2x512xf32>
    %110 = vector.extract_strided_slice %89 {offsets = [0, 512], sizes = [2, 128], strides = [1, 1]} : vector<2x896xf32> to vector<2x128xf32>
    %cst_51 = arith.constant dense<0.000000e+00> : vector<2x16xf32>
    %111 = tpu.matmul %110, %26, %cst_51 {dimension_numbers = #tpu.dot_dimension_numbers<[1], [0], [0], [1], [0, 0, 1, 1], [], []>} : vector<2x128xf32>, vector<128x16xf32>, vector<2x16xf32> -> vector<2x16xf32>
    %cst_52 = arith.constant 0.0883883461 : f32
    %112 = vector.broadcast %cst_52 : f32 to vector<2x16xf32>
    %113 = arith.mulf %111, %112 : vector<2x16xf32>
    %114 = arith.addf %113, %44 : vector<2x16xf32>
    %cst_53 = arith.constant dense<0xFF800000> : vector<2xf32>
    %115 = vector.multi_reduction <maximumf>, %114, %cst_53 [1] : vector<2x16xf32> to vector<2xf32>
    %116 = vector.shape_cast %115 : vector<2xf32> to vector<2x1xf32>
    %117 = vector.broadcast %116 : vector<2x1xf32> to vector<2x16xf32>
    %118 = arith.subf %114, %117 : vector<2x16xf32>
    %119 = math.exp %118 : vector<2x16xf32>
    %cst_54 = arith.constant dense<0.000000e+00> : vector<2xf32>
    %120 = vector.multi_reduction <add>, %119, %cst_54 [1] : vector<2x16xf32> to vector<2xf32>
    %121 = vector.shape_cast %120 : vector<2xf32> to vector<2x1xf32>
    %122 = tpu.reciprocal %121 {approx = true} : vector<2x1xf32> -> vector<2x1xf32>
    %123 = vector.broadcast %122 : vector<2x1xf32> to vector<2x16xf32>
    %124 = arith.mulf %119, %123 : vector<2x16xf32>
    %cst_55 = arith.constant dense<0.000000e+00> : vector<2x128xf32>
    %125 = tpu.matmul %124, %27, %cst_55 {dimension_numbers = #tpu.dot_dimension_numbers<[1], [0], [0], [1], [0, 0, 1, 1], [], []>} : vector<2x16xf32>, vector<16x128xf32>, vector<2x128xf32> -> vector<2x128xf32>
    %126 = tpu.concatenate %108, %125 in 1 : vector<2x256xf32>, vector<2x128xf32> -> vector<2x384xf32>
    %cst_56 = arith.constant dense<0.000000e+00> : vector<2x512xf32>
    %127 = tpu.matmul %126, %41, %cst_56 {dimension_numbers = #tpu.dot_dimension_numbers<[1], [0], [0], [1], [0, 0, 1, 1], [], []>} : vector<2x384xf32>, vector<384x512xf32>, vector<2x512xf32> -> vector<2x512xf32>
    %128 = arith.addf %109, %127 : vector<2x512xf32>
    %129 = vector.broadcast %42 : vector<1x512xf32> to vector<2x512xf32>
    %130 = arith.addf %128, %129 : vector<2x512xf32>
    %131 = vector.extract_strided_slice %130 {offsets = [0, 0], sizes = [2, 384], strides = [1, 1]} : vector<2x512xf32> to vector<2x384xf32>
    %132 = arith.negf %131 : vector<2x384xf32>
    %133 = math.exp %132 : vector<2x384xf32>
    %cst_57 = arith.constant 1.000000e+00 : f32
    %134 = vector.broadcast %cst_57 : f32 to vector<2x384xf32>
    %135 = arith.addf %134, %133 : vector<2x384xf32>
    %136 = arith.divf %134, %135 : vector<2x384xf32>
    %137 = vector.extract_strided_slice %136 {offsets = [0, 0], sizes = [2, 128], strides = [1, 1]} : vector<2x384xf32> to vector<2x128xf32>
    %138 = vector.extract_strided_slice %136 {offsets = [0, 128], sizes = [2, 128], strides = [1, 1]} : vector<2x384xf32> to vector<2x128xf32>
    %139 = vector.extract_strided_slice %136 {offsets = [0, 256], sizes = [2, 128], strides = [1, 1]} : vector<2x384xf32> to vector<2x128xf32>
    %140 = vector.extract_strided_slice %130 {offsets = [0, 384], sizes = [2, 128], strides = [1, 1]} : vector<2x512xf32> to vector<2x128xf32>
    %141 = math.tanh %140 : vector<2x128xf32>
    %142 = arith.mulf %138, %86 : vector<2x128xf32>
    %143 = arith.mulf %137, %141 : vector<2x128xf32>
    %144 = arith.addf %142, %143 : vector<2x128xf32>
    %145 = math.tanh %144 : vector<2x128xf32>
    %146 = arith.mulf %139, %145 : vector<2x128xf32>
    %cst_58 = arith.constant dense<0.000000e+00> : vector<2x896xf32>
    %147 = tpu.matmul %146, %39, %cst_58 {dimension_numbers = #tpu.dot_dimension_numbers<[1], [0], [0], [1], [0, 0, 1, 1], [], []>} : vector<2x128xf32>, vector<128x896xf32>, vector<2x896xf32> -> vector<2x896xf32>
    %148 = vector.extract_strided_slice %147 {offsets = [0, 640], sizes = [2, 256], strides = [1, 1]} : vector<2x896xf32> to vector<2x256xf32>
    %149 = vector.broadcast %43 : vector<1x256xf32> to vector<2x256xf32>
    %150 = arith.addf %148, %149 : vector<2x256xf32>
    %151 = arith.index_cast %c1_i32 : i32 to index
    %c0_59 = arith.constant 0 : index
    %c0_60 = arith.constant 0 : index
    %152 = vector.load %arg15[%151, %c0_59, %c0_60] : memref<8x2x256xf32, #tpu.memory_space<vmem>>, vector<1x2x256xf32>
    %153 = vector.shape_cast %152 : vector<1x2x256xf32> to vector<2x256xf32>
    %154 = vector.shape_cast %150 : vector<2x256xf32> to vector<1x2x256xf32>
    tpu.vector_store %arg15[%151, %c0_59, %c0_60], %154 {strides = array<i32>} : memref<8x2x256xf32, #tpu.memory_space<vmem>>, vector<1x2x256xf32>,
    %cst_61 = arith.constant dense<0xFF800000> : vector<2xf32>
    %155 = vector.multi_reduction <maximumf>, %150, %cst_61 [1] : vector<2x256xf32> to vector<2xf32>
    %156 = vector.shape_cast %155 : vector<2xf32> to vector<2x1xf32>
    %157 = vector.broadcast %156 : vector<2x1xf32> to vector<2x256xf32>
    %158 = arith.cmpf oge, %150, %157 : vector<2x256xf32>
    %c256_i32_62 = arith.constant 256 : i32
    %159 = vector.broadcast %c256_i32_62 : i32 to vector<2x256xi32>
    %160 = arith.select %158, %45, %159 : vector<2x256xi1>, vector<2x256xi32>
    %cst_63 = arith.constant dense<2147483647> : vector<2xi32>
    %161 = vector.multi_reduction <minsi>, %160, %cst_63 [1] : vector<2x256xi32> to vector<2xi32>
    %162 = vector.shape_cast %161 : vector<2xi32> to vector<2x1xi32>
    %163 = vector.broadcast %162 : vector<2x1xi32> to vector<2x256xi32>
    %164 = arith.cmpi eq, %45, %163 : vector<2x256xi32>
    %165 = arith.extui %164 : vector<2x256xi1> to vector<2x256xi32>
    %166 = arith.sitofp %165 : vector<2x256xi32> to vector<2x256xf32>
    %c2_i32 = arith.constant 2 : i32
    %167 = vector.extract_strided_slice %147 {offsets = [0, 0], sizes = [2, 512], strides = [1, 1]} : vector<2x896xf32> to vector<2x512xf32>
    %168 = vector.extract_strided_slice %147 {offsets = [0, 512], sizes = [2, 128], strides = [1, 1]} : vector<2x896xf32> to vector<2x128xf32>
    %cst_64 = arith.constant dense<0.000000e+00> : vector<2x16xf32>
    %169 = tpu.matmul %168, %26, %cst_64 {dimension_numbers = #tpu.dot_dimension_numbers<[1], [0], [0], [1], [0, 0, 1, 1], [], []>} : vector<2x128xf32>, vector<128x16xf32>, vector<2x16xf32> -> vector<2x16xf32>
    %cst_65 = arith.constant 0.0883883461 : f32
    %170 = vector.broadcast %cst_65 : f32 to vector<2x16xf32>
    %171 = arith.mulf %169, %170 : vector<2x16xf32>
    %172 = arith.addf %171, %44 : vector<2x16xf32>
    %cst_66 = arith.constant dense<0xFF800000> : vector<2xf32>
    %173 = vector.multi_reduction <maximumf>, %172, %cst_66 [1] : vector<2x16xf32> to vector<2xf32>
    %174 = vector.shape_cast %173 : vector<2xf32> to vector<2x1xf32>
    %175 = vector.broadcast %174 : vector<2x1xf32> to vector<2x16xf32>
    %176 = arith.subf %172, %175 : vector<2x16xf32>
    %177 = math.exp %176 : vector<2x16xf32>
    %cst_67 = arith.constant dense<0.000000e+00> : vector<2xf32>
    %178 = vector.multi_reduction <add>, %177, %cst_67 [1] : vector<2x16xf32> to vector<2xf32>
    %179 = vector.shape_cast %178 : vector<2xf32> to vector<2x1xf32>
    %180 = tpu.reciprocal %179 {approx = true} : vector<2x1xf32> -> vector<2x1xf32>
    %181 = vector.broadcast %180 : vector<2x1xf32> to vector<2x16xf32>
    %182 = arith.mulf %177, %181 : vector<2x16xf32>
    %cst_68 = arith.constant dense<0.000000e+00> : vector<2x128xf32>
    %183 = tpu.matmul %182, %27, %cst_68 {dimension_numbers = #tpu.dot_dimension_numbers<[1], [0], [0], [1], [0, 0, 1, 1], [], []>} : vector<2x16xf32>, vector<16x128xf32>, vector<2x128xf32> -> vector<2x128xf32>
    %184 = tpu.concatenate %166, %183 in 1 : vector<2x256xf32>, vector<2x128xf32> -> vector<2x384xf32>
    %cst_69 = arith.constant dense<0.000000e+00> : vector<2x512xf32>
    %185 = tpu.matmul %184, %41, %cst_69 {dimension_numbers = #tpu.dot_dimension_numbers<[1], [0], [0], [1], [0, 0, 1, 1], [], []>} : vector<2x384xf32>, vector<384x512xf32>, vector<2x512xf32> -> vector<2x512xf32>
    %186 = arith.addf %167, %185 : vector<2x512xf32>
    %187 = vector.broadcast %42 : vector<1x512xf32> to vector<2x512xf32>
    %188 = arith.addf %186, %187 : vector<2x512xf32>
    %189 = vector.extract_strided_slice %188 {offsets = [0, 0], sizes = [2, 384], strides = [1, 1]} : vector<2x512xf32> to vector<2x384xf32>
    %190 = arith.negf %189 : vector<2x384xf32>
    %191 = math.exp %190 : vector<2x384xf32>
    %cst_70 = arith.constant 1.000000e+00 : f32
    %192 = vector.broadcast %cst_70 : f32 to vector<2x384xf32>
    %193 = arith.addf %192, %191 : vector<2x384xf32>
    %194 = arith.divf %192, %193 : vector<2x384xf32>
    %195 = vector.extract_strided_slice %194 {offsets = [0, 0], sizes = [2, 128], strides = [1, 1]} : vector<2x384xf32> to vector<2x128xf32>
    %196 = vector.extract_strided_slice %194 {offsets = [0, 128], sizes = [2, 128], strides = [1, 1]} : vector<2x384xf32> to vector<2x128xf32>
    %197 = vector.extract_strided_slice %194 {offsets = [0, 256], sizes = [2, 128], strides = [1, 1]} : vector<2x384xf32> to vector<2x128xf32>
    %198 = vector.extract_strided_slice %188 {offsets = [0, 384], sizes = [2, 128], strides = [1, 1]} : vector<2x512xf32> to vector<2x128xf32>
    %199 = math.tanh %198 : vector<2x128xf32>
    %200 = arith.mulf %196, %144 : vector<2x128xf32>
    %201 = arith.mulf %195, %199 : vector<2x128xf32>
    %202 = arith.addf %200, %201 : vector<2x128xf32>
    %203 = math.tanh %202 : vector<2x128xf32>
    %204 = arith.mulf %197, %203 : vector<2x128xf32>
    %cst_71 = arith.constant dense<0.000000e+00> : vector<2x896xf32>
    %205 = tpu.matmul %204, %39, %cst_71 {dimension_numbers = #tpu.dot_dimension_numbers<[1], [0], [0], [1], [0, 0, 1, 1], [], []>} : vector<2x128xf32>, vector<128x896xf32>, vector<2x896xf32> -> vector<2x896xf32>
    %206 = vector.extract_strided_slice %205 {offsets = [0, 640], sizes = [2, 256], strides = [1, 1]} : vector<2x896xf32> to vector<2x256xf32>
    %207 = vector.broadcast %43 : vector<1x256xf32> to vector<2x256xf32>
    %208 = arith.addf %206, %207 : vector<2x256xf32>
    %209 = arith.index_cast %c2_i32 : i32 to index
    %c0_72 = arith.constant 0 : index
    %c0_73 = arith.constant 0 : index
    %210 = vector.load %arg15[%209, %c0_72, %c0_73] : memref<8x2x256xf32, #tpu.memory_space<vmem>>, vector<1x2x256xf32>
    %211 = vector.shape_cast %210 : vector<1x2x256xf32> to vector<2x256xf32>
    %212 = vector.shape_cast %208 : vector<2x256xf32> to vector<1x2x256xf32>
    tpu.vector_store %arg15[%209, %c0_72, %c0_73], %212 {strides = array<i32>} : memref<8x2x256xf32, #tpu.memory_space<vmem>>, vector<1x2x256xf32>,
    %cst_74 = arith.constant dense<0xFF800000> : vector<2xf32>
    %213 = vector.multi_reduction <maximumf>, %208, %cst_74 [1] : vector<2x256xf32> to vector<2xf32>
    %214 = vector.shape_cast %213 : vector<2xf32> to vector<2x1xf32>
    %215 = vector.broadcast %214 : vector<2x1xf32> to vector<2x256xf32>
    %216 = arith.cmpf oge, %208, %215 : vector<2x256xf32>
    %c256_i32_75 = arith.constant 256 : i32
    %217 = vector.broadcast %c256_i32_75 : i32 to vector<2x256xi32>
    %218 = arith.select %216, %45, %217 : vector<2x256xi1>, vector<2x256xi32>
    %cst_76 = arith.constant dense<2147483647> : vector<2xi32>
    %219 = vector.multi_reduction <minsi>, %218, %cst_76 [1] : vector<2x256xi32> to vector<2xi32>
    %220 = vector.shape_cast %219 : vector<2xi32> to vector<2x1xi32>
    %221 = vector.broadcast %220 : vector<2x1xi32> to vector<2x256xi32>
    %222 = arith.cmpi eq, %45, %221 : vector<2x256xi32>
    %223 = arith.extui %222 : vector<2x256xi1> to vector<2x256xi32>
    %224 = arith.sitofp %223 : vector<2x256xi32> to vector<2x256xf32>
    %c3_i32 = arith.constant 3 : i32
    %225 = vector.extract_strided_slice %205 {offsets = [0, 0], sizes = [2, 512], strides = [1, 1]} : vector<2x896xf32> to vector<2x512xf32>
    %226 = vector.extract_strided_slice %205 {offsets = [0, 512], sizes = [2, 128], strides = [1, 1]} : vector<2x896xf32> to vector<2x128xf32>
    %cst_77 = arith.constant dense<0.000000e+00> : vector<2x16xf32>
    %227 = tpu.matmul %226, %26, %cst_77 {dimension_numbers = #tpu.dot_dimension_numbers<[1], [0], [0], [1], [0, 0, 1, 1], [], []>} : vector<2x128xf32>, vector<128x16xf32>, vector<2x16xf32> -> vector<2x16xf32>
    %cst_78 = arith.constant 0.0883883461 : f32
    %228 = vector.broadcast %cst_78 : f32 to vector<2x16xf32>
    %229 = arith.mulf %227, %228 : vector<2x16xf32>
    %230 = arith.addf %229, %44 : vector<2x16xf32>
    %cst_79 = arith.constant dense<0xFF800000> : vector<2xf32>
    %231 = vector.multi_reduction <maximumf>, %230, %cst_79 [1] : vector<2x16xf32> to vector<2xf32>
    %232 = vector.shape_cast %231 : vector<2xf32> to vector<2x1xf32>
    %233 = vector.broadcast %232 : vector<2x1xf32> to vector<2x16xf32>
    %234 = arith.subf %230, %233 : vector<2x16xf32>
    %235 = math.exp %234 : vector<2x16xf32>
    %cst_80 = arith.constant dense<0.000000e+00> : vector<2xf32>
    %236 = vector.multi_reduction <add>, %235, %cst_80 [1] : vector<2x16xf32> to vector<2xf32>
    %237 = vector.shape_cast %236 : vector<2xf32> to vector<2x1xf32>
    %238 = tpu.reciprocal %237 {approx = true} : vector<2x1xf32> -> vector<2x1xf32>
    %239 = vector.broadcast %238 : vector<2x1xf32> to vector<2x16xf32>
    %240 = arith.mulf %235, %239 : vector<2x16xf32>
    %cst_81 = arith.constant dense<0.000000e+00> : vector<2x128xf32>
    %241 = tpu.matmul %240, %27, %cst_81 {dimension_numbers = #tpu.dot_dimension_numbers<[1], [0], [0], [1], [0, 0, 1, 1], [], []>} : vector<2x16xf32>, vector<16x128xf32>, vector<2x128xf32> -> vector<2x128xf32>
    %242 = tpu.concatenate %224, %241 in 1 : vector<2x256xf32>, vector<2x128xf32> -> vector<2x384xf32>
    %cst_82 = arith.constant dense<0.000000e+00> : vector<2x512xf32>
    %243 = tpu.matmul %242, %41, %cst_82 {dimension_numbers = #tpu.dot_dimension_numbers<[1], [0], [0], [1], [0, 0, 1, 1], [], []>} : vector<2x384xf32>, vector<384x512xf32>, vector<2x512xf32> -> vector<2x512xf32>
    %244 = arith.addf %225, %243 : vector<2x512xf32>
    %245 = vector.broadcast %42 : vector<1x512xf32> to vector<2x512xf32>
    %246 = arith.addf %244, %245 : vector<2x512xf32>
    %247 = vector.extract_strided_slice %246 {offsets = [0, 0], sizes = [2, 384], strides = [1, 1]} : vector<2x512xf32> to vector<2x384xf32>
    %248 = arith.negf %247 : vector<2x384xf32>
    %249 = math.exp %248 : vector<2x384xf32>
    %cst_83 = arith.constant 1.000000e+00 : f32
    %250 = vector.broadcast %cst_83 : f32 to vector<2x384xf32>
    %251 = arith.addf %250, %249 : vector<2x384xf32>
    %252 = arith.divf %250, %251 : vector<2x384xf32>
    %253 = vector.extract_strided_slice %252 {offsets = [0, 0], sizes = [2, 128], strides = [1, 1]} : vector<2x384xf32> to vector<2x128xf32>
    %254 = vector.extract_strided_slice %252 {offsets = [0, 128], sizes = [2, 128], strides = [1, 1]} : vector<2x384xf32> to vector<2x128xf32>
    %255 = vector.extract_strided_slice %252 {offsets = [0, 256], sizes = [2, 128], strides = [1, 1]} : vector<2x384xf32> to vector<2x128xf32>
    %256 = vector.extract_strided_slice %246 {offsets = [0, 384], sizes = [2, 128], strides = [1, 1]} : vector<2x512xf32> to vector<2x128xf32>
    %257 = math.tanh %256 : vector<2x128xf32>
    %258 = arith.mulf %254, %202 : vector<2x128xf32>
    %259 = arith.mulf %253, %257 : vector<2x128xf32>
    %260 = arith.addf %258, %259 : vector<2x128xf32>
    %261 = math.tanh %260 : vector<2x128xf32>
    %262 = arith.mulf %255, %261 : vector<2x128xf32>
    %cst_84 = arith.constant dense<0.000000e+00> : vector<2x896xf32>
    %263 = tpu.matmul %262, %39, %cst_84 {dimension_numbers = #tpu.dot_dimension_numbers<[1], [0], [0], [1], [0, 0, 1, 1], [], []>} : vector<2x128xf32>, vector<128x896xf32>, vector<2x896xf32> -> vector<2x896xf32>
    %264 = vector.extract_strided_slice %263 {offsets = [0, 640], sizes = [2, 256], strides = [1, 1]} : vector<2x896xf32> to vector<2x256xf32>
    %265 = vector.broadcast %43 : vector<1x256xf32> to vector<2x256xf32>
    %266 = arith.addf %264, %265 : vector<2x256xf32>
    %267 = arith.index_cast %c3_i32 : i32 to index
    %c0_85 = arith.constant 0 : index
    %c0_86 = arith.constant 0 : index
    %268 = vector.load %arg15[%267, %c0_85, %c0_86] : memref<8x2x256xf32, #tpu.memory_space<vmem>>, vector<1x2x256xf32>
    %269 = vector.shape_cast %268 : vector<1x2x256xf32> to vector<2x256xf32>
    %270 = vector.shape_cast %266 : vector<2x256xf32> to vector<1x2x256xf32>
    tpu.vector_store %arg15[%267, %c0_85, %c0_86], %270 {strides = array<i32>} : memref<8x2x256xf32, #tpu.memory_space<vmem>>, vector<1x2x256xf32>,
    %cst_87 = arith.constant dense<0xFF800000> : vector<2xf32>
    %271 = vector.multi_reduction <maximumf>, %266, %cst_87 [1] : vector<2x256xf32> to vector<2xf32>
    %272 = vector.shape_cast %271 : vector<2xf32> to vector<2x1xf32>
    %273 = vector.broadcast %272 : vector<2x1xf32> to vector<2x256xf32>
    %274 = arith.cmpf oge, %266, %273 : vector<2x256xf32>
    %c256_i32_88 = arith.constant 256 : i32
    %275 = vector.broadcast %c256_i32_88 : i32 to vector<2x256xi32>
    %276 = arith.select %274, %45, %275 : vector<2x256xi1>, vector<2x256xi32>
    %cst_89 = arith.constant dense<2147483647> : vector<2xi32>
    %277 = vector.multi_reduction <minsi>, %276, %cst_89 [1] : vector<2x256xi32> to vector<2xi32>
    %278 = vector.shape_cast %277 : vector<2xi32> to vector<2x1xi32>
    %279 = vector.broadcast %278 : vector<2x1xi32> to vector<2x256xi32>
    %280 = arith.cmpi eq, %45, %279 : vector<2x256xi32>
    %281 = arith.extui %280 : vector<2x256xi1> to vector<2x256xi32>
    %282 = arith.sitofp %281 : vector<2x256xi32> to vector<2x256xf32>
    %c4_i32 = arith.constant 4 : i32
    %283 = vector.extract_strided_slice %263 {offsets = [0, 0], sizes = [2, 512], strides = [1, 1]} : vector<2x896xf32> to vector<2x512xf32>
    %284 = vector.extract_strided_slice %263 {offsets = [0, 512], sizes = [2, 128], strides = [1, 1]} : vector<2x896xf32> to vector<2x128xf32>
    %cst_90 = arith.constant dense<0.000000e+00> : vector<2x16xf32>
    %285 = tpu.matmul %284, %26, %cst_90 {dimension_numbers = #tpu.dot_dimension_numbers<[1], [0], [0], [1], [0, 0, 1, 1], [], []>} : vector<2x128xf32>, vector<128x16xf32>, vector<2x16xf32> -> vector<2x16xf32>
    %cst_91 = arith.constant 0.0883883461 : f32
    %286 = vector.broadcast %cst_91 : f32 to vector<2x16xf32>
    %287 = arith.mulf %285, %286 : vector<2x16xf32>
    %288 = arith.addf %287, %44 : vector<2x16xf32>
    %cst_92 = arith.constant dense<0xFF800000> : vector<2xf32>
    %289 = vector.multi_reduction <maximumf>, %288, %cst_92 [1] : vector<2x16xf32> to vector<2xf32>
    %290 = vector.shape_cast %289 : vector<2xf32> to vector<2x1xf32>
    %291 = vector.broadcast %290 : vector<2x1xf32> to vector<2x16xf32>
    %292 = arith.subf %288, %291 : vector<2x16xf32>
    %293 = math.exp %292 : vector<2x16xf32>
    %cst_93 = arith.constant dense<0.000000e+00> : vector<2xf32>
    %294 = vector.multi_reduction <add>, %293, %cst_93 [1] : vector<2x16xf32> to vector<2xf32>
    %295 = vector.shape_cast %294 : vector<2xf32> to vector<2x1xf32>
    %296 = tpu.reciprocal %295 {approx = true} : vector<2x1xf32> -> vector<2x1xf32>
    %297 = vector.broadcast %296 : vector<2x1xf32> to vector<2x16xf32>
    %298 = arith.mulf %293, %297 : vector<2x16xf32>
    %cst_94 = arith.constant dense<0.000000e+00> : vector<2x128xf32>
    %299 = tpu.matmul %298, %27, %cst_94 {dimension_numbers = #tpu.dot_dimension_numbers<[1], [0], [0], [1], [0, 0, 1, 1], [], []>} : vector<2x16xf32>, vector<16x128xf32>, vector<2x128xf32> -> vector<2x128xf32>
    %300 = tpu.concatenate %282, %299 in 1 : vector<2x256xf32>, vector<2x128xf32> -> vector<2x384xf32>
    %cst_95 = arith.constant dense<0.000000e+00> : vector<2x512xf32>
    %301 = tpu.matmul %300, %41, %cst_95 {dimension_numbers = #tpu.dot_dimension_numbers<[1], [0], [0], [1], [0, 0, 1, 1], [], []>} : vector<2x384xf32>, vector<384x512xf32>, vector<2x512xf32> -> vector<2x512xf32>
    %302 = arith.addf %283, %301 : vector<2x512xf32>
    %303 = vector.broadcast %42 : vector<1x512xf32> to vector<2x512xf32>
    %304 = arith.addf %302, %303 : vector<2x512xf32>
    %305 = vector.extract_strided_slice %304 {offsets = [0, 0], sizes = [2, 384], strides = [1, 1]} : vector<2x512xf32> to vector<2x384xf32>
    %306 = arith.negf %305 : vector<2x384xf32>
    %307 = math.exp %306 : vector<2x384xf32>
    %cst_96 = arith.constant 1.000000e+00 : f32
    %308 = vector.broadcast %cst_96 : f32 to vector<2x384xf32>
    %309 = arith.addf %308, %307 : vector<2x384xf32>
    %310 = arith.divf %308, %309 : vector<2x384xf32>
    %311 = vector.extract_strided_slice %310 {offsets = [0, 0], sizes = [2, 128], strides = [1, 1]} : vector<2x384xf32> to vector<2x128xf32>
    %312 = vector.extract_strided_slice %310 {offsets = [0, 128], sizes = [2, 128], strides = [1, 1]} : vector<2x384xf32> to vector<2x128xf32>
    %313 = vector.extract_strided_slice %310 {offsets = [0, 256], sizes = [2, 128], strides = [1, 1]} : vector<2x384xf32> to vector<2x128xf32>
    %314 = vector.extract_strided_slice %304 {offsets = [0, 384], sizes = [2, 128], strides = [1, 1]} : vector<2x512xf32> to vector<2x128xf32>
    %315 = math.tanh %314 : vector<2x128xf32>
    %316 = arith.mulf %312, %260 : vector<2x128xf32>
    %317 = arith.mulf %311, %315 : vector<2x128xf32>
    %318 = arith.addf %316, %317 : vector<2x128xf32>
    %319 = math.tanh %318 : vector<2x128xf32>
    %320 = arith.mulf %313, %319 : vector<2x128xf32>
    %cst_97 = arith.constant dense<0.000000e+00> : vector<2x896xf32>
    %321 = tpu.matmul %320, %39, %cst_97 {dimension_numbers = #tpu.dot_dimension_numbers<[1], [0], [0], [1], [0, 0, 1, 1], [], []>} : vector<2x128xf32>, vector<128x896xf32>, vector<2x896xf32> -> vector<2x896xf32>
    %322 = vector.extract_strided_slice %321 {offsets = [0, 640], sizes = [2, 256], strides = [1, 1]} : vector<2x896xf32> to vector<2x256xf32>
    %323 = vector.broadcast %43 : vector<1x256xf32> to vector<2x256xf32>
    %324 = arith.addf %322, %323 : vector<2x256xf32>
    %325 = arith.index_cast %c4_i32 : i32 to index
    %c0_98 = arith.constant 0 : index
    %c0_99 = arith.constant 0 : index
    %326 = vector.load %arg15[%325, %c0_98, %c0_99] : memref<8x2x256xf32, #tpu.memory_space<vmem>>, vector<1x2x256xf32>
    %327 = vector.shape_cast %326 : vector<1x2x256xf32> to vector<2x256xf32>
    %328 = vector.shape_cast %324 : vector<2x256xf32> to vector<1x2x256xf32>
    tpu.vector_store %arg15[%325, %c0_98, %c0_99], %328 {strides = array<i32>} : memref<8x2x256xf32, #tpu.memory_space<vmem>>, vector<1x2x256xf32>,
    %cst_100 = arith.constant dense<0xFF800000> : vector<2xf32>
    %329 = vector.multi_reduction <maximumf>, %324, %cst_100 [1] : vector<2x256xf32> to vector<2xf32>
    %330 = vector.shape_cast %329 : vector<2xf32> to vector<2x1xf32>
    %331 = vector.broadcast %330 : vector<2x1xf32> to vector<2x256xf32>
    %332 = arith.cmpf oge, %324, %331 : vector<2x256xf32>
    %c256_i32_101 = arith.constant 256 : i32
    %333 = vector.broadcast %c256_i32_101 : i32 to vector<2x256xi32>
    %334 = arith.select %332, %45, %333 : vector<2x256xi1>, vector<2x256xi32>
    %cst_102 = arith.constant dense<2147483647> : vector<2xi32>
    %335 = vector.multi_reduction <minsi>, %334, %cst_102 [1] : vector<2x256xi32> to vector<2xi32>
    %336 = vector.shape_cast %335 : vector<2xi32> to vector<2x1xi32>
    %337 = vector.broadcast %336 : vector<2x1xi32> to vector<2x256xi32>
    %338 = arith.cmpi eq, %45, %337 : vector<2x256xi32>
    %339 = arith.extui %338 : vector<2x256xi1> to vector<2x256xi32>
    %340 = arith.sitofp %339 : vector<2x256xi32> to vector<2x256xf32>
    %c5_i32 = arith.constant 5 : i32
    %341 = vector.extract_strided_slice %321 {offsets = [0, 0], sizes = [2, 512], strides = [1, 1]} : vector<2x896xf32> to vector<2x512xf32>
    %342 = vector.extract_strided_slice %321 {offsets = [0, 512], sizes = [2, 128], strides = [1, 1]} : vector<2x896xf32> to vector<2x128xf32>
    %cst_103 = arith.constant dense<0.000000e+00> : vector<2x16xf32>
    %343 = tpu.matmul %342, %26, %cst_103 {dimension_numbers = #tpu.dot_dimension_numbers<[1], [0], [0], [1], [0, 0, 1, 1], [], []>} : vector<2x128xf32>, vector<128x16xf32>, vector<2x16xf32> -> vector<2x16xf32>
    %cst_104 = arith.constant 0.0883883461 : f32
    %344 = vector.broadcast %cst_104 : f32 to vector<2x16xf32>
    %345 = arith.mulf %343, %344 : vector<2x16xf32>
    %346 = arith.addf %345, %44 : vector<2x16xf32>
    %cst_105 = arith.constant dense<0xFF800000> : vector<2xf32>
    %347 = vector.multi_reduction <maximumf>, %346, %cst_105 [1] : vector<2x16xf32> to vector<2xf32>
    %348 = vector.shape_cast %347 : vector<2xf32> to vector<2x1xf32>
    %349 = vector.broadcast %348 : vector<2x1xf32> to vector<2x16xf32>
    %350 = arith.subf %346, %349 : vector<2x16xf32>
    %351 = math.exp %350 : vector<2x16xf32>
    %cst_106 = arith.constant dense<0.000000e+00> : vector<2xf32>
    %352 = vector.multi_reduction <add>, %351, %cst_106 [1] : vector<2x16xf32> to vector<2xf32>
    %353 = vector.shape_cast %352 : vector<2xf32> to vector<2x1xf32>
    %354 = tpu.reciprocal %353 {approx = true} : vector<2x1xf32> -> vector<2x1xf32>
    %355 = vector.broadcast %354 : vector<2x1xf32> to vector<2x16xf32>
    %356 = arith.mulf %351, %355 : vector<2x16xf32>
    %cst_107 = arith.constant dense<0.000000e+00> : vector<2x128xf32>
    %357 = tpu.matmul %356, %27, %cst_107 {dimension_numbers = #tpu.dot_dimension_numbers<[1], [0], [0], [1], [0, 0, 1, 1], [], []>} : vector<2x16xf32>, vector<16x128xf32>, vector<2x128xf32> -> vector<2x128xf32>
    %358 = tpu.concatenate %340, %357 in 1 : vector<2x256xf32>, vector<2x128xf32> -> vector<2x384xf32>
    %cst_108 = arith.constant dense<0.000000e+00> : vector<2x512xf32>
    %359 = tpu.matmul %358, %41, %cst_108 {dimension_numbers = #tpu.dot_dimension_numbers<[1], [0], [0], [1], [0, 0, 1, 1], [], []>} : vector<2x384xf32>, vector<384x512xf32>, vector<2x512xf32> -> vector<2x512xf32>
    %360 = arith.addf %341, %359 : vector<2x512xf32>
    %361 = vector.broadcast %42 : vector<1x512xf32> to vector<2x512xf32>
    %362 = arith.addf %360, %361 : vector<2x512xf32>
    %363 = vector.extract_strided_slice %362 {offsets = [0, 0], sizes = [2, 384], strides = [1, 1]} : vector<2x512xf32> to vector<2x384xf32>
    %364 = arith.negf %363 : vector<2x384xf32>
    %365 = math.exp %364 : vector<2x384xf32>
    %cst_109 = arith.constant 1.000000e+00 : f32
    %366 = vector.broadcast %cst_109 : f32 to vector<2x384xf32>
    %367 = arith.addf %366, %365 : vector<2x384xf32>
    %368 = arith.divf %366, %367 : vector<2x384xf32>
    %369 = vector.extract_strided_slice %368 {offsets = [0, 0], sizes = [2, 128], strides = [1, 1]} : vector<2x384xf32> to vector<2x128xf32>
    %370 = vector.extract_strided_slice %368 {offsets = [0, 128], sizes = [2, 128], strides = [1, 1]} : vector<2x384xf32> to vector<2x128xf32>
    %371 = vector.extract_strided_slice %368 {offsets = [0, 256], sizes = [2, 128], strides = [1, 1]} : vector<2x384xf32> to vector<2x128xf32>
    %372 = vector.extract_strided_slice %362 {offsets = [0, 384], sizes = [2, 128], strides = [1, 1]} : vector<2x512xf32> to vector<2x128xf32>
    %373 = math.tanh %372 : vector<2x128xf32>
    %374 = arith.mulf %370, %318 : vector<2x128xf32>
    %375 = arith.mulf %369, %373 : vector<2x128xf32>
    %376 = arith.addf %374, %375 : vector<2x128xf32>
    %377 = math.tanh %376 : vector<2x128xf32>
    %378 = arith.mulf %371, %377 : vector<2x128xf32>
    %cst_110 = arith.constant dense<0.000000e+00> : vector<2x896xf32>
    %379 = tpu.matmul %378, %39, %cst_110 {dimension_numbers = #tpu.dot_dimension_numbers<[1], [0], [0], [1], [0, 0, 1, 1], [], []>} : vector<2x128xf32>, vector<128x896xf32>, vector<2x896xf32> -> vector<2x896xf32>
    %380 = vector.extract_strided_slice %379 {offsets = [0, 640], sizes = [2, 256], strides = [1, 1]} : vector<2x896xf32> to vector<2x256xf32>
    %381 = vector.broadcast %43 : vector<1x256xf32> to vector<2x256xf32>
    %382 = arith.addf %380, %381 : vector<2x256xf32>
    %383 = arith.index_cast %c5_i32 : i32 to index
    %c0_111 = arith.constant 0 : index
    %c0_112 = arith.constant 0 : index
    %384 = vector.load %arg15[%383, %c0_111, %c0_112] : memref<8x2x256xf32, #tpu.memory_space<vmem>>, vector<1x2x256xf32>
    %385 = vector.shape_cast %384 : vector<1x2x256xf32> to vector<2x256xf32>
    %386 = vector.shape_cast %382 : vector<2x256xf32> to vector<1x2x256xf32>
    tpu.vector_store %arg15[%383, %c0_111, %c0_112], %386 {strides = array<i32>} : memref<8x2x256xf32, #tpu.memory_space<vmem>>, vector<1x2x256xf32>,
    %cst_113 = arith.constant dense<0xFF800000> : vector<2xf32>
    %387 = vector.multi_reduction <maximumf>, %382, %cst_113 [1] : vector<2x256xf32> to vector<2xf32>
    %388 = vector.shape_cast %387 : vector<2xf32> to vector<2x1xf32>
    %389 = vector.broadcast %388 : vector<2x1xf32> to vector<2x256xf32>
    %390 = arith.cmpf oge, %382, %389 : vector<2x256xf32>
    %c256_i32_114 = arith.constant 256 : i32
    %391 = vector.broadcast %c256_i32_114 : i32 to vector<2x256xi32>
    %392 = arith.select %390, %45, %391 : vector<2x256xi1>, vector<2x256xi32>
    %cst_115 = arith.constant dense<2147483647> : vector<2xi32>
    %393 = vector.multi_reduction <minsi>, %392, %cst_115 [1] : vector<2x256xi32> to vector<2xi32>
    %394 = vector.shape_cast %393 : vector<2xi32> to vector<2x1xi32>
    %395 = vector.broadcast %394 : vector<2x1xi32> to vector<2x256xi32>
    %396 = arith.cmpi eq, %45, %395 : vector<2x256xi32>
    %397 = arith.extui %396 : vector<2x256xi1> to vector<2x256xi32>
    %398 = arith.sitofp %397 : vector<2x256xi32> to vector<2x256xf32>
    %c6_i32 = arith.constant 6 : i32
    %399 = vector.extract_strided_slice %379 {offsets = [0, 0], sizes = [2, 512], strides = [1, 1]} : vector<2x896xf32> to vector<2x512xf32>
    %400 = vector.extract_strided_slice %379 {offsets = [0, 512], sizes = [2, 128], strides = [1, 1]} : vector<2x896xf32> to vector<2x128xf32>
    %cst_116 = arith.constant dense<0.000000e+00> : vector<2x16xf32>
    %401 = tpu.matmul %400, %26, %cst_116 {dimension_numbers = #tpu.dot_dimension_numbers<[1], [0], [0], [1], [0, 0, 1, 1], [], []>} : vector<2x128xf32>, vector<128x16xf32>, vector<2x16xf32> -> vector<2x16xf32>
    %cst_117 = arith.constant 0.0883883461 : f32
    %402 = vector.broadcast %cst_117 : f32 to vector<2x16xf32>
    %403 = arith.mulf %401, %402 : vector<2x16xf32>
    %404 = arith.addf %403, %44 : vector<2x16xf32>
    %cst_118 = arith.constant dense<0xFF800000> : vector<2xf32>
    %405 = vector.multi_reduction <maximumf>, %404, %cst_118 [1] : vector<2x16xf32> to vector<2xf32>
    %406 = vector.shape_cast %405 : vector<2xf32> to vector<2x1xf32>
    %407 = vector.broadcast %406 : vector<2x1xf32> to vector<2x16xf32>
    %408 = arith.subf %404, %407 : vector<2x16xf32>
    %409 = math.exp %408 : vector<2x16xf32>
    %cst_119 = arith.constant dense<0.000000e+00> : vector<2xf32>
    %410 = vector.multi_reduction <add>, %409, %cst_119 [1] : vector<2x16xf32> to vector<2xf32>
    %411 = vector.shape_cast %410 : vector<2xf32> to vector<2x1xf32>
    %412 = tpu.reciprocal %411 {approx = true} : vector<2x1xf32> -> vector<2x1xf32>
    %413 = vector.broadcast %412 : vector<2x1xf32> to vector<2x16xf32>
    %414 = arith.mulf %409, %413 : vector<2x16xf32>
    %cst_120 = arith.constant dense<0.000000e+00> : vector<2x128xf32>
    %415 = tpu.matmul %414, %27, %cst_120 {dimension_numbers = #tpu.dot_dimension_numbers<[1], [0], [0], [1], [0, 0, 1, 1], [], []>} : vector<2x16xf32>, vector<16x128xf32>, vector<2x128xf32> -> vector<2x128xf32>
    %416 = tpu.concatenate %398, %415 in 1 : vector<2x256xf32>, vector<2x128xf32> -> vector<2x384xf32>
    %cst_121 = arith.constant dense<0.000000e+00> : vector<2x512xf32>
    %417 = tpu.matmul %416, %41, %cst_121 {dimension_numbers = #tpu.dot_dimension_numbers<[1], [0], [0], [1], [0, 0, 1, 1], [], []>} : vector<2x384xf32>, vector<384x512xf32>, vector<2x512xf32> -> vector<2x512xf32>
    %418 = arith.addf %399, %417 : vector<2x512xf32>
    %419 = vector.broadcast %42 : vector<1x512xf32> to vector<2x512xf32>
    %420 = arith.addf %418, %419 : vector<2x512xf32>
    %421 = vector.extract_strided_slice %420 {offsets = [0, 0], sizes = [2, 384], strides = [1, 1]} : vector<2x512xf32> to vector<2x384xf32>
    %422 = arith.negf %421 : vector<2x384xf32>
    %423 = math.exp %422 : vector<2x384xf32>
    %cst_122 = arith.constant 1.000000e+00 : f32
    %424 = vector.broadcast %cst_122 : f32 to vector<2x384xf32>
    %425 = arith.addf %424, %423 : vector<2x384xf32>
    %426 = arith.divf %424, %425 : vector<2x384xf32>
    %427 = vector.extract_strided_slice %426 {offsets = [0, 0], sizes = [2, 128], strides = [1, 1]} : vector<2x384xf32> to vector<2x128xf32>
    %428 = vector.extract_strided_slice %426 {offsets = [0, 128], sizes = [2, 128], strides = [1, 1]} : vector<2x384xf32> to vector<2x128xf32>
    %429 = vector.extract_strided_slice %426 {offsets = [0, 256], sizes = [2, 128], strides = [1, 1]} : vector<2x384xf32> to vector<2x128xf32>
    %430 = vector.extract_strided_slice %420 {offsets = [0, 384], sizes = [2, 128], strides = [1, 1]} : vector<2x512xf32> to vector<2x128xf32>
    %431 = math.tanh %430 : vector<2x128xf32>
    %432 = arith.mulf %428, %376 : vector<2x128xf32>
    %433 = arith.mulf %427, %431 : vector<2x128xf32>
    %434 = arith.addf %432, %433 : vector<2x128xf32>
    %435 = math.tanh %434 : vector<2x128xf32>
    %436 = arith.mulf %429, %435 : vector<2x128xf32>
    %cst_123 = arith.constant dense<0.000000e+00> : vector<2x896xf32>
    %437 = tpu.matmul %436, %39, %cst_123 {dimension_numbers = #tpu.dot_dimension_numbers<[1], [0], [0], [1], [0, 0, 1, 1], [], []>} : vector<2x128xf32>, vector<128x896xf32>, vector<2x896xf32> -> vector<2x896xf32>
    %438 = vector.extract_strided_slice %437 {offsets = [0, 640], sizes = [2, 256], strides = [1, 1]} : vector<2x896xf32> to vector<2x256xf32>
    %439 = vector.broadcast %43 : vector<1x256xf32> to vector<2x256xf32>
    %440 = arith.addf %438, %439 : vector<2x256xf32>
    %441 = arith.index_cast %c6_i32 : i32 to index
    %c0_124 = arith.constant 0 : index
    %c0_125 = arith.constant 0 : index
    %442 = vector.load %arg15[%441, %c0_124, %c0_125] : memref<8x2x256xf32, #tpu.memory_space<vmem>>, vector<1x2x256xf32>
    %443 = vector.shape_cast %442 : vector<1x2x256xf32> to vector<2x256xf32>
    %444 = vector.shape_cast %440 : vector<2x256xf32> to vector<1x2x256xf32>
    tpu.vector_store %arg15[%441, %c0_124, %c0_125], %444 {strides = array<i32>} : memref<8x2x256xf32, #tpu.memory_space<vmem>>, vector<1x2x256xf32>,
    %cst_126 = arith.constant dense<0xFF800000> : vector<2xf32>
    %445 = vector.multi_reduction <maximumf>, %440, %cst_126 [1] : vector<2x256xf32> to vector<2xf32>
    %446 = vector.shape_cast %445 : vector<2xf32> to vector<2x1xf32>
    %447 = vector.broadcast %446 : vector<2x1xf32> to vector<2x256xf32>
    %448 = arith.cmpf oge, %440, %447 : vector<2x256xf32>
    %c256_i32_127 = arith.constant 256 : i32
    %449 = vector.broadcast %c256_i32_127 : i32 to vector<2x256xi32>
    %450 = arith.select %448, %45, %449 : vector<2x256xi1>, vector<2x256xi32>
    %cst_128 = arith.constant dense<2147483647> : vector<2xi32>
    %451 = vector.multi_reduction <minsi>, %450, %cst_128 [1] : vector<2x256xi32> to vector<2xi32>
    %452 = vector.shape_cast %451 : vector<2xi32> to vector<2x1xi32>
    %453 = vector.broadcast %452 : vector<2x1xi32> to vector<2x256xi32>
    %454 = arith.cmpi eq, %45, %453 : vector<2x256xi32>
    %455 = arith.extui %454 : vector<2x256xi1> to vector<2x256xi32>
    %456 = arith.sitofp %455 : vector<2x256xi32> to vector<2x256xf32>
    %c7_i32 = arith.constant 7 : i32
    %457 = vector.extract_strided_slice %437 {offsets = [0, 0], sizes = [2, 512], strides = [1, 1]} : vector<2x896xf32> to vector<2x512xf32>
    %458 = vector.extract_strided_slice %437 {offsets = [0, 512], sizes = [2, 128], strides = [1, 1]} : vector<2x896xf32> to vector<2x128xf32>
    %cst_129 = arith.constant dense<0.000000e+00> : vector<2x16xf32>
    %459 = tpu.matmul %458, %26, %cst_129 {dimension_numbers = #tpu.dot_dimension_numbers<[1], [0], [0], [1], [0, 0, 1, 1], [], []>} : vector<2x128xf32>, vector<128x16xf32>, vector<2x16xf32> -> vector<2x16xf32>
    %cst_130 = arith.constant 0.0883883461 : f32
    %460 = vector.broadcast %cst_130 : f32 to vector<2x16xf32>
    %461 = arith.mulf %459, %460 : vector<2x16xf32>
    %462 = arith.addf %461, %44 : vector<2x16xf32>
    %cst_131 = arith.constant dense<0xFF800000> : vector<2xf32>
    %463 = vector.multi_reduction <maximumf>, %462, %cst_131 [1] : vector<2x16xf32> to vector<2xf32>
    %464 = vector.shape_cast %463 : vector<2xf32> to vector<2x1xf32>
    %465 = vector.broadcast %464 : vector<2x1xf32> to vector<2x16xf32>
    %466 = arith.subf %462, %465 : vector<2x16xf32>
    %467 = math.exp %466 : vector<2x16xf32>
    %cst_132 = arith.constant dense<0.000000e+00> : vector<2xf32>
    %468 = vector.multi_reduction <add>, %467, %cst_132 [1] : vector<2x16xf32> to vector<2xf32>
    %469 = vector.shape_cast %468 : vector<2xf32> to vector<2x1xf32>
    %470 = tpu.reciprocal %469 {approx = true} : vector<2x1xf32> -> vector<2x1xf32>
    %471 = vector.broadcast %470 : vector<2x1xf32> to vector<2x16xf32>
    %472 = arith.mulf %467, %471 : vector<2x16xf32>
    %cst_133 = arith.constant dense<0.000000e+00> : vector<2x128xf32>
    %473 = tpu.matmul %472, %27, %cst_133 {dimension_numbers = #tpu.dot_dimension_numbers<[1], [0], [0], [1], [0, 0, 1, 1], [], []>} : vector<2x16xf32>, vector<16x128xf32>, vector<2x128xf32> -> vector<2x128xf32>
    %474 = tpu.concatenate %456, %473 in 1 : vector<2x256xf32>, vector<2x128xf32> -> vector<2x384xf32>
    %cst_134 = arith.constant dense<0.000000e+00> : vector<2x512xf32>
    %475 = tpu.matmul %474, %41, %cst_134 {dimension_numbers = #tpu.dot_dimension_numbers<[1], [0], [0], [1], [0, 0, 1, 1], [], []>} : vector<2x384xf32>, vector<384x512xf32>, vector<2x512xf32> -> vector<2x512xf32>
    %476 = arith.addf %457, %475 : vector<2x512xf32>
    %477 = vector.broadcast %42 : vector<1x512xf32> to vector<2x512xf32>
    %478 = arith.addf %476, %477 : vector<2x512xf32>
    %479 = vector.extract_strided_slice %478 {offsets = [0, 0], sizes = [2, 384], strides = [1, 1]} : vector<2x512xf32> to vector<2x384xf32>
    %480 = arith.negf %479 : vector<2x384xf32>
    %481 = math.exp %480 : vector<2x384xf32>
    %cst_135 = arith.constant 1.000000e+00 : f32
    %482 = vector.broadcast %cst_135 : f32 to vector<2x384xf32>
    %483 = arith.addf %482, %481 : vector<2x384xf32>
    %484 = arith.divf %482, %483 : vector<2x384xf32>
    %485 = vector.extract_strided_slice %484 {offsets = [0, 0], sizes = [2, 128], strides = [1, 1]} : vector<2x384xf32> to vector<2x128xf32>
    %486 = vector.extract_strided_slice %484 {offsets = [0, 128], sizes = [2, 128], strides = [1, 1]} : vector<2x384xf32> to vector<2x128xf32>
    %487 = vector.extract_strided_slice %484 {offsets = [0, 256], sizes = [2, 128], strides = [1, 1]} : vector<2x384xf32> to vector<2x128xf32>
    %488 = vector.extract_strided_slice %478 {offsets = [0, 384], sizes = [2, 128], strides = [1, 1]} : vector<2x512xf32> to vector<2x128xf32>
    %489 = math.tanh %488 : vector<2x128xf32>
    %490 = arith.mulf %486, %434 : vector<2x128xf32>
    %491 = arith.mulf %485, %489 : vector<2x128xf32>
    %492 = arith.addf %490, %491 : vector<2x128xf32>
    %493 = math.tanh %492 : vector<2x128xf32>
    %494 = arith.mulf %487, %493 : vector<2x128xf32>
    %cst_136 = arith.constant dense<0.000000e+00> : vector<2x896xf32>
    %495 = tpu.matmul %494, %39, %cst_136 {dimension_numbers = #tpu.dot_dimension_numbers<[1], [0], [0], [1], [0, 0, 1, 1], [], []>} : vector<2x128xf32>, vector<128x896xf32>, vector<2x896xf32> -> vector<2x896xf32>
    %496 = vector.extract_strided_slice %495 {offsets = [0, 640], sizes = [2, 256], strides = [1, 1]} : vector<2x896xf32> to vector<2x256xf32>
    %497 = vector.broadcast %43 : vector<1x256xf32> to vector<2x256xf32>
    %498 = arith.addf %496, %497 : vector<2x256xf32>
    %499 = arith.index_cast %c7_i32 : i32 to index
    %c0_137 = arith.constant 0 : index
    %c0_138 = arith.constant 0 : index
    %500 = vector.load %arg15[%499, %c0_137, %c0_138] : memref<8x2x256xf32, #tpu.memory_space<vmem>>, vector<1x2x256xf32>
    %501 = vector.shape_cast %500 : vector<1x2x256xf32> to vector<2x256xf32>
    %502 = vector.shape_cast %498 : vector<2x256xf32> to vector<1x2x256xf32>
    tpu.vector_store %arg15[%499, %c0_137, %c0_138], %502 {strides = array<i32>} : memref<8x2x256xf32, #tpu.memory_space<vmem>>, vector<1x2x256xf32>,
    %cst_139 = arith.constant dense<0xFF800000> : vector<2xf32>
    %503 = vector.multi_reduction <maximumf>, %498, %cst_139 [1] : vector<2x256xf32> to vector<2xf32>
    %504 = vector.shape_cast %503 : vector<2xf32> to vector<2x1xf32>
    %505 = vector.broadcast %504 : vector<2x1xf32> to vector<2x256xf32>
    %506 = arith.cmpf oge, %498, %505 : vector<2x256xf32>
    %c256_i32_140 = arith.constant 256 : i32
    %507 = vector.broadcast %c256_i32_140 : i32 to vector<2x256xi32>
    %508 = arith.select %506, %45, %507 : vector<2x256xi1>, vector<2x256xi32>
    %cst_141 = arith.constant dense<2147483647> : vector<2xi32>
    %509 = vector.multi_reduction <minsi>, %508, %cst_141 [1] : vector<2x256xi32> to vector<2xi32>
    %510 = vector.shape_cast %509 : vector<2xi32> to vector<2x1xi32>
    %511 = vector.broadcast %510 : vector<2x1xi32> to vector<2x256xi32>
    %512 = arith.cmpi eq, %45, %511 : vector<2x256xi32>
    %513 = arith.extui %512 : vector<2x256xi1> to vector<2x256xi32>
    %514 = arith.sitofp %513 : vector<2x256xi32> to vector<2x256xf32>
    %c8_i32 = arith.constant 8 : i32
    return
  }
}

</mosaic_0001>

<llo_original>
// kernel: image2text_forward.1
$region0: #{image2text_forward.1}
  #allocation0 [shape = 'u32[]', space=smem, size = 0x4, offset = 0x4, fixed_abs, tag = 'smem constant byte address 0x4 - core index']
  #allocation1 [shape = 'u32[72,128]{1,0:T(1,128)}', space=vmem, size = 0x9000, scoped, tag = 'internal scratch']
  %s0 = inlined_call_operand.vmem [shape: f32[128,12], index: 0, kind: input, shape index: {}]
  %s1 = inlined_call_operand.vmem [shape: f32[16,128], index: 1, kind: input, shape index: {}]
  %s2 = inlined_call_operand.vmem [shape: f32[2,16], index: 2, kind: input, shape index: {}]
  %s3 = inlined_call_operand.vmem [shape: f32[2,16], index: 3, kind: input, shape index: {}]
  %s4 = inlined_call_operand.vmem [shape: bf16[12,128], index: 4, kind: input, shape index: {}]
  %s5 = inlined_call_operand.vmem [shape: f32[1,128], index: 5, kind: input, shape index: {}]
  %s6 = inlined_call_operand.vmem [shape: bf16[128,128], index: 6, kind: input, shape index: {}]
  %s7 = inlined_call_operand.vmem [shape: f32[1,128], index: 7, kind: input, shape index: {}]
  %s8 = inlined_call_operand.vmem [shape: bf16[128,256], index: 8, kind: input, shape index: {}]
  %s9 = inlined_call_operand.vmem [shape: bf16[128,256], index: 9, kind: input, shape index: {}]
  %s10 = inlined_call_operand.vmem [shape: f32[1,256], index: 10, kind: input, shape index: {}]
  %s11 = inlined_call_operand.vmem [shape: bf16[128,896], index: 11, kind: input, shape index: {}]
  %s12 = inlined_call_operand.vmem [shape: bf16[384,512], index: 12, kind: input, shape index: {}]
  %s13 = inlined_call_operand.vmem [shape: f32[1,512], index: 13, kind: input, shape index: {}]
  %s14 = inlined_call_operand.vmem [shape: f32[1,256], index: 14, kind: input, shape index: {}]
  %s15 = inlined_call_operand.vmem [shape: f32[8,2,256], index: 15, kind: output, shape index: {}]
  %s16 = sld [smem:[#allocation0]]
  $region70: #{image2text_forward.1} parent=0
    _
  %s18 = ssub.s32 1, %s16
  %s19 = scalar_select 0, %s18, %s16
  // Predicated region
  $region2: #{image2text_forward.1} parent=0 // pred_check
    _
  $region3: #{image2text_forward.1} parent=0 // pred_check_branch
    %21 = sbr.rel (0) target = $region5
  $region4: #{image2text_forward.1} parent=0 // pred_region
    _
  $region5: #{image2text_forward.1} parent=0 // pred_fallthru
    _
  // Predicated region
  $region6: #{image2text_forward.1} parent=0 // pred_check
    _
  $region7: #{image2text_forward.1} parent=0 // pred_check_branch
    %23 = sbr.rel (0) target = $region9
  $region8: #{image2text_forward.1} parent=0 // pred_region
    _
  $region9: #{image2text_forward.1} parent=0 // pred_fallthru
    _
  // Predicated region
  $region10: #{image2text_forward.1} parent=0 // pred_check
    _
  $region11: #{image2text_forward.1} parent=0 // pred_check_branch
    %25 = sbr.rel (0) target = $region13
  $region12: #{image2text_forward.1} parent=0 // pred_region
    _
  $region13: #{image2text_forward.1} parent=0 // pred_fallthru
    _
  // Predicated region
  $region14: #{image2text_forward.1} parent=0 // pred_check
    _
  $region15: #{image2text_forward.1} parent=0 // pred_check_branch
    %27 = sbr.rel (0) target = $region17
  $region16: #{image2text_forward.1} parent=0 // pred_region
    _
  $region17: #{image2text_forward.1} parent=0 // pred_fallthru
    _
  // Predicated region
  $region18: #{image2text_forward.1} parent=0 // pred_check
    _
  $region19: #{image2text_forward.1} parent=0 // pred_check_branch
    %29 = sbr.rel (0) target = $region21
  $region20: #{image2text_forward.1} parent=0 // pred_region
    _
  $region21: #{image2text_forward.1} parent=0 // pred_fallthru
    _
  // Predicated region
  $region22: #{image2text_forward.1} parent=0 // pred_check
    _
  $region23: #{image2text_forward.1} parent=0 // pred_check_branch
    %31 = sbr.rel (0) target = $region25
  $region24: #{image2text_forward.1} parent=0 // pred_region
    _
  $region25: #{image2text_forward.1} parent=0 // pred_fallthru
    _
  // Predicated region
  $region26: #{image2text_forward.1} parent=0 // pred_check
    _
  $region27: #{image2text_forward.1} parent=0 // pred_check_branch
    %33 = sbr.rel (0) target = $region29
  $region28: #{image2text_forward.1} parent=0 // pred_region
    _
  $region29: #{image2text_forward.1} parent=0 // pred_fallthru
    _
  // Predicated region
  $region30: #{image2text_forward.1} parent=0 // pred_check
    _
  $region31: #{image2text_forward.1} parent=0 // pred_check_branch
    %35 = sbr.rel (0) target = $region33
  $region32: #{image2text_forward.1} parent=0 // pred_region
    _
  $region33: #{image2text_forward.1} parent=0 // pred_fallthru
    _
  // Predicated region
  $region34: #{image2text_forward.1} parent=0 // pred_check
    _
  $region35: #{image2text_forward.1} parent=0 // pred_check_branch
    %37 = sbr.rel (0) target = $region37
  $region36: #{image2text_forward.1} parent=0 // pred_region
    _
  $region37: #{image2text_forward.1} parent=0 // pred_fallthru
    _
  // Predicated region
  $region38: #{image2text_forward.1} parent=0 // pred_check
    _
  $region39: #{image2text_forward.1} parent=0 // pred_check_branch
    %39 = sbr.rel (0) target = $region41
  $region40: #{image2text_forward.1} parent=0 // pred_region
    _
  $region41: #{image2text_forward.1} parent=0 // pred_fallthru
    _
  // Predicated region
  $region42: #{image2text_forward.1} parent=0 // pred_check
    _
  $region43: #{image2text_forward.1} parent=0 // pred_check_branch
    %41 = sbr.rel (0) target = $region45
  $region44: #{image2text_forward.1} parent=0 // pred_region
    _
  $region45: #{image2text_forward.1} parent=0 // pred_fallthru
    _
  // Predicated region
  $region46: #{image2text_forward.1} parent=0 // pred_check
    _
  $region47: #{image2text_forward.1} parent=0 // pred_check_branch
    %43 = sbr.rel (0) target = $region49
  $region48: #{image2text_forward.1} parent=0 // pred_region
    _
  $region49: #{image2text_forward.1} parent=0 // pred_fallthru
    _
  // Predicated region
  $region50: #{image2text_forward.1} parent=0 // pred_check
    _
  $region51: #{image2text_forward.1} parent=0 // pred_check_branch
    %45 = sbr.rel (0) target = $region53
  $region52: #{image2text_forward.1} parent=0 // pred_region
    _
  $region53: #{image2text_forward.1} parent=0 // pred_fallthru
    _
  // Predicated region
  $region54: #{image2text_forward.1} parent=0 // pred_check
    _
  $region55: #{image2text_forward.1} parent=0 // pred_check_branch
    %47 = sbr.rel (0) target = $region57
  $region56: #{image2text_forward.1} parent=0 // pred_region
    _
  $region57: #{image2text_forward.1} parent=0 // pred_fallthru
    _
  // Predicated region
  $region58: #{image2text_forward.1} parent=0 // pred_check
    _
  $region59: #{image2text_forward.1} parent=0 // pred_check_branch
    %49 = sbr.rel (0) target = $region61
  $region60: #{image2text_forward.1} parent=0 // pred_region
    _
  $region61: #{image2text_forward.1} parent=0 // pred_fallthru
    _
  %v50 = vld [vmem:[%s0] sm:$0xff]
  %v51 = vld [vmem:[%s0 + $0x8] sm:$0xff]
  %v52 = vld [vmem:[%s0 + $0x10] sm:$0xff]
  %v53 = vld [vmem:[%s0 + $0x18] sm:$0xff]
  %v54 = vld [vmem:[%s0 + $0x20] sm:$0xff]
  %v55 = vld [vmem:[%s0 + $0x28] sm:$0xff]
  %v56 = vld [vmem:[%s0 + $0x30] sm:$0xff]
  %v57 = vld [vmem:[%s0 + $0x38] sm:$0xff]
  %v58 = vld [vmem:[%s0 + $0x40] sm:$0xff]
  %v59 = vld [vmem:[%s0 + $0x48] sm:$0xff]
  %v60 = vld [vmem:[%s0 + $0x50] sm:$0xff]
  %v61 = vld [vmem:[%s0 + $0x58] sm:$0xff]
  %v62 = vld [vmem:[%s0 + $0x60] sm:$0xff]
  %v63 = vld [vmem:[%s0 + $0x68] sm:$0xff]
  %v64 = vld [vmem:[%s0 + $0x70] sm:$0xff]
  %v65 = vld [vmem:[%s0 + $0x78] sm:$0xff]
  %v66 = vld [vmem:[%s4] sm:$0xf]
  %v67 = vld [vmem:[%s4 + $0x4] sm:$0x3]
  %v68 = vunpack.c.l.bf16 %v66
  %v69 = vunpack.c.l.bf16 %v67
  %v70 = vld [vmem:[%s5] sm:$0x1]
  %v72 = vperm.slane %v70, 0
  %vm74 = vcmask 97280
  %v76 = vsel %vm74, %v50, 0
  %v79 = vsel %vm74, %v51, 0
  %v82 = vsel %vm74, %v52, 0
  %v85 = vsel %vm74, %v53, 0
  %v88 = vsel %vm74, %v54, 0
  %v91 = vsel %vm74, %v55, 0
  %v94 = vsel %vm74, %v56, 0
  %v97 = vsel %vm74, %v57, 0
  %v100 = vsel %vm74, %v58, 0
  %v103 = vsel %vm74, %v59, 0
  %v106 = vsel %vm74, %v60, 0
  %v109 = vsel %vm74, %v61, 0
  %v112 = vsel %vm74, %v62, 0
  %v115 = vsel %vm74, %v63, 0
  %v118 = vsel %vm74, %v64, 0
  %v121 = vsel %vm74, %v65, 0
  %vm123 = vcmask 1043456
  %v125 = vsel %vm123, %v69, 0
  %127 = vmatpush.msra.mxu0 0.0
  %128 = vmatpush.msra.mxu0 0.0
  %129 = vmatpush.msra.mxu0 0.0
  %130 = vmatpush.msra.mxu0 0.0
  %131 = vmatpush.msra.mxu0 0.0
  %132 = vmatpush.msra.mxu0 0.0
  %133 = vmatpush.msra.mxu0 0.0
  %134 = vmatpush.msra.mxu0 0.0
  %135 = vmatpush.msra.mxu0 0.0
  %136 = vmatpush.msra.mxu0 0.0
  %137 = vmatpush.msra.mxu0 0.0
  %138 = vmatpush.msra.mxu0 0.0
  %139 = vmatpush.msra.mxu0 0.0
  %140 = vmatpush.msra.mxu0 0.0
  %141 = vmatpush.msra.mxu0 %v125
  %142 = vmatpush.msra.mxu0 %v68
  %143 = vmatmul.f32.gmra.mxu0 %v76
  %v144 = vpop.f32.mrf.mxu0
  %v145 = vadd.f32 %v72, %v144
  %146 = vmatmul.f32.gmra.mxu0 %v79
  %v147 = vpop.f32.mrf.mxu0
  %v148 = vadd.f32 %v72, %v147
  %149 = vmatmul.f32.gmra.mxu0 %v82
  %v150 = vpop.f32.mrf.mxu0
  %v151 = vadd.f32 %v72, %v150
  %152 = vmatmul.f32.gmra.mxu0 %v85
  %v153 = vpop.f32.mrf.mxu0
  %v154 = vadd.f32 %v72, %v153
  %155 = vmatmul.f32.gmra.mxu0 %v88
  %v156 = vpop.f32.mrf.mxu0
  %v157 = vadd.f32 %v72, %v156
  %158 = vmatmul.f32.gmra.mxu0 %v91
  %v159 = vpop.f32.mrf.mxu0
  %v160 = vadd.f32 %v72, %v159
  %161 = vmatmul.f32.gmra.mxu0 %v94
  %v162 = vpop.f32.mrf.mxu0
  %v163 = vadd.f32 %v72, %v162
  %164 = vmatmul.f32.gmra.mxu0 %v97
  %v165 = vpop.f32.mrf.mxu0
  %v166 = vadd.f32 %v72, %v165
  %167 = vmatmul.f32.gmra.mxu0 %v100
  %v168 = vpop.f32.mrf.mxu0
  %v169 = vadd.f32 %v72, %v168
  %170 = vmatmul.f32.gmra.mxu0 %v103
  %v171 = vpop.f32.mrf.mxu0
  %v172 = vadd.f32 %v72, %v171
  %173 = vmatmul.f32.gmra.mxu0 %v106
  %v174 = vpop.f32.mrf.mxu0
  %v175 = vadd.f32 %v72, %v174
  %176 = vmatmul.f32.gmra.mxu0 %v109
  %v177 = vpop.f32.mrf.mxu0
  %v178 = vadd.f32 %v72, %v177
  %179 = vmatmul.f32.gmra.mxu0 %v112
  %v180 = vpop.f32.mrf.mxu0
  %v181 = vadd.f32 %v72, %v180
  %182 = vmatmul.f32.gmra.mxu0 %v115
  %v183 = vpop.f32.mrf.mxu0
  %v184 = vadd.f32 %v72, %v183
  %185 = vmatmul.f32.gmra.mxu0 %v118
  %v186 = vpop.f32.mrf.mxu0
  %v187 = vadd.f32 %v72, %v186
  %188 = vmatmul.f32.gmra.mxu0 %v121
  %v189 = vpop.f32.mrf.mxu0
  %v190 = vadd.f32 %v72, %v189
  %191 = vdwg.mxu0
  %v192 = vmax.f32 %v145, 0.0
  %v193 = vmax.f32 %v148, 0.0
  %v194 = vmax.f32 %v151, 0.0
  %v195 = vmax.f32 %v154, 0.0
  %v196 = vmax.f32 %v157, 0.0
  %v197 = vmax.f32 %v160, 0.0
  %v198 = vmax.f32 %v163, 0.0
  %v199 = vmax.f32 %v166, 0.0
  %v200 = vmax.f32 %v169, 0.0
  %v201 = vmax.f32 %v172, 0.0
  %v202 = vmax.f32 %v175, 0.0
  %v203 = vmax.f32 %v178, 0.0
  %v204 = vmax.f32 %v181, 0.0
  %v205 = vmax.f32 %v184, 0.0
  %v206 = vmax.f32 %v187, 0.0
  %v207 = vmax.f32 %v190, 0.0
  %v208 = vld [vmem:[%s1] sm:$0xff]
  %v209 = vld [vmem:[%s1 + $0x8] sm:$0xff]
  %210 = vmatpush.msra.mxu0 %v207
  %211 = vmatpush.msra.mxu0 %v206
  %212 = vmatpush.msra.mxu0 %v205
  %213 = vmatpush.msra.mxu0 %v204
  %214 = vmatpush.msra.mxu0 %v203
  %215 = vmatpush.msra.mxu0 %v202
  %216 = vmatpush.msra.mxu0 %v201
  %217 = vmatpush.msra.mxu0 %v200
  %218 = vmatpush.msra.mxu0 %v199
  %219 = vmatpush.msra.mxu0 %v198
  %220 = vmatpush.msra.mxu0 %v197
  %221 = vmatpush.msra.mxu0 %v196
  %222 = vmatpush.msra.mxu0 %v195
  %223 = vmatpush.msra.mxu0 %v194
  %224 = vmatpush.msra.mxu0 %v193
  %225 = vmatpush.msra.mxu0 %v192
  %226 = vmatmul.f32.gmra.mxu0 %v208
  %v227 = vpop.f32.mrf.mxu0
  %v228 = vadd.f32 0.0, %v227
  %229 = vmatmul.f32.gmra.mxu0 %v209
  %v230 = vpop.f32.mrf.mxu0
  %v231 = vadd.f32 0.0, %v230
  %232 = vdwg.mxu0
  %vm233 = vcmp.ge.f32.partialorder %v228, 0.0
  %vm234 = vcmp.ge.f32.partialorder %v231, 0.0
  %v235 = vmul.f32 %v228, 0.1
  %v236 = vmul.f32 %v231, 0.1
  %v237 = vsel %vm233, %v228, %v235
  %v238 = vsel %vm234, %v231, %v236
  %v239 = vld [vmem:[%s6] sm:$0xf]
  %v240 = vld [vmem:[%s6 + $0x4] sm:$0xf]
  %v241 = vld [vmem:[%s6 + $0x8] sm:$0xf]
  %v242 = vld [vmem:[%s6 + $0xc] sm:$0xf]
  %v243 = vld [vmem:[%s6 + $0x10] sm:$0xf]
  %v244 = vld [vmem:[%s6 + $0x14] sm:$0xf]
  %v245 = vld [vmem:[%s6 + $0x18] sm:$0xf]
  %v246 = vld [vmem:[%s6 + $0x1c] sm:$0xf]
  %v247 = vld [vmem:[%s6 + $0x20] sm:$0xf]
  %v248 = vld [vmem:[%s6 + $0x24] sm:$0xf]
  %v249 = vld [vmem:[%s6 + $0x28] sm:$0xf]
  %v250 = vld [vmem:[%s6 + $0x2c] sm:$0xf]
  %v251 = vld [vmem:[%s6 + $0x30] sm:$0xf]
  %v252 = vld [vmem:[%s6 + $0x34] sm:$0xf]
  %v253 = vld [vmem:[%s6 + $0x38] sm:$0xf]
  %v254 = vld [vmem:[%s6 + $0x3c] sm:$0xf]
  %v255 = vunpack.c.l.bf16 %v239
  %v256 = vunpack.c.l.bf16 %v240
  %v257 = vunpack.c.l.bf16 %v241
  %v258 = vunpack.c.l.bf16 %v242
  %v259 = vunpack.c.l.bf16 %v243
  %v260 = vunpack.c.l.bf16 %v244
  %v261 = vunpack.c.l.bf16 %v245
  %v262 = vunpack.c.l.bf16 %v246
  %v263 = vunpack.c.l.bf16 %v247
  %v264 = vunpack.c.l.bf16 %v248
  %v265 = vunpack.c.l.bf16 %v249
  %v266 = vunpack.c.l.bf16 %v250
  %v267 = vunpack.c.l.bf16 %v251
  %v268 = vunpack.c.l.bf16 %v252
  %v269 = vunpack.c.l.bf16 %v253
  %v270 = vunpack.c.l.bf16 %v254
  %v271 = vld [vmem:[%s7] sm:$0x1]
  %v273 = vperm.slane %v271, 0
  %275 = vmatpush.msra.mxu0 %v270
  %276 = vmatpush.msra.mxu0 %v269
  %277 = vmatpush.msra.mxu0 %v268
  %278 = vmatpush.msra.mxu0 %v267
  %279 = vmatpush.msra.mxu0 %v266
  %280 = vmatpush.msra.mxu0 %v265
  %281 = vmatpush.msra.mxu0 %v264
  %282 = vmatpush.msra.mxu0 %v263
  %283 = vmatpush.msra.mxu0 %v262
  %284 = vmatpush.msra.mxu0 %v261
  %285 = vmatpush.msra.mxu0 %v260
  %286 = vmatpush.msra.mxu0 %v259
  %287 = vmatpush.msra.mxu0 %v258
  %288 = vmatpush.msra.mxu0 %v257
  %289 = vmatpush.msra.mxu0 %v256
  %290 = vmatpush.msra.mxu0 %v255
  %291 = vmatmul.f32.gmra.mxu0 %v237
  %v292 = vpop.f32.mrf.mxu0
  %v293 = vadd.f32 %v273, %v292
  %294 = vmatmul.f32.gmra.mxu0 %v238
  %v295 = vpop.f32.mrf.mxu0
  %v296 = vadd.f32 %v273, %v295
  %297 = vdwg.mxu0
  %v298 = vld [vmem:[%s8] sm:$0xff]
  %v299 = vld [vmem:[%s8 + $0x8] sm:$0xff]
  %v300 = vld [vmem:[%s8 + $0x10] sm:$0xff]
  %v301 = vld [vmem:[%s8 + $0x18] sm:$0xff]
  %v302 = vld [vmem:[%s8 + $0x20] sm:$0xff]
  %v303 = vld [vmem:[%s8 + $0x28] sm:$0xff]
  %v304 = vld [vmem:[%s8 + $0x30] sm:$0xff]
  %v305 = vld [vmem:[%s8 + $0x38] sm:$0xff]
  %v306 = vld [vmem:[%s8 + $0x40] sm:$0xff]
  %v307 = vld [vmem:[%s8 + $0x48] sm:$0xff]
  %v308 = vld [vmem:[%s8 + $0x50] sm:$0xff]
  %v309 = vld [vmem:[%s8 + $0x58] sm:$0xff]
  %v310 = vld [vmem:[%s8 + $0x60] sm:$0xff]
  %v311 = vld [vmem:[%s8 + $0x68] sm:$0xff]
  %v312 = vld [vmem:[%s8 + $0x70] sm:$0xff]
  %v313 = vld [vmem:[%s8 + $0x78] sm:$0xff]
  %v314 = vunpack.c.l.bf16 %v298
  %v315 = vunpack.c.h.bf16 %v298
  %v316 = vunpack.c.l.bf16 %v299
  %v317 = vunpack.c.h.bf16 %v299
  %v318 = vunpack.c.l.bf16 %v300
  %v319 = vunpack.c.h.bf16 %v300
  %v320 = vunpack.c.l.bf16 %v301
  %v321 = vunpack.c.h.bf16 %v301
  %v322 = vunpack.c.l.bf16 %v302
  %v323 = vunpack.c.h.bf16 %v302
  %v324 = vunpack.c.l.bf16 %v303
  %v325 = vunpack.c.h.bf16 %v303
  %v326 = vunpack.c.l.bf16 %v304
  %v327 = vunpack.c.h.bf16 %v304
  %v328 = vunpack.c.l.bf16 %v305
  %v329 = vunpack.c.h.bf16 %v305
  %v330 = vunpack.c.l.bf16 %v306
  %v331 = vunpack.c.h.bf16 %v306
  %v332 = vunpack.c.l.bf16 %v307
  %v333 = vunpack.c.h.bf16 %v307
  %v334 = vunpack.c.l.bf16 %v308
  %v335 = vunpack.c.h.bf16 %v308
  %v336 = vunpack.c.l.bf16 %v309
  %v337 = vunpack.c.h.bf16 %v309
  %v338 = vunpack.c.l.bf16 %v310
  %v339 = vunpack.c.h.bf16 %v310
  %v340 = vunpack.c.l.bf16 %v311
  %v341 = vunpack.c.h.bf16 %v311
  %v342 = vunpack.c.l.bf16 %v312
  %v343 = vunpack.c.h.bf16 %v312
  %v344 = vunpack.c.l.bf16 %v313
  %v345 = vunpack.c.h.bf16 %v313
  %346 = vmatpush.msra.mxu0 %v344
  %347 = vmatpush.msra.mxu0 %v342
  %348 = vmatpush.msra.mxu0 %v340
  %349 = vmatpush.msra.mxu0 %v338
  %350 = vmatpush.msra.mxu0 %v336
  %351 = vmatpush.msra.mxu0 %v334
  %352 = vmatpush.msra.mxu0 %v332
  %353 = vmatpush.msra.mxu0 %v330
  %354 = vmatpush.msra.mxu0 %v328
  %355 = vmatpush.msra.mxu0 %v326
  %356 = vmatpush.msra.mxu0 %v324
  %357 = vmatpush.msra.mxu0 %v322
  %358 = vmatpush.msra.mxu0 %v320
  %359 = vmatpush.msra.mxu0 %v318
  %360 = vmatpush.msra.mxu0 %v316
  %361 = vmatpush.msra.mxu0 %v314
  %362 = vmatmul.f32.gmra.mxu0 %v293
  %v363 = vpop.f32.mrf.mxu0
  %v364 = vadd.f32 0.0, %v363
  %365 = vmatmul.f32.gmra.mxu0 %v296
  %v366 = vpop.f32.mrf.mxu0
  %v367 = vadd.f32 0.0, %v366
  %368 = vdwg.mxu0
  %369 = vmatpush.msra.mxu0 %v345
  %370 = vmatpush.msra.mxu0 %v343
  %371 = vmatpush.msra.mxu0 %v341
  %372 = vmatpush.msra.mxu0 %v339
  %373 = vmatpush.msra.mxu0 %v337
  %374 = vmatpush.msra.mxu0 %v335
  %375 = vmatpush.msra.mxu0 %v333
  %376 = vmatpush.msra.mxu0 %v331
  %377 = vmatpush.msra.mxu0 %v329
  %378 = vmatpush.msra.mxu0 %v327
  %379 = vmatpush.msra.mxu0 %v325
  %380 = vmatpush.msra.mxu0 %v323
  %381 = vmatpush.msra.mxu0 %v321
  %382 = vmatpush.msra.mxu0 %v319
  %383 = vmatpush.msra.mxu0 %v317
  %384 = vmatpush.msra.mxu0 %v315
  %385 = vmatmul.f32.gmra.mxu0 %v293
  %v386 = vpop.f32.mrf.mxu0
  %v387 = vadd.f32 0.0, %v386
  %388 = vmatmul.f32.gmra.mxu0 %v296
  %v389 = vpop.f32.mrf.mxu0
  %v390 = vadd.f32 0.0, %v389
  %391 = vdwg.mxu0
  %v392 = vld [vmem:[%s2] sm:$0x3]
  %vm393 = vcmask 130048
  %v395 = vsel %vm393, %v392, 0
  %397 = vmatpush.msra.mxu0 0.0
  %398 = vmatpush.msra.mxu0 0.0
  %399 = vmatpush.msra.mxu0 0.0
  %400 = vmatpush.msra.mxu0 0.0
  %401 = vmatpush.msra.mxu0 0.0
  %402 = vmatpush.msra.mxu0 0.0
  %403 = vmatpush.msra.mxu0 0.0
  %404 = vmatpush.msra.mxu0 0.0
  %405 = vmatpush.msra.mxu0 0.0
  %406 = vmatpush.msra.mxu0 0.0
  %407 = vmatpush.msra.mxu0 0.0
  %408 = vmatpush.msra.mxu0 0.0
  %409 = vmatpush.msra.mxu0 0.0
  %410 = vmatpush.msra.mxu0 0.0
  %411 = vmatpush.msra.mxu0 %v296
  %412 = vmatpush.msra.mxu0 %v293
  %413 = vmatmul.f32.gmra.mxu0 %v395
  %v414 = vpop.f32.mrf.mxu0
  %v415 = vadd.f32 0.0, %v414
  %416 = vdwg.mxu0
  %v417 = vld [vmem:[%s9] sm:$0xff]
  %v418 = vld [vmem:[%s9 + $0x8] sm:$0xff]
  %v419 = vld [vmem:[%s9 + $0x10] sm:$0xff]
  %v420 = vld [vmem:[%s9 + $0x18] sm:$0xff]
  %v421 = vld [vmem:[%s9 + $0x20] sm:$0xff]
  %v422 = vld [vmem:[%s9 + $0x28] sm:$0xff]
  %v423 = vld [vmem:[%s9 + $0x30] sm:$0xff]
  %v424 = vld [vmem:[%s9 + $0x38] sm:$0xff]
  %v425 = vld [vmem:[%s9 + $0x40] sm:$0xff]
  %v426 = vld [vmem:[%s9 + $0x48] sm:$0xff]
  %v427 = vld [vmem:[%s9 + $0x50] sm:$0xff]
  %v428 = vld [vmem:[%s9 + $0x58] sm:$0xff]
  %v429 = vld [vmem:[%s9 + $0x60] sm:$0xff]
  %v430 = vld [vmem:[%s9 + $0x68] sm:$0xff]
  %v431 = vld [vmem:[%s9 + $0x70] sm:$0xff]
  %v432 = vld [vmem:[%s9 + $0x78] sm:$0xff]
  %v433 = vunpack.c.l.bf16 %v417
  %v434 = vunpack.c.h.bf16 %v417
  %v435 = vunpack.c.l.bf16 %v418
  %v436 = vunpack.c.h.bf16 %v418
  %v437 = vunpack.c.l.bf16 %v419
  %v438 = vunpack.c.h.bf16 %v419
  %v439 = vunpack.c.l.bf16 %v420
  %v440 = vunpack.c.h.bf16 %v420
  %v441 = vunpack.c.l.bf16 %v421
  %v442 = vunpack.c.h.bf16 %v421
  %v443 = vunpack.c.l.bf16 %v422
  %v444 = vunpack.c.h.bf16 %v422
  %v445 = vunpack.c.l.bf16 %v423
  %v446 = vunpack.c.h.bf16 %v423
  %v447 = vunpack.c.l.bf16 %v424
  %v448 = vunpack.c.h.bf16 %v424
  %v449 = vunpack.c.l.bf16 %v425
  %v450 = vunpack.c.h.bf16 %v425
  %v451 = vunpack.c.l.bf16 %v426
  %v452 = vunpack.c.h.bf16 %v426
  %v453 = vunpack.c.l.bf16 %v427
  %v454 = vunpack.c.h.bf16 %v427
  %v455 = vunpack.c.l.bf16 %v428
  %v456 = vunpack.c.h.bf16 %v428
  %v457 = vunpack.c.l.bf16 %v429
  %v458 = vunpack.c.h.bf16 %v429
  %v459 = vunpack.c.l.bf16 %v430
  %v460 = vunpack.c.h.bf16 %v430
  %v461 = vunpack.c.l.bf16 %v431
  %v462 = vunpack.c.h.bf16 %v431
  %v463 = vunpack.c.l.bf16 %v432
  %v464 = vunpack.c.h.bf16 %v432
  %v465 = vld [vmem:[%s10] sm:$0x3]
  %v467 = vperm.slane %v465, 0
  %v468 = vperm.slane %v465, 1
  %471 = vmatpush.msra.mxu0 %v463
  %472 = vmatpush.msra.mxu0 %v461
  %473 = vmatpush.msra.mxu0 %v459
  %474 = vmatpush.msra.mxu0 %v457
  %475 = vmatpush.msra.mxu0 %v455
  %476 = vmatpush.msra.mxu0 %v453
  %477 = vmatpush.msra.mxu0 %v451
  %478 = vmatpush.msra.mxu0 %v449
  %479 = vmatpush.msra.mxu0 %v447
  %480 = vmatpush.msra.mxu0 %v445
  %481 = vmatpush.msra.mxu0 %v443
  %482 = vmatpush.msra.mxu0 %v441
  %483 = vmatpush.msra.mxu0 %v439
  %484 = vmatpush.msra.mxu0 %v437
  %485 = vmatpush.msra.mxu0 %v435
  %486 = vmatpush.msra.mxu0 %v433
  %487 = vmatmul.f32.gmra.mxu0 %v415
  %v488 = vpop.f32.mrf.mxu0
  %v489 = vadd.f32 %v467, %v488
  %490 = vdwg.mxu0
  %491 = vmatpush.msra.mxu0 %v464
  %492 = vmatpush.msra.mxu0 %v462
  %493 = vmatpush.msra.mxu0 %v460
  %494 = vmatpush.msra.mxu0 %v458
  %495 = vmatpush.msra.mxu0 %v456
  %496 = vmatpush.msra.mxu0 %v454
  %497 = vmatpush.msra.mxu0 %v452
  %498 = vmatpush.msra.mxu0 %v450
  %499 = vmatpush.msra.mxu0 %v448
  %500 = vmatpush.msra.mxu0 %v446
  %501 = vmatpush.msra.mxu0 %v444
  %502 = vmatpush.msra.mxu0 %v442
  %503 = vmatpush.msra.mxu0 %v440
  %504 = vmatpush.msra.mxu0 %v438
  %505 = vmatpush.msra.mxu0 %v436
  %506 = vmatpush.msra.mxu0 %v434
  %507 = vmatmul.f32.gmra.mxu0 %v415
  %v508 = vpop.f32.mrf.mxu0
  %v509 = vadd.f32 %v468, %v508
  %510 = vdwg.mxu0
  %v511 = vld [vmem:[%s11] sm:$0xff]
  %v512 = vld [vmem:[%s11 + $0x8] sm:$0xff]
  %v513 = vld [vmem:[%s11 + $0x10] sm:$0xff]
  %v514 = vld [vmem:[%s11 + $0x18] sm:$0xf]
  %v515 = vld [vmem:[%s11 + $0x1c] sm:$0xff]
  %v516 = vld [vmem:[%s11 + $0x24] sm:$0xff]
  %v517 = vld [vmem:[%s11 + $0x2c] sm:$0xff]
  %v518 = vld [vmem:[%s11 + $0x34] sm:$0xf]
  %v519 = vld [vmem:[%s11 + $0x38] sm:$0xff]
  %v520 = vld [vmem:[%s11 + $0x40] sm:$0xff]
  %v521 = vld [vmem:[%s11 + $0x48] sm:$0xff]
  %v522 = vld [vmem:[%s11 + $0x50] sm:$0xf]
  %v523 = vld [vmem:[%s11 + $0x54] sm:$0xff]
  %v524 = vld [vmem:[%s11 + $0x5c] sm:$0xff]
  %v525 = vld [vmem:[%s11 + $0x64] sm:$0xff]
  %v526 = vld [vmem:[%s11 + $0x6c] sm:$0xf]
  %v527 = vld [vmem:[%s11 + $0x70] sm:$0xff]
  %v528 = vld [vmem:[%s11 + $0x78] sm:$0xff]
  %v529 = vld [vmem:[%s11 + $0x80] sm:$0xff]
  %v530 = vld [vmem:[%s11 + $0x88] sm:$0xf]
  %v531 = vld [vmem:[%s11 + $0x8c] sm:$0xff]
  %v532 = vld [vmem:[%s11 + $0x94] sm:$0xff]
  %v533 = vld [vmem:[%s11 + $0x9c] sm:$0xff]
  %v534 = vld [vmem:[%s11 + $0xa4] sm:$0xf]
  %v535 = vld [vmem:[%s11 + $0xa8] sm:$0xff]
  %v536 = vld [vmem:[%s11 + $0xb0] sm:$0xff]
  %v537 = vld [vmem:[%s11 + $0xb8] sm:$0xff]
  %v538 = vld [vmem:[%s11 + $0xc0] sm:$0xf]
  %v539 = vld [vmem:[%s11 + $0xc4] sm:$0xff]
  %v540 = vld [vmem:[%s11 + $0xcc] sm:$0xff]
  %v541 = vld [vmem:[%s11 + $0xd4] sm:$0xff]
  %v542 = vld [vmem:[%s11 + $0xdc] sm:$0xf]
  %v543 = vld [vmem:[%s11 + $0xe0] sm:$0xff]
  %v544 = vld [vmem:[%s11 + $0xe8] sm:$0xff]
  %v545 = vld [vmem:[%s11 + $0xf0] sm:$0xff]
  %v546 = vld [vmem:[%s11 + $0xf8] sm:$0xf]
  %v547 = vld [vmem:[%s11 + $0xfc] sm:$0xff]
  %v548 = vld [vmem:[%s11 + $0x104] sm:$0xff]
  %v549 = vld [vmem:[%s11 + $0x10c] sm:$0xff]
  %v550 = vld [vmem:[%s11 + $0x114] sm:$0xf]
  %v551 = vld [vmem:[%s11 + $0x118] sm:$0xff]
  %v552 = vld [vmem:[%s11 + $0x120] sm:$0xff]
  %v553 = vld [vmem:[%s11 + $0x128] sm:$0xff]
  %v554 = vld [vmem:[%s11 + $0x130] sm:$0xf]
  %v555 = vld [vmem:[%s11 + $0x134] sm:$0xff]
  %v556 = vld [vmem:[%s11 + $0x13c] sm:$0xff]
  %v557 = vld [vmem:[%s11 + $0x144] sm:$0xff]
  %v558 = vld [vmem:[%s11 + $0x14c] sm:$0xf]
  %v559 = vld [vmem:[%s11 + $0x150] sm:$0xff]
  %v560 = vld [vmem:[%s11 + $0x158] sm:$0xff]
  %v561 = vld [vmem:[%s11 + $0x160] sm:$0xff]
  %v562 = vld [vmem:[%s11 + $0x168] sm:$0xf]
  %v563 = vld [vmem:[%s11 + $0x16c] sm:$0xff]
  %v564 = vld [vmem:[%s11 + $0x174] sm:$0xff]
  %v565 = vld [vmem:[%s11 + $0x17c] sm:$0xff]
  %v566 = vld [vmem:[%s11 + $0x184] sm:$0xf]
  %v567 = vld [vmem:[%s11 + $0x188] sm:$0xff]
  %v568 = vld [vmem:[%s11 + $0x190] sm:$0xff]
  %v569 = vld [vmem:[%s11 + $0x198] sm:$0xff]
  %v570 = vld [vmem:[%s11 + $0x1a0] sm:$0xf]
  %v571 = vld [vmem:[%s11 + $0x1a4] sm:$0xff]
  %v572 = vld [vmem:[%s11 + $0x1ac] sm:$0xff]
  %v573 = vld [vmem:[%s11 + $0x1b4] sm:$0xff]
  %v574 = vld [vmem:[%s11 + $0x1bc] sm:$0xf]
  %v575 = vunpack.c.l.bf16 %v511
  %v576 = vunpack.c.h.bf16 %v511
  %v577 = vunpack.c.l.bf16 %v512
  %v578 = vunpack.c.h.bf16 %v512
  %v579 = vunpack.c.l.bf16 %v513
  %v580 = vunpack.c.h.bf16 %v513
  %v581 = vunpack.c.l.bf16 %v514
  %v582 = vunpack.c.l.bf16 %v515
  %v583 = vunpack.c.h.bf16 %v515
  %v584 = vunpack.c.l.bf16 %v516
  %v585 = vunpack.c.h.bf16 %v516
  %v586 = vunpack.c.l.bf16 %v517
  %v587 = vunpack.c.h.bf16 %v517
  %v588 = vunpack.c.l.bf16 %v518
  %v589 = vunpack.c.l.bf16 %v519
  %v590 = vunpack.c.h.bf16 %v519
  %v591 = vunpack.c.l.bf16 %v520
  %v592 = vunpack.c.h.bf16 %v520
  %v593 = vunpack.c.l.bf16 %v521
  %v594 = vunpack.c.h.bf16 %v521
  %v595 = vunpack.c.l.bf16 %v522
  %v596 = vunpack.c.l.bf16 %v523
  %v597 = vunpack.c.h.bf16 %v523
  %v598 = vunpack.c.l.bf16 %v524
  %v599 = vunpack.c.h.bf16 %v524
  %v600 = vunpack.c.l.bf16 %v525
  %v601 = vunpack.c.h.bf16 %v525
  %v602 = vunpack.c.l.bf16 %v526
  %v603 = vunpack.c.l.bf16 %v527
  %v604 = vunpack.c.h.bf16 %v527
  %v605 = vunpack.c.l.bf16 %v528
  %v606 = vunpack.c.h.bf16 %v528
  %v607 = vunpack.c.l.bf16 %v529
  %v608 = vunpack.c.h.bf16 %v529
  %v609 = vunpack.c.l.bf16 %v530
  %v610 = vunpack.c.l.bf16 %v531
  %v611 = vunpack.c.h.bf16 %v531
  %v612 = vunpack.c.l.bf16 %v532
  %v613 = vunpack.c.h.bf16 %v532
  %v614 = vunpack.c.l.bf16 %v533
  %v615 = vunpack.c.h.bf16 %v533
  %v616 = vunpack.c.l.bf16 %v534
  %v617 = vunpack.c.l.bf16 %v535
  %v618 = vunpack.c.h.bf16 %v535
  %v619 = vunpack.c.l.bf16 %v536
  %v620 = vunpack.c.h.bf16 %v536
  %v621 = vunpack.c.l.bf16 %v537
  %v622 = vunpack.c.h.bf16 %v537
  %v623 = vunpack.c.l.bf16 %v538
  %v624 = vunpack.c.l.bf16 %v539
  %v625 = vunpack.c.h.bf16 %v539
  %v626 = vunpack.c.l.bf16 %v540
  %v627 = vunpack.c.h.bf16 %v540
  %v628 = vunpack.c.l.bf16 %v541
  %v629 = vunpack.c.h.bf16 %v541
  %v630 = vunpack.c.l.bf16 %v542
  %v631 = vunpack.c.l.bf16 %v543
  %v632 = vunpack.c.h.bf16 %v543
  %v633 = vunpack.c.l.bf16 %v544
  %v634 = vunpack.c.h.bf16 %v544
  %v635 = vunpack.c.l.bf16 %v545
  %v636 = vunpack.c.h.bf16 %v545
  %v637 = vunpack.c.l.bf16 %v546
  %v638 = vunpack.c.l.bf16 %v547
  %v639 = vunpack.c.h.bf16 %v547
  %v640 = vunpack.c.l.bf16 %v548
  %v641 = vunpack.c.h.bf16 %v548
  %v642 = vunpack.c.l.bf16 %v549
  %v643 = vunpack.c.h.bf16 %v549
  %v644 = vunpack.c.l.bf16 %v550
  %v645 = vunpack.c.l.bf16 %v551
  %v646 = vunpack.c.h.bf16 %v551
  %v647 = vunpack.c.l.bf16 %v552
  %v648 = vunpack.c.h.bf16 %v552
  %v649 = vunpack.c.l.bf16 %v553
  %v650 = vunpack.c.h.bf16 %v553
  %v651 = vunpack.c.l.bf16 %v554
  %v652 = vunpack.c.l.bf16 %v555
  %v653 = vunpack.c.h.bf16 %v555
  %v654 = vunpack.c.l.bf16 %v556
  %v655 = vunpack.c.h.bf16 %v556
  %v656 = vunpack.c.l.bf16 %v557
  %v657 = vunpack.c.h.bf16 %v557
  %v658 = vunpack.c.l.bf16 %v558
  %v659 = vunpack.c.l.bf16 %v559
  %v660 = vunpack.c.h.bf16 %v559
  %v661 = vunpack.c.l.bf16 %v560
  %v662 = vunpack.c.h.bf16 %v560
  %v663 = vunpack.c.l.bf16 %v561
  %v664 = vunpack.c.h.bf16 %v561
  %v665 = vunpack.c.l.bf16 %v562
  %v666 = vunpack.c.l.bf16 %v563
  %v667 = vunpack.c.h.bf16 %v563
  %v668 = vunpack.c.l.bf16 %v564
  %v669 = vunpack.c.h.bf16 %v564
  %v670 = vunpack.c.l.bf16 %v565
  %v671 = vunpack.c.h.bf16 %v565
  %v672 = vunpack.c.l.bf16 %v566
  %v673 = vunpack.c.l.bf16 %v567
  %v674 = vunpack.c.h.bf16 %v567
  %v675 = vunpack.c.l.bf16 %v568
  %v676 = vunpack.c.h.bf16 %v568
  %v677 = vunpack.c.l.bf16 %v569
  %v678 = vunpack.c.h.bf16 %v569
  %v679 = vunpack.c.l.bf16 %v570
  %v680 = vunpack.c.l.bf16 %v571
  %v681 = vunpack.c.h.bf16 %v571
  %v682 = vunpack.c.l.bf16 %v572
  %v683 = vunpack.c.h.bf16 %v572
  %v684 = vunpack.c.l.bf16 %v573
  %v685 = vunpack.c.h.bf16 %v573
  %v686 = vunpack.c.l.bf16 %v574
  %v687 = vld [vmem:[%s12] sm:$0xff]
  %v688 = vld [vmem:[%s12 + $0x8] sm:$0xff]
  %v689 = vld [vmem:[%s12 + $0x10] sm:$0xff]
  %v690 = vld [vmem:[%s12 + $0x18] sm:$0xff]
  %v691 = vld [vmem:[%s12 + $0x20] sm:$0xff]
  %v692 = vld [vmem:[%s12 + $0x28] sm:$0xff]
  %v693 = vld [vmem:[%s12 + $0x30] sm:$0xff]
  %v694 = vld [vmem:[%s12 + $0x38] sm:$0xff]
  %v695 = vld [vmem:[%s12 + $0x40] sm:$0xff]
  %v696 = vld [vmem:[%s12 + $0x48] sm:$0xff]
  %v697 = vld [vmem:[%s12 + $0x50] sm:$0xff]
  %v698 = vld [vmem:[%s12 + $0x58] sm:$0xff]
  %v699 = vld [vmem:[%s12 + $0x60] sm:$0xff]
  %v700 = vld [vmem:[%s12 + $0x68] sm:$0xff]
  %v701 = vld [vmem:[%s12 + $0x70] sm:$0xff]
  %v702 = vld [vmem:[%s12 + $0x78] sm:$0xff]
  %v703 = vld [vmem:[%s12 + $0x80] sm:$0xff]
  %v704 = vld [vmem:[%s12 + $0x88] sm:$0xff]
  %v705 = vld [vmem:[%s12 + $0x90] sm:$0xff]
  %v706 = vld [vmem:[%s12 + $0x98] sm:$0xff]
  %v707 = vld [vmem:[%s12 + $0xa0] sm:$0xff]
  %v708 = vld [vmem:[%s12 + $0xa8] sm:$0xff]
  %v709 = vld [vmem:[%s12 + $0xb0] sm:$0xff]
  %v710 = vld [vmem:[%s12 + $0xb8] sm:$0xff]
  %v711 = vld [vmem:[%s12 + $0xc0] sm:$0xff]
  %v712 = vld [vmem:[%s12 + $0xc8] sm:$0xff]
  %v713 = vld [vmem:[%s12 + $0xd0] sm:$0xff]
  %v714 = vld [vmem:[%s12 + $0xd8] sm:$0xff]
  %v715 = vld [vmem:[%s12 + $0xe0] sm:$0xff]
  %v716 = vld [vmem:[%s12 + $0xe8] sm:$0xff]
  %v717 = vld [vmem:[%s12 + $0xf0] sm:$0xff]
  %v718 = vld [vmem:[%s12 + $0xf8] sm:$0xff]
  %v719 = vld [vmem:[%s12 + $0x100] sm:$0xff]
  %v720 = vld [vmem:[%s12 + $0x108] sm:$0xff]
  %v721 = vld [vmem:[%s12 + $0x110] sm:$0xff]
  %v722 = vld [vmem:[%s12 + $0x118] sm:$0xff]
  %v723 = vld [vmem:[%s12 + $0x120] sm:$0xff]
  %v724 = vld [vmem:[%s12 + $0x128] sm:$0xff]
  %v725 = vld [vmem:[%s12 + $0x130] sm:$0xff]
  %v726 = vld [vmem:[%s12 + $0x138] sm:$0xff]
  %v727 = vld [vmem:[%s12 + $0x140] sm:$0xff]
  %v728 = vld [vmem:[%s12 + $0x148] sm:$0xff]
  %v729 = vld [vmem:[%s12 + $0x150] sm:$0xff]
  %v730 = vld [vmem:[%s12 + $0x158] sm:$0xff]
  %v731 = vld [vmem:[%s12 + $0x160] sm:$0xff]
  %v732 = vld [vmem:[%s12 + $0x168] sm:$0xff]
  %v733 = vld [vmem:[%s12 + $0x170] sm:$0xff]
  %v734 = vld [vmem:[%s12 + $0x178] sm:$0xff]
  %v735 = vld [vmem:[%s12 + $0x180] sm:$0xff]
  %v736 = vld [vmem:[%s12 + $0x188] sm:$0xff]
  %v737 = vld [vmem:[%s12 + $0x190] sm:$0xff]
  %v738 = vld [vmem:[%s12 + $0x198] sm:$0xff]
  %v739 = vld [vmem:[%s12 + $0x1a0] sm:$0xff]
  %v740 = vld [vmem:[%s12 + $0x1a8] sm:$0xff]
  %v741 = vld [vmem:[%s12 + $0x1b0] sm:$0xff]
  %v742 = vld [vmem:[%s12 + $0x1b8] sm:$0xff]
  %v743 = vld [vmem:[%s12 + $0x1c0] sm:$0xff]
  %v744 = vld [vmem:[%s12 + $0x1c8] sm:$0xff]
  %v745 = vld [vmem:[%s12 + $0x1d0] sm:$0xff]
  %v746 = vld [vmem:[%s12 + $0x1d8] sm:$0xff]
  %v747 = vld [vmem:[%s12 + $0x1e0] sm:$0xff]
  %v748 = vld [vmem:[%s12 + $0x1e8] sm:$0xff]
  %v749 = vld [vmem:[%s12 + $0x1f0] sm:$0xff]
  %v750 = vld [vmem:[%s12 + $0x1f8] sm:$0xff]
  %v751 = vld [vmem:[%s12 + $0x200] sm:$0xff]
  %v752 = vld [vmem:[%s12 + $0x208] sm:$0xff]
  %v753 = vld [vmem:[%s12 + $0x210] sm:$0xff]
  %v754 = vld [vmem:[%s12 + $0x218] sm:$0xff]
  %v755 = vld [vmem:[%s12 + $0x220] sm:$0xff]
  %v756 = vld [vmem:[%s12 + $0x228] sm:$0xff]
  %v757 = vld [vmem:[%s12 + $0x230] sm:$0xff]
  %v758 = vld [vmem:[%s12 + $0x238] sm:$0xff]
  %v759 = vld [vmem:[%s12 + $0x240] sm:$0xff]
  %v760 = vld [vmem:[%s12 + $0x248] sm:$0xff]
  %v761 = vld [vmem:[%s12 + $0x250] sm:$0xff]
  %v762 = vld [vmem:[%s12 + $0x258] sm:$0xff]
  %v763 = vld [vmem:[%s12 + $0x260] sm:$0xff]
  %v764 = vld [vmem:[%s12 + $0x268] sm:$0xff]
  %v765 = vld [vmem:[%s12 + $0x270] sm:$0xff]
  %v766 = vld [vmem:[%s12 + $0x278] sm:$0xff]
  %v767 = vld [vmem:[%s12 + $0x280] sm:$0xff]
  %v768 = vld [vmem:[%s12 + $0x288] sm:$0xff]
  %v769 = vld [vmem:[%s12 + $0x290] sm:$0xff]
  %v770 = vld [vmem:[%s12 + $0x298] sm:$0xff]
  %v771 = vld [vmem:[%s12 + $0x2a0] sm:$0xff]
  %v772 = vld [vmem:[%s12 + $0x2a8] sm:$0xff]
  %v773 = vld [vmem:[%s12 + $0x2b0] sm:$0xff]
  %v774 = vld [vmem:[%s12 + $0x2b8] sm:$0xff]
  %v775 = vld [vmem:[%s12 + $0x2c0] sm:$0xff]
  %v776 = vld [vmem:[%s12 + $0x2c8] sm:$0xff]
  %v777 = vld [vmem:[%s12 + $0x2d0] sm:$0xff]
  %v778 = vld [vmem:[%s12 + $0x2d8] sm:$0xff]
  %v779 = vld [vmem:[%s12 + $0x2e0] sm:$0xff]
  %v780 = vld [vmem:[%s12 + $0x2e8] sm:$0xff]
  %v781 = vld [vmem:[%s12 + $0x2f0] sm:$0xff]
  %v782 = vld [vmem:[%s12 + $0x2f8] sm:$0xff]
  %v783 = vunpack.c.l.bf16 %v687
  %v784 = vunpack.c.h.bf16 %v687
  %v785 = vunpack.c.l.bf16 %v688
  %v786 = vunpack.c.h.bf16 %v688
  %v787 = vunpack.c.l.bf16 %v689
  %v788 = vunpack.c.h.bf16 %v689
  %v789 = vunpack.c.l.bf16 %v690
  %v790 = vunpack.c.h.bf16 %v690
  %v791 = vunpack.c.l.bf16 %v691
  %v792 = vunpack.c.h.bf16 %v691
  %v793 = vunpack.c.l.bf16 %v692
  %v794 = vunpack.c.h.bf16 %v692
  %v795 = vunpack.c.l.bf16 %v693
  %v796 = vunpack.c.h.bf16 %v693
  %v797 = vunpack.c.l.bf16 %v694
  %v798 = vunpack.c.h.bf16 %v694
  %v799 = vunpack.c.l.bf16 %v695
  %v800 = vunpack.c.h.bf16 %v695
  %v801 = vunpack.c.l.bf16 %v696
  %v802 = vunpack.c.h.bf16 %v696
  %v803 = vunpack.c.l.bf16 %v697
  %v804 = vunpack.c.h.bf16 %v697
  %v805 = vunpack.c.l.bf16 %v698
  %v806 = vunpack.c.h.bf16 %v698
  %v807 = vunpack.c.l.bf16 %v699
  %v808 = vunpack.c.h.bf16 %v699
  %v809 = vunpack.c.l.bf16 %v700
  %v810 = vunpack.c.h.bf16 %v700
  %v811 = vunpack.c.l.bf16 %v701
  %v812 = vunpack.c.h.bf16 %v701
  %v813 = vunpack.c.l.bf16 %v702
  %v814 = vunpack.c.h.bf16 %v702
  %v815 = vunpack.c.l.bf16 %v703
  %v816 = vunpack.c.h.bf16 %v703
  %v817 = vunpack.c.l.bf16 %v704
  %v818 = vunpack.c.h.bf16 %v704
  %v819 = vunpack.c.l.bf16 %v705
  %v820 = vunpack.c.h.bf16 %v705
  %v821 = vunpack.c.l.bf16 %v706
  %v822 = vunpack.c.h.bf16 %v706
  %v823 = vunpack.c.l.bf16 %v707
  %v824 = vunpack.c.h.bf16 %v707
  %v825 = vunpack.c.l.bf16 %v708
  %v826 = vunpack.c.h.bf16 %v708
  %v827 = vunpack.c.l.bf16 %v709
  %v828 = vunpack.c.h.bf16 %v709
  %v829 = vunpack.c.l.bf16 %v710
  %v830 = vunpack.c.h.bf16 %v710
  %v831 = vunpack.c.l.bf16 %v711
  %v832 = vunpack.c.h.bf16 %v711
  %v833 = vunpack.c.l.bf16 %v712
  %v834 = vunpack.c.h.bf16 %v712
  %v835 = vunpack.c.l.bf16 %v713
  %v836 = vunpack.c.h.bf16 %v713
  %v837 = vunpack.c.l.bf16 %v714
  %v838 = vunpack.c.h.bf16 %v714
  %v839 = vunpack.c.l.bf16 %v715
  %v840 = vunpack.c.h.bf16 %v715
  %v841 = vunpack.c.l.bf16 %v716
  %v842 = vunpack.c.h.bf16 %v716
  %v843 = vunpack.c.l.bf16 %v717
  %v844 = vunpack.c.h.bf16 %v717
  %v845 = vunpack.c.l.bf16 %v718
  %v846 = vunpack.c.h.bf16 %v718
  %v847 = vunpack.c.l.bf16 %v719
  %v848 = vunpack.c.h.bf16 %v719
  %v849 = vunpack.c.l.bf16 %v720
  %v850 = vunpack.c.h.bf16 %v720
  %v851 = vunpack.c.l.bf16 %v721
  %v852 = vunpack.c.h.bf16 %v721
  %v853 = vunpack.c.l.bf16 %v722
  %v854 = vunpack.c.h.bf16 %v722
  %v855 = vunpack.c.l.bf16 %v723
  %v856 = vunpack.c.h.bf16 %v723
  %v857 = vunpack.c.l.bf16 %v724
  %v858 = vunpack.c.h.bf16 %v724
  %v859 = vunpack.c.l.bf16 %v725
  %v860 = vunpack.c.h.bf16 %v725
  %v861 = vunpack.c.l.bf16 %v726
  %v862 = vunpack.c.h.bf16 %v726
  %v863 = vunpack.c.l.bf16 %v727
  %v864 = vunpack.c.h.bf16 %v727
  %v865 = vunpack.c.l.bf16 %v728
  %v866 = vunpack.c.h.bf16 %v728
  %v867 = vunpack.c.l.bf16 %v729
  %v868 = vunpack.c.h.bf16 %v729
  %v869 = vunpack.c.l.bf16 %v730
  %v870 = vunpack.c.h.bf16 %v730
  %v871 = vunpack.c.l.bf16 %v731
  %v872 = vunpack.c.h.bf16 %v731
  %v873 = vunpack.c.l.bf16 %v732
  %v874 = vunpack.c.h.bf16 %v732
  %v875 = vunpack.c.l.bf16 %v733
  %v876 = vunpack.c.h.bf16 %v733
  %v877 = vunpack.c.l.bf16 %v734
  %v878 = vunpack.c.h.bf16 %v734
  %v879 = vunpack.c.l.bf16 %v735
  %v880 = vunpack.c.h.bf16 %v735
  %v881 = vunpack.c.l.bf16 %v736
  %v882 = vunpack.c.h.bf16 %v736
  %v883 = vunpack.c.l.bf16 %v737
  %v884 = vunpack.c.h.bf16 %v737
  %v885 = vunpack.c.l.bf16 %v738
  %v886 = vunpack.c.h.bf16 %v738
  %v887 = vunpack.c.l.bf16 %v739
  %v888 = vunpack.c.h.bf16 %v739
  %v889 = vunpack.c.l.bf16 %v740
  %v890 = vunpack.c.h.bf16 %v740
  %v891 = vunpack.c.l.bf16 %v741
  %v892 = vunpack.c.h.bf16 %v741
  %v893 = vunpack.c.l.bf16 %v742
  %v894 = vunpack.c.h.bf16 %v742
  %v895 = vunpack.c.l.bf16 %v743
  %v896 = vunpack.c.h.bf16 %v743
  %v897 = vunpack.c.l.bf16 %v744
  %v898 = vunpack.c.h.bf16 %v744
  %v899 = vunpack.c.l.bf16 %v745
  %v900 = vunpack.c.h.bf16 %v745
  %v901 = vunpack.c.l.bf16 %v746
  %v902 = vunpack.c.h.bf16 %v746
  %v903 = vunpack.c.l.bf16 %v747
  %v904 = vunpack.c.h.bf16 %v747
  %v905 = vunpack.c.l.bf16 %v748
  %v906 = vunpack.c.h.bf16 %v748
  %v907 = vunpack.c.l.bf16 %v749
  %v908 = vunpack.c.h.bf16 %v749
  %v909 = vunpack.c.l.bf16 %v750
  %v910 = vunpack.c.h.bf16 %v750
  %v911 = vunpack.c.l.bf16 %v751
  %v912 = vunpack.c.h.bf16 %v751
  %v913 = vunpack.c.l.bf16 %v752
  %v914 = vunpack.c.h.bf16 %v752
  %v915 = vunpack.c.l.bf16 %v753
  %v916 = vunpack.c.h.bf16 %v753
  %v917 = vunpack.c.l.bf16 %v754
  %v918 = vunpack.c.h.bf16 %v754
  %v919 = vunpack.c.l.bf16 %v755
  %v920 = vunpack.c.h.bf16 %v755
  %v921 = vunpack.c.l.bf16 %v756
  %v922 = vunpack.c.h.bf16 %v756
  %v923 = vunpack.c.l.bf16 %v757
  %v924 = vunpack.c.h.bf16 %v757
  %v925 = vunpack.c.l.bf16 %v758
  %v926 = vunpack.c.h.bf16 %v758
  %v927 = vunpack.c.l.bf16 %v759
  %v928 = vunpack.c.h.bf16 %v759
  %v929 = vunpack.c.l.bf16 %v760
  %v930 = vunpack.c.h.bf16 %v760
  %v931 = vunpack.c.l.bf16 %v761
  %v932 = vunpack.c.h.bf16 %v761
  %v933 = vunpack.c.l.bf16 %v762
  %v934 = vunpack.c.h.bf16 %v762
  %v935 = vunpack.c.l.bf16 %v763
  %v936 = vunpack.c.h.bf16 %v763
  %v937 = vunpack.c.l.bf16 %v764
  %v938 = vunpack.c.h.bf16 %v764
  %v939 = vunpack.c.l.bf16 %v765
  %v940 = vunpack.c.h.bf16 %v765
  %v941 = vunpack.c.l.bf16 %v766
  %v942 = vunpack.c.h.bf16 %v766
  %v943 = vunpack.c.l.bf16 %v767
  %v944 = vunpack.c.h.bf16 %v767
  %v945 = vunpack.c.l.bf16 %v768
  %v946 = vunpack.c.h.bf16 %v768
  %v947 = vunpack.c.l.bf16 %v769
  %v948 = vunpack.c.h.bf16 %v769
  %v949 = vunpack.c.l.bf16 %v770
  %v950 = vunpack.c.h.bf16 %v770
  %v951 = vunpack.c.l.bf16 %v771
  %v952 = vunpack.c.h.bf16 %v771
  %v953 = vunpack.c.l.bf16 %v772
  %v954 = vunpack.c.h.bf16 %v772
  %v955 = vunpack.c.l.bf16 %v773
  %v956 = vunpack.c.h.bf16 %v773
  %v957 = vunpack.c.l.bf16 %v774
  %v958 = vunpack.c.h.bf16 %v774
  %v959 = vunpack.c.l.bf16 %v775
  %v960 = vunpack.c.h.bf16 %v775
  %v961 = vunpack.c.l.bf16 %v776
  %v962 = vunpack.c.h.bf16 %v776
  %v963 = vunpack.c.l.bf16 %v777
  %v964 = vunpack.c.h.bf16 %v777
  %v965 = vunpack.c.l.bf16 %v778
  %v966 = vunpack.c.h.bf16 %v778
  %v967 = vunpack.c.l.bf16 %v779
  %v968 = vunpack.c.h.bf16 %v779
  %v969 = vunpack.c.l.bf16 %v780
  %v970 = vunpack.c.h.bf16 %v780
  %v971 = vunpack.c.l.bf16 %v781
  %v972 = vunpack.c.h.bf16 %v781
  %v973 = vunpack.c.l.bf16 %v782
  %v974 = vunpack.c.h.bf16 %v782
  %v975 = vld [vmem:[%s13] sm:$0xf]
  %v976 = vld [vmem:[%s14] sm:$0x3]
  %v977 = vld [vmem:[%s3] sm:$0x3]
  %v978 = vlaneseq
  %v979 = vand.u32 %v978, 127
  %v980 = vadd.s32 %v979, 128
  %vm981 = vcmp.eq.s32.totalorder %v979, 0
  %vm982 = vcmp.eq.s32.totalorder %v980, 0
  %v983 = vsel %vm981, 1, 0
  %v984 = vsel %vm982, 1, 0
  %v985 = vcvt.s32.f32 %v983
  %v986 = vcvt.s32.f32 %v984
  %987 = vmatpush.msra.mxu0 %v680
  %988 = vmatpush.msra.mxu0 %v673
  %989 = vmatpush.msra.mxu0 %v666
  %990 = vmatpush.msra.mxu0 %v659
  %991 = vmatpush.msra.mxu0 %v652
  %992 = vmatpush.msra.mxu0 %v645
  %993 = vmatpush.msra.mxu0 %v638
  %994 = vmatpush.msra.mxu0 %v631
  %995 = vmatpush.msra.mxu0 %v624
  %996 = vmatpush.msra.mxu0 %v617
  %997 = vmatpush.msra.mxu0 %v610
  %998 = vmatpush.msra.mxu0 %v603
  %999 = vmatpush.msra.mxu0 %v596
  %1000 = vmatpush.msra.mxu0 %v589
  %1001 = vmatpush.msra.mxu0 %v582
  %1002 = vmatpush.msra.mxu0 %v575
  %1003 = vmatmul.f32.gmra.mxu0 %v489
  %v1004 = vpop.f32.mrf.mxu0
  %v1005 = vadd.f32 0.0, %v1004
  %1006 = vdwg.mxu0
  %1007 = vmatpush.msra.mxu0 %v681
  %1008 = vmatpush.msra.mxu0 %v674
  %1009 = vmatpush.msra.mxu0 %v667
  %1010 = vmatpush.msra.mxu0 %v660
  %1011 = vmatpush.msra.mxu0 %v653
  %1012 = vmatpush.msra.mxu0 %v646
  %1013 = vmatpush.msra.mxu0 %v639
  %1014 = vmatpush.msra.mxu0 %v632
  %1015 = vmatpush.msra.mxu0 %v625
  %1016 = vmatpush.msra.mxu0 %v618
  %1017 = vmatpush.msra.mxu0 %v611
  %1018 = vmatpush.msra.mxu0 %v604
  %1019 = vmatpush.msra.mxu0 %v597
  %1020 = vmatpush.msra.mxu0 %v590
  %1021 = vmatpush.msra.mxu0 %v583
  %1022 = vmatpush.msra.mxu0 %v576
  %1023 = vmatmul.f32.gmra.mxu0 %v489
  %v1024 = vpop.f32.mrf.mxu0
  %v1025 = vadd.f32 0.0, %v1024
  %1026 = vdwg.mxu0
  %1027 = vmatpush.msra.mxu0 %v682
  %1028 = vmatpush.msra.mxu0 %v675
  %1029 = vmatpush.msra.mxu0 %v668
  %1030 = vmatpush.msra.mxu0 %v661
  %1031 = vmatpush.msra.mxu0 %v654
  %1032 = vmatpush.msra.mxu0 %v647
  %1033 = vmatpush.msra.mxu0 %v640
  %1034 = vmatpush.msra.mxu0 %v633
  %1035 = vmatpush.msra.mxu0 %v626
  %1036 = vmatpush.msra.mxu0 %v619
  %1037 = vmatpush.msra.mxu0 %v612
  %1038 = vmatpush.msra.mxu0 %v605
  %1039 = vmatpush.msra.mxu0 %v598
  %1040 = vmatpush.msra.mxu0 %v591
  %1041 = vmatpush.msra.mxu0 %v584
  %1042 = vmatpush.msra.mxu0 %v577
  %1043 = vmatmul.f32.gmra.mxu0 %v489
  %v1044 = vpop.f32.mrf.mxu0
  %v1045 = vadd.f32 0.0, %v1044
  %1046 = vdwg.mxu0
  %1047 = vmatpush.msra.mxu0 %v683
  %1048 = vmatpush.msra.mxu0 %v676
  %1049 = vmatpush.msra.mxu0 %v669
  %1050 = vmatpush.msra.mxu0 %v662
  %1051 = vmatpush.msra.mxu0 %v655
  %1052 = vmatpush.msra.mxu0 %v648
  %1053 = vmatpush.msra.mxu0 %v641
  %1054 = vmatpush.msra.mxu0 %v634
  %1055 = vmatpush.msra.mxu0 %v627
  %1056 = vmatpush.msra.mxu0 %v620
  %1057 = vmatpush.msra.mxu0 %v613
  %1058 = vmatpush.msra.mxu0 %v606
  %1059 = vmatpush.msra.mxu0 %v599
  %1060 = vmatpush.msra.mxu0 %v592
  %1061 = vmatpush.msra.mxu0 %v585
  %1062 = vmatpush.msra.mxu0 %v578
  %1063 = vmatmul.f32.gmra.mxu0 %v489
  %v1064 = vpop.f32.mrf.mxu0
  %v1065 = vadd.f32 0.0, %v1064
  %1066 = vdwg.mxu0
  %1067 = vmatpush.msra.mxu0 %v684
  %1068 = vmatpush.msra.mxu0 %v677
  %1069 = vmatpush.msra.mxu0 %v670
  %1070 = vmatpush.msra.mxu0 %v663
  %1071 = vmatpush.msra.mxu0 %v656
  %1072 = vmatpush.msra.mxu0 %v649
  %1073 = vmatpush.msra.mxu0 %v642
  %1074 = vmatpush.msra.mxu0 %v635
  %1075 = vmatpush.msra.mxu0 %v628
  %1076 = vmatpush.msra.mxu0 %v621
  %1077 = vmatpush.msra.mxu0 %v614
  %1078 = vmatpush.msra.mxu0 %v607
  %1079 = vmatpush.msra.mxu0 %v600
  %1080 = vmatpush.msra.mxu0 %v593
  %1081 = vmatpush.msra.mxu0 %v586
  %1082 = vmatpush.msra.mxu0 %v579
  %1083 = vmatmul.f32.gmra.mxu0 %v489
  %v1084 = vpop.f32.mrf.mxu0
  %v1085 = vadd.f32 0.0, %v1084
  %1086 = vdwg.mxu0
  %1087 = vmatpush.xpose.msra.mxu0 0.0
  %1088 = vmatpush.xpose.msra.mxu0 0.0
  %1089 = vmatpush.xpose.msra.mxu0 0.0
  %1090 = vmatpush.xpose.msra.mxu0 0.0
  %1091 = vmatpush.xpose.msra.mxu0 0.0
  %1092 = vmatpush.xpose.msra.mxu0 0.0
  %1093 = vmatpush.xpose.msra.mxu0 0.0
  %1094 = vmatpush.xpose.msra.mxu0 0.0
  %1095 = vmatpush.xpose.msra.mxu0 0.0
  %1096 = vmatpush.xpose.msra.mxu0 0.0
  %1097 = vmatpush.xpose.msra.mxu0 0.0
  %1098 = vmatpush.xpose.msra.mxu0 0.0
  %1099 = vmatpush.xpose.msra.mxu0 0.0
  %1100 = vmatpush.xpose.msra.mxu0 0.0
  %1101 = vmatpush.xpose.msra.mxu0 %v367
  %1102 = vmatpush.xpose.msra.mxu0 %v364
  %1103 = vmatmul.f32.gmra.mxu0 %v1085
  %v1104 = vpop.f32.mrf.mxu0
  %v1105 = vadd.f32 0.0, %v1104
  %1106 = vdwg.mxu0
  %v1107 = vmul.f32 %v1105, 0.088388346
  %v1108 = vadd.f32 %v1107, %v977
  %vm1109 = vcmask 123904
  %v1110 = vsel %vm1109, %v1108, -inf
  %1111 = vmax.xlane.f32.xlu0 %v1110
  %v1112 = vpop.xlane.xlu0 %1111
  %v1113 = vsub.f32 %v1108, %v1112
  %v1114 = vmul.f32 %v1113, 1.442695
  %v1115 = vpow.pop %v1114
  %v1116 = vsel %vm1109, %v1115, 0.0
  %1117 = vadd.xlane.f32.xlu0 %v1116
  %v1118 = vpop.xlane.xlu0 %1117
  %v1119 = vrcp.pop %v1118
  %v1120 = vmul.f32 %v1115, %v1119
  %v1122 = vsel %vm393, %v1120, 0
  %1124 = vmatpush.msra.mxu0 0.0
  %1125 = vmatpush.msra.mxu0 0.0
  %1126 = vmatpush.msra.mxu0 0.0
  %1127 = vmatpush.msra.mxu0 0.0
  %1128 = vmatpush.msra.mxu0 0.0
  %1129 = vmatpush.msra.mxu0 0.0
  %1130 = vmatpush.msra.mxu0 0.0
  %1131 = vmatpush.msra.mxu0 0.0
  %1132 = vmatpush.msra.mxu0 0.0
  %1133 = vmatpush.msra.mxu0 0.0
  %1134 = vmatpush.msra.mxu0 0.0
  %1135 = vmatpush.msra.mxu0 0.0
  %1136 = vmatpush.msra.mxu0 0.0
  %1137 = vmatpush.msra.mxu0 0.0
  %1138 = vmatpush.msra.mxu0 %v390
  %1139 = vmatpush.msra.mxu0 %v387
  %1140 = vmatmul.f32.gmra.mxu0 %v1122
  %v1141 = vpop.f32.mrf.mxu0
  %v1142 = vadd.f32 0.0, %v1141
  %1143 = vdwg.mxu0
  %1144 = vmatpush.msra.mxu0 %v843
  %1145 = vmatpush.msra.mxu0 %v839
  %1146 = vmatpush.msra.mxu0 %v835
  %1147 = vmatpush.msra.mxu0 %v831
  %1148 = vmatpush.msra.mxu0 %v827
  %1149 = vmatpush.msra.mxu0 %v823
  %1150 = vmatpush.msra.mxu0 %v819
  %1151 = vmatpush.msra.mxu0 %v815
  %1152 = vmatpush.msra.mxu0 %v811
  %1153 = vmatpush.msra.mxu0 %v807
  %1154 = vmatpush.msra.mxu0 %v803
  %1155 = vmatpush.msra.mxu0 %v799
  %1156 = vmatpush.msra.mxu0 %v795
  %1157 = vmatpush.msra.mxu0 %v791
  %1158 = vmatpush.msra.mxu0 %v787
  %1159 = vmatpush.msra.mxu0 %v783
  %1160 = vmatmul.f32.gmra.mxu0 %v985
  %v1161 = vpop.f32.mrf.mxu0
  %v1162 = vadd.f32 0.0, %v1161
  %1163 = vdwg.mxu0
  %1164 = vmatpush.msra.mxu0 %v907
  %1165 = vmatpush.msra.mxu0 %v903
  %1166 = vmatpush.msra.mxu0 %v899
  %1167 = vmatpush.msra.mxu0 %v895
  %1168 = vmatpush.msra.mxu0 %v891
  %1169 = vmatpush.msra.mxu0 %v887
  %1170 = vmatpush.msra.mxu0 %v883
  %1171 = vmatpush.msra.mxu0 %v879
  %1172 = vmatpush.msra.mxu0 %v875
  %1173 = vmatpush.msra.mxu0 %v871
  %1174 = vmatpush.msra.mxu0 %v867
  %1175 = vmatpush.msra.mxu0 %v863
  %1176 = vmatpush.msra.mxu0 %v859
  %1177 = vmatpush.msra.mxu0 %v855
  %1178 = vmatpush.msra.mxu0 %v851
  %1179 = vmatpush.msra.mxu0 %v847
  %1180 = vmatmul.f32.gmra.mxu0 %v986
  %v1181 = vpop.f32.mrf.mxu0
  %v1182 = vadd.f32 %v1162, %v1181
  %1183 = vdwg.mxu0
  %1184 = vmatpush.msra.mxu0 %v971
  %1185 = vmatpush.msra.mxu0 %v967
  %1186 = vmatpush.msra.mxu0 %v963
  %1187 = vmatpush.msra.mxu0 %v959
  %1188 = vmatpush.msra.mxu0 %v955
  %1189 = vmatpush.msra.mxu0 %v951
  %1190 = vmatpush.msra.mxu0 %v947
  %1191 = vmatpush.msra.mxu0 %v943
  %1192 = vmatpush.msra.mxu0 %v939
  %1193 = vmatpush.msra.mxu0 %v935
  %1194 = vmatpush.msra.mxu0 %v931
  %1195 = vmatpush.msra.mxu0 %v927
  %1196 = vmatpush.msra.mxu0 %v923
  %1197 = vmatpush.msra.mxu0 %v919
  %1198 = vmatpush.msra.mxu0 %v915
  %1199 = vmatpush.msra.mxu0 %v911
  %1200 = vmatmul.f32.gmra.mxu0 %v1142
  %v1201 = vpop.f32.mrf.mxu0
  %v1202 = vadd.f32 %v1182, %v1201
  %1203 = vdwg.mxu0
  %1204 = vmatpush.msra.mxu0 %v844
  %1205 = vmatpush.msra.mxu0 %v840
  %1206 = vmatpush.msra.mxu0 %v836
  %1207 = vmatpush.msra.mxu0 %v832
  %1208 = vmatpush.msra.mxu0 %v828
  %1209 = vmatpush.msra.mxu0 %v824
  %1210 = vmatpush.msra.mxu0 %v820
  %1211 = vmatpush.msra.mxu0 %v816
  %1212 = vmatpush.msra.mxu0 %v812
  %1213 = vmatpush.msra.mxu0 %v808
  %1214 = vmatpush.msra.mxu0 %v804
  %1215 = vmatpush.msra.mxu0 %v800
  %1216 = vmatpush.msra.mxu0 %v796
  %1217 = vmatpush.msra.mxu0 %v792
  %1218 = vmatpush.msra.mxu0 %v788
  %1219 = vmatpush.msra.mxu0 %v784
  %1220 = vmatmul.f32.gmra.mxu0 %v985
  %v1221 = vpop.f32.mrf.mxu0
  %v1222 = vadd.f32 0.0, %v1221
  %1223 = vdwg.mxu0
  %1224 = vmatpush.msra.mxu0 %v908
  %1225 = vmatpush.msra.mxu0 %v904
  %1226 = vmatpush.msra.mxu0 %v900
  %1227 = vmatpush.msra.mxu0 %v896
  %1228 = vmatpush.msra.mxu0 %v892
  %1229 = vmatpush.msra.mxu0 %v888
  %1230 = vmatpush.msra.mxu0 %v884
  %1231 = vmatpush.msra.mxu0 %v880
  %1232 = vmatpush.msra.mxu0 %v876
  %1233 = vmatpush.msra.mxu0 %v872
  %1234 = vmatpush.msra.mxu0 %v868
  %1235 = vmatpush.msra.mxu0 %v864
  %1236 = vmatpush.msra.mxu0 %v860
  %1237 = vmatpush.msra.mxu0 %v856
  %1238 = vmatpush.msra.mxu0 %v852
  %1239 = vmatpush.msra.mxu0 %v848
  %1240 = vmatmul.f32.gmra.mxu0 %v986
  %v1241 = vpop.f32.mrf.mxu0
  %v1242 = vadd.f32 %v1222, %v1241
  %1243 = vdwg.mxu0
  %1244 = vmatpush.msra.mxu0 %v972
  %1245 = vmatpush.msra.mxu0 %v968
  %1246 = vmatpush.msra.mxu0 %v964
  %1247 = vmatpush.msra.mxu0 %v960
  %1248 = vmatpush.msra.mxu0 %v956
  %1249 = vmatpush.msra.mxu0 %v952
  %1250 = vmatpush.msra.mxu0 %v948
  %1251 = vmatpush.msra.mxu0 %v944
  %1252 = vmatpush.msra.mxu0 %v940
  %1253 = vmatpush.msra.mxu0 %v936
  %1254 = vmatpush.msra.mxu0 %v932
  %1255 = vmatpush.msra.mxu0 %v928
  %1256 = vmatpush.msra.mxu0 %v924
  %1257 = vmatpush.msra.mxu0 %v920
  %1258 = vmatpush.msra.mxu0 %v916
  %1259 = vmatpush.msra.mxu0 %v912
  %1260 = vmatmul.f32.gmra.mxu0 %v1142
  %v1261 = vpop.f32.mrf.mxu0
  %v1262 = vadd.f32 %v1242, %v1261
  %1263 = vdwg.mxu0
  %1264 = vmatpush.msra.mxu0 %v845
  %1265 = vmatpush.msra.mxu0 %v841
  %1266 = vmatpush.msra.mxu0 %v837
  %1267 = vmatpush.msra.mxu0 %v833
  %1268 = vmatpush.msra.mxu0 %v829
  %1269 = vmatpush.msra.mxu0 %v825
  %1270 = vmatpush.msra.mxu0 %v821
  %1271 = vmatpush.msra.mxu0 %v817
  %1272 = vmatpush.msra.mxu0 %v813
  %1273 = vmatpush.msra.mxu0 %v809
  %1274 = vmatpush.msra.mxu0 %v805
  %1275 = vmatpush.msra.mxu0 %v801
  %1276 = vmatpush.msra.mxu0 %v797
  %1277 = vmatpush.msra.mxu0 %v793
  %1278 = vmatpush.msra.mxu0 %v789
  %1279 = vmatpush.msra.mxu0 %v785
  %1280 = vmatmul.f32.gmra.mxu0 %v985
  %v1281 = vpop.f32.mrf.mxu0
  %v1282 = vadd.f32 0.0, %v1281
  %1283 = vdwg.mxu0
  %1284 = vmatpush.msra.mxu0 %v909
  %1285 = vmatpush.msra.mxu0 %v905
  %1286 = vmatpush.msra.mxu0 %v901
  %1287 = vmatpush.msra.mxu0 %v897
  %1288 = vmatpush.msra.mxu0 %v893
  %1289 = vmatpush.msra.mxu0 %v889
  %1290 = vmatpush.msra.mxu0 %v885
  %1291 = vmatpush.msra.mxu0 %v881
  %1292 = vmatpush.msra.mxu0 %v877
  %1293 = vmatpush.msra.mxu0 %v873
  %1294 = vmatpush.msra.mxu0 %v869
  %1295 = vmatpush.msra.mxu0 %v865
  %1296 = vmatpush.msra.mxu0 %v861
  %1297 = vmatpush.msra.mxu0 %v857
  %1298 = vmatpush.msra.mxu0 %v853
  %1299 = vmatpush.msra.mxu0 %v849
  %1300 = vmatmul.f32.gmra.mxu0 %v986
  %v1301 = vpop.f32.mrf.mxu0
  %v1302 = vadd.f32 %v1282, %v1301
  %1303 = vdwg.mxu0
  %1304 = vmatpush.msra.mxu0 %v973
  %1305 = vmatpush.msra.mxu0 %v969
  %1306 = vmatpush.msra.mxu0 %v965
  %1307 = vmatpush.msra.mxu0 %v961
  %1308 = vmatpush.msra.mxu0 %v957
  %1309 = vmatpush.msra.mxu0 %v953
  %1310 = vmatpush.msra.mxu0 %v949
  %1311 = vmatpush.msra.mxu0 %v945
  %1312 = vmatpush.msra.mxu0 %v941
  %1313 = vmatpush.msra.mxu0 %v937
  %1314 = vmatpush.msra.mxu0 %v933
  %1315 = vmatpush.msra.mxu0 %v929
  %1316 = vmatpush.msra.mxu0 %v925
  %1317 = vmatpush.msra.mxu0 %v921
  %1318 = vmatpush.msra.mxu0 %v917
  %1319 = vmatpush.msra.mxu0 %v913
  %1320 = vmatmul.f32.gmra.mxu0 %v1142
  %v1321 = vpop.f32.mrf.mxu0
  %v1322 = vadd.f32 %v1302, %v1321
  %1323 = vdwg.mxu0
  %1324 = vmatpush.msra.mxu0 %v846
  %1325 = vmatpush.msra.mxu0 %v842
  %1326 = vmatpush.msra.mxu0 %v838
  %1327 = vmatpush.msra.mxu0 %v834
  %1328 = vmatpush.msra.mxu0 %v830
  %1329 = vmatpush.msra.mxu0 %v826
  %1330 = vmatpush.msra.mxu0 %v822
  %1331 = vmatpush.msra.mxu0 %v818
  %1332 = vmatpush.msra.mxu0 %v814
  %1333 = vmatpush.msra.mxu0 %v810
  %1334 = vmatpush.msra.mxu0 %v806
  %1335 = vmatpush.msra.mxu0 %v802
  %1336 = vmatpush.msra.mxu0 %v798
  %1337 = vmatpush.msra.mxu0 %v794
  %1338 = vmatpush.msra.mxu0 %v790
  %1339 = vmatpush.msra.mxu0 %v786
  %1340 = vmatmul.f32.gmra.mxu0 %v985
  %v1341 = vpop.f32.mrf.mxu0
  %v1342 = vadd.f32 0.0, %v1341
  %1343 = vdwg.mxu0
  %1344 = vmatpush.msra.mxu0 %v910
  %1345 = vmatpush.msra.mxu0 %v906
  %1346 = vmatpush.msra.mxu0 %v902
  %1347 = vmatpush.msra.mxu0 %v898
  %1348 = vmatpush.msra.mxu0 %v894
  %1349 = vmatpush.msra.mxu0 %v890
  %1350 = vmatpush.msra.mxu0 %v886
  %1351 = vmatpush.msra.mxu0 %v882
  %1352 = vmatpush.msra.mxu0 %v878
  %1353 = vmatpush.msra.mxu0 %v874
  %1354 = vmatpush.msra.mxu0 %v870
  %1355 = vmatpush.msra.mxu0 %v866
  %1356 = vmatpush.msra.mxu0 %v862
  %1357 = vmatpush.msra.mxu0 %v858
  %1358 = vmatpush.msra.mxu0 %v854
  %1359 = vmatpush.msra.mxu0 %v850
  %1360 = vmatmul.f32.gmra.mxu0 %v986
  %v1361 = vpop.f32.mrf.mxu0
  %v1362 = vadd.f32 %v1342, %v1361
  %1363 = vdwg.mxu0
  %1364 = vmatpush.msra.mxu0 %v974
  %1365 = vmatpush.msra.mxu0 %v970
  %1366 = vmatpush.msra.mxu0 %v966
  %1367 = vmatpush.msra.mxu0 %v962
  %1368 = vmatpush.msra.mxu0 %v958
  %1369 = vmatpush.msra.mxu0 %v954
  %1370 = vmatpush.msra.mxu0 %v950
  %1371 = vmatpush.msra.mxu0 %v946
  %1372 = vmatpush.msra.mxu0 %v942
  %1373 = vmatpush.msra.mxu0 %v938
  %1374 = vmatpush.msra.mxu0 %v934
  %1375 = vmatpush.msra.mxu0 %v930
  %1376 = vmatpush.msra.mxu0 %v926
  %1377 = vmatpush.msra.mxu0 %v922
  %1378 = vmatpush.msra.mxu0 %v918
  %1379 = vmatpush.msra.mxu0 %v914
  %1380 = vmatmul.f32.gmra.mxu0 %v1142
  %v1381 = vpop.f32.mrf.mxu0
  %v1382 = vadd.f32 %v1362, %v1381
  %1383 = vdwg.mxu0
  %v1384 = vadd.f32 %v1005, %v1202
  %v1385 = vadd.f32 %v1025, %v1262
  %v1386 = vadd.f32 %v1045, %v1322
  %v1387 = vadd.f32 %v1065, %v1382
  %v1389 = vperm.slane %v975, 0
  %v1390 = vperm.slane %v975, 1
  %v1391 = vperm.slane %v975, 2
  %v1392 = vperm.slane %v975, 3
  %v1397 = vadd.f32 %v1384, %v1389
  %v1398 = vadd.f32 %v1385, %v1390
  %v1399 = vadd.f32 %v1386, %v1391
  %v1400 = vadd.f32 %v1387, %v1392
  %v1401 = vxor.u32 %v1397, 2147483648
  %v1402 = vxor.u32 %v1398, 2147483648
  %v1403 = vxor.u32 %v1399, 2147483648
  %v1404 = vmul.f32 %v1401, 1.442695
  %v1405 = vpow.pop %v1404
  %v1406 = vmul.f32 %v1402, 1.442695
  %v1407 = vpow.pop %v1406
  %v1408 = vmul.f32 %v1403, 1.442695
  %v1409 = vpow.pop %v1408
  %v1410 = vadd.f32 %v1405, 1.0
  %v1411 = vadd.f32 %v1407, 1.0
  %v1412 = vadd.f32 %v1409, 1.0
  %v1413 = vrcp.pop %v1410
  %v1414 = vmul.f32 %v1410, %v1413
  %v1415 = vsub.f32 1.0, %v1414
  %v1416 = vmul.f32 %v1413, %v1415
  %v1417 = vadd.f32 %v1413, %v1416
  %vm1418 = vweird.f32 %v1410
  %vm1419 = vweird.f32 %v1413
  %vm1420 = vmor %vm1418, %vm1419
  %v1421 = vsel %vm1420, %v1413, %v1417
  %v1422 = vand.u32 2147483647, %v1410
  %vm1423 = vcmp.eq.f32.partialorder %v1422, 8.507059e+37
  %v1424 = vand.u32 %v1410, 2147483648
  %v1425 = vor.u32 1.1754944e-38, %v1424
  %v1426 = vsel %vm1423, %v1425, %v1421
  %v1427 = vmul.f32 1.0, %v1426
  %v1428 = vrcp.pop %v1411
  %v1429 = vmul.f32 %v1411, %v1428
  %v1430 = vsub.f32 1.0, %v1429
  %v1431 = vmul.f32 %v1428, %v1430
  %v1432 = vadd.f32 %v1428, %v1431
  %vm1433 = vweird.f32 %v1411
  %vm1434 = vweird.f32 %v1428
  %vm1435 = vmor %vm1433, %vm1434
  %v1436 = vsel %vm1435, %v1428, %v1432
  %v1437 = vand.u32 2147483647, %v1411
  %vm1438 = vcmp.eq.f32.partialorder %v1437, 8.507059e+37
  %v1439 = vand.u32 %v1411, 2147483648
  %v1440 = vor.u32 1.1754944e-38, %v1439
  %v1441 = vsel %vm1438, %v1440, %v1436
  %v1442 = vmul.f32 1.0, %v1441
  %v1443 = vrcp.pop %v1412
  %v1444 = vmul.f32 %v1412, %v1443
  %v1445 = vsub.f32 1.0, %v1444
  %v1446 = vmul.f32 %v1443, %v1445
  %v1447 = vadd.f32 %v1443, %v1446
  %vm1448 = vweird.f32 %v1412
  %vm1449 = vweird.f32 %v1443
  %vm1450 = vmor %vm1448, %vm1449
  %v1451 = vsel %vm1450, %v1443, %v1447
  %v1452 = vand.u32 2147483647, %v1412
  %vm1453 = vcmp.eq.f32.partialorder %v1452, 8.507059e+37
  %v1454 = vand.u32 %v1412, 2147483648
  %v1455 = vor.u32 1.1754944e-38, %v1454
  %v1456 = vsel %vm1453, %v1455, %v1451
  %v1457 = vmul.f32 1.0, %v1456
  %v1458 = vtanh.pop %v1400
  %v1459 = vmul.f32 %v1442, %v509
  %v1460 = vmul.f32 %v1427, %v1458
  %v1461 = vadd.f32 %v1459, %v1460
  %v1462 = vtanh.pop %v1461
  %v1463 = vmul.f32 %v1457, %v1462
  %1464 = vmatpush.msra.mxu0 %v680
  %1465 = vmatpush.msra.mxu0 %v673
  %1466 = vmatpush.msra.mxu0 %v666
  %1467 = vmatpush.msra.mxu0 %v659
  %1468 = vmatpush.msra.mxu0 %v652
  %1469 = vmatpush.msra.mxu0 %v645
  %1470 = vmatpush.msra.mxu0 %v638
  %1471 = vmatpush.msra.mxu0 %v631
  %1472 = vmatpush.msra.mxu0 %v624
  %1473 = vmatpush.msra.mxu0 %v617
  %1474 = vmatpush.msra.mxu0 %v610
  %1475 = vmatpush.msra.mxu0 %v603
  %1476 = vmatpush.msra.mxu0 %v596
  %1477 = vmatpush.msra.mxu0 %v589
  %1478 = vmatpush.msra.mxu0 %v582
  %1479 = vmatpush.msra.mxu0 %v575
  %1480 = vmatmul.f32.gmra.mxu0 %v1463
  %v1481 = vpop.f32.mrf.mxu0
  %v1482 = vadd.f32 0.0, %v1481
  %1483 = vdwg.mxu0
  %1484 = vmatpush.msra.mxu0 %v681
  %1485 = vmatpush.msra.mxu0 %v674
  %1486 = vmatpush.msra.mxu0 %v667
  %1487 = vmatpush.msra.mxu0 %v660
  %1488 = vmatpush.msra.mxu0 %v653
  %1489 = vmatpush.msra.mxu0 %v646
  %1490 = vmatpush.msra.mxu0 %v639
  %1491 = vmatpush.msra.mxu0 %v632
  %1492 = vmatpush.msra.mxu0 %v625
  %1493 = vmatpush.msra.mxu0 %v618
  %1494 = vmatpush.msra.mxu0 %v611
  %1495 = vmatpush.msra.mxu0 %v604
  %1496 = vmatpush.msra.mxu0 %v597
  %1497 = vmatpush.msra.mxu0 %v590
  %1498 = vmatpush.msra.mxu0 %v583
  %1499 = vmatpush.msra.mxu0 %v576
  %1500 = vmatmul.f32.gmra.mxu0 %v1463
  %v1501 = vpop.f32.mrf.mxu0
  %v1502 = vadd.f32 0.0, %v1501
  %1503 = vdwg.mxu0
  %1504 = vmatpush.msra.mxu0 %v682
  %1505 = vmatpush.msra.mxu0 %v675
  %1506 = vmatpush.msra.mxu0 %v668
  %1507 = vmatpush.msra.mxu0 %v661
  %1508 = vmatpush.msra.mxu0 %v654
  %1509 = vmatpush.msra.mxu0 %v647
  %1510 = vmatpush.msra.mxu0 %v640
  %1511 = vmatpush.msra.mxu0 %v633
  %1512 = vmatpush.msra.mxu0 %v626
  %1513 = vmatpush.msra.mxu0 %v619
  %1514 = vmatpush.msra.mxu0 %v612
  %1515 = vmatpush.msra.mxu0 %v605
  %1516 = vmatpush.msra.mxu0 %v598
  %1517 = vmatpush.msra.mxu0 %v591
  %1518 = vmatpush.msra.mxu0 %v584
  %1519 = vmatpush.msra.mxu0 %v577
  %1520 = vmatmul.f32.gmra.mxu0 %v1463
  %v1521 = vpop.f32.mrf.mxu0
  %v1522 = vadd.f32 0.0, %v1521
  %1523 = vdwg.mxu0
  %1524 = vmatpush.msra.mxu0 %v683
  %1525 = vmatpush.msra.mxu0 %v676
  %1526 = vmatpush.msra.mxu0 %v669
  %1527 = vmatpush.msra.mxu0 %v662
  %1528 = vmatpush.msra.mxu0 %v655
  %1529 = vmatpush.msra.mxu0 %v648
  %1530 = vmatpush.msra.mxu0 %v641
  %1531 = vmatpush.msra.mxu0 %v634
  %1532 = vmatpush.msra.mxu0 %v627
  %1533 = vmatpush.msra.mxu0 %v620
  %1534 = vmatpush.msra.mxu0 %v613
  %1535 = vmatpush.msra.mxu0 %v606
  %1536 = vmatpush.msra.mxu0 %v599
  %1537 = vmatpush.msra.mxu0 %v592
  %1538 = vmatpush.msra.mxu0 %v585
  %1539 = vmatpush.msra.mxu0 %v578
  %1540 = vmatmul.f32.gmra.mxu0 %v1463
  %v1541 = vpop.f32.mrf.mxu0
  %v1542 = vadd.f32 0.0, %v1541
  %1543 = vdwg.mxu0
  %1544 = vmatpush.msra.mxu0 %v684
  %1545 = vmatpush.msra.mxu0 %v677
  %1546 = vmatpush.msra.mxu0 %v670
  %1547 = vmatpush.msra.mxu0 %v663
  %1548 = vmatpush.msra.mxu0 %v656
  %1549 = vmatpush.msra.mxu0 %v649
  %1550 = vmatpush.msra.mxu0 %v642
  %1551 = vmatpush.msra.mxu0 %v635
  %1552 = vmatpush.msra.mxu0 %v628
  %1553 = vmatpush.msra.mxu0 %v621
  %1554 = vmatpush.msra.mxu0 %v614
  %1555 = vmatpush.msra.mxu0 %v607
  %1556 = vmatpush.msra.mxu0 %v600
  %1557 = vmatpush.msra.mxu0 %v593
  %1558 = vmatpush.msra.mxu0 %v586
  %1559 = vmatpush.msra.mxu0 %v579
  %1560 = vmatmul.f32.gmra.mxu0 %v1463
  %v1561 = vpop.f32.mrf.mxu0
  %v1562 = vadd.f32 0.0, %v1561
  %1563 = vdwg.mxu0
  %1564 = vmatpush.msra.mxu0 %v685
  %1565 = vmatpush.msra.mxu0 %v678
  %1566 = vmatpush.msra.mxu0 %v671
  %1567 = vmatpush.msra.mxu0 %v664
  %1568 = vmatpush.msra.mxu0 %v657
  %1569 = vmatpush.msra.mxu0 %v650
  %1570 = vmatpush.msra.mxu0 %v643
  %1571 = vmatpush.msra.mxu0 %v636
  %1572 = vmatpush.msra.mxu0 %v629
  %1573 = vmatpush.msra.mxu0 %v622
  %1574 = vmatpush.msra.mxu0 %v615
  %1575 = vmatpush.msra.mxu0 %v608
  %1576 = vmatpush.msra.mxu0 %v601
  %1577 = vmatpush.msra.mxu0 %v594
  %1578 = vmatpush.msra.mxu0 %v587
  %1579 = vmatpush.msra.mxu0 %v580
  %1580 = vmatmul.f32.gmra.mxu0 %v1463
  %v1581 = vpop.f32.mrf.mxu0
  %v1582 = vadd.f32 0.0, %v1581
  %1583 = vdwg.mxu0
  %1584 = vmatpush.msra.mxu0 %v686
  %1585 = vmatpush.msra.mxu0 %v679
  %1586 = vmatpush.msra.mxu0 %v672
  %1587 = vmatpush.msra.mxu0 %v665
  %1588 = vmatpush.msra.mxu0 %v658
  %1589 = vmatpush.msra.mxu0 %v651
  %1590 = vmatpush.msra.mxu0 %v644
  %1591 = vmatpush.msra.mxu0 %v637
  %1592 = vmatpush.msra.mxu0 %v630
  %1593 = vmatpush.msra.mxu0 %v623
  %1594 = vmatpush.msra.mxu0 %v616
  %1595 = vmatpush.msra.mxu0 %v609
  %1596 = vmatpush.msra.mxu0 %v602
  %1597 = vmatpush.msra.mxu0 %v595
  %1598 = vmatpush.msra.mxu0 %v588
  %1599 = vmatpush.msra.mxu0 %v581
  %1600 = vmatmul.f32.gmra.mxu0 %v1463
  %v1601 = vpop.f32.mrf.mxu0
  %v1602 = vadd.f32 0.0, %v1601
  %1603 = vdwg.mxu0
  %v1605 = vperm.slane %v976, 0
  %v1606 = vperm.slane %v976, 1
  %v1609 = vadd.f32 %v1582, %v1605
  %v1610 = vadd.f32 %v1602, %v1606
  %v1613 = vrot.slane %v1610, 6
  %vm1614 = vcmask 1041408
  %v1615 = vsel %vm1614, %v1609, %v1613
  %1617 = vst [vmem:[%s15] sm:$0xf] %v1615
  %v1618 = vsel %vm1614, %v1609, -inf
  %v1619 = vsel %vm1614, %v1610, -inf
  %v1620 = vmax.f32 %v1618, %v1619
  %1621 = vmax.xlane.f32.xlu0 %v1620
  %v1622 = vpop.xlane.xlu0 %1621
  %vm1623 = vcmp.ge.f32.partialorder %v1609, %v1622
  %vm1624 = vcmp.ge.f32.partialorder %v1610, %v1622
  %v1625 = vsel %vm1623, %v979, 256
  %v1626 = vsel %vm1624, %v980, 256
  %v1627 = vsel %vm1614, %v1625, 2147483647
  %v1628 = vsel %vm1614, %v1626, 2147483647
  %vm1629 = vcmp.lt.s32.totalorder %v1627, %v1628
  %v1630 = vsel %vm1629, %v1627, %v1628
  %v1631 = vand.u32 %v1630, 65535
  %v1632 = vshra.s32 %v1630, 16
  %v1633 = vcvt.s32.f32 %v1631
  %v1634 = vcvt.s32.f32 %v1632
  %1635 = vmin.xlane.f32.xlu0 %v1634
  %v1636 = vpop.xlane.xlu0 %1635
  %vm1637 = vcmp.eq.f32.partialorder %v1634, %v1636
  %v1638 = vsel %vm1637, %v1633, inf
  %1639 = vmin.xlane.f32.xlu0 %v1638
  %v1640 = vpop.xlane.xlu0 %1639
  %v1641 = vcvt.f32.s32 %v1640
  %v1642 = vcvt.f32.s32 %v1636
  %v1643 = vshll.u32 %v1642, 16
  %v1644 = vadd.s32 %v1643, %v1641
  %vm1645 = vcmp.eq.s32.totalorder %v979, %v1644
  %vm1646 = vcmp.eq.s32.totalorder %v980, %v1644
  %v1647 = vsel %vm1645, 1, 0
  %v1648 = vsel %vm1646, 1, 0
  %v1649 = vcvt.s32.f32 %v1647
  %v1650 = vcvt.s32.f32 %v1648
  %1651 = vmatpush.xpose.msra.mxu0 0.0
  %1652 = vmatpush.xpose.msra.mxu0 0.0
  %1653 = vmatpush.xpose.msra.mxu0 0.0
  %1654 = vmatpush.xpose.msra.mxu0 0.0
  %1655 = vmatpush.xpose.msra.mxu0 0.0
  %1656 = vmatpush.xpose.msra.mxu0 0.0
  %1657 = vmatpush.xpose.msra.mxu0 0.0
  %1658 = vmatpush.xpose.msra.mxu0 0.0
  %1659 = vmatpush.xpose.msra.mxu0 0.0
  %1660 = vmatpush.xpose.msra.mxu0 0.0
  %1661 = vmatpush.xpose.msra.mxu0 0.0
  %1662 = vmatpush.xpose.msra.mxu0 0.0
  %1663 = vmatpush.xpose.msra.mxu0 0.0
  %1664 = vmatpush.xpose.msra.mxu0 0.0
  %1665 = vmatpush.xpose.msra.mxu0 %v367
  %1666 = vmatpush.xpose.msra.mxu0 %v364
  %1667 = vmatmul.f32.gmra.mxu0 %v1562
  %v1668 = vpop.f32.mrf.mxu0
  %v1669 = vadd.f32 0.0, %v1668
  %1670 = vdwg.mxu0
  %v1671 = vmul.f32 %v1669, 0.088388346
  %v1672 = vadd.f32 %v1671, %v977
  %v1673 = vsel %vm1109, %v1672, -inf
  %1674 = vmax.xlane.f32.xlu0 %v1673
  %v1675 = vpop.xlane.xlu0 %1674
  %v1676 = vsub.f32 %v1672, %v1675
  %v1677 = vmul.f32 %v1676, 1.442695
  %v1678 = vpow.pop %v1677
  %v1679 = vsel %vm1109, %v1678, 0.0
  %1680 = vadd.xlane.f32.xlu0 %v1679
  %v1681 = vpop.xlane.xlu0 %1680
  %v1682 = vrcp.pop %v1681
  %v1683 = vmul.f32 %v1678, %v1682
  %v1685 = vsel %vm393, %v1683, 0
  %1687 = vmatpush.msra.mxu0 0.0
  %1688 = vmatpush.msra.mxu0 0.0
  %1689 = vmatpush.msra.mxu0 0.0
  %1690 = vmatpush.msra.mxu0 0.0
  %1691 = vmatpush.msra.mxu0 0.0
  %1692 = vmatpush.msra.mxu0 0.0
  %1693 = vmatpush.msra.mxu0 0.0
  %1694 = vmatpush.msra.mxu0 0.0
  %1695 = vmatpush.msra.mxu0 0.0
  %1696 = vmatpush.msra.mxu0 0.0
  %1697 = vmatpush.msra.mxu0 0.0
  %1698 = vmatpush.msra.mxu0 0.0
  %1699 = vmatpush.msra.mxu0 0.0
  %1700 = vmatpush.msra.mxu0 0.0
  %1701 = vmatpush.msra.mxu0 %v390
  %1702 = vmatpush.msra.mxu0 %v387
  %1703 = vmatmul.f32.gmra.mxu0 %v1685
  %v1704 = vpop.f32.mrf.mxu0
  %v1705 = vadd.f32 0.0, %v1704
  %1706 = vdwg.mxu0
  %1707 = vmatpush.msra.mxu0 %v843
  %1708 = vmatpush.msra.mxu0 %v839
  %1709 = vmatpush.msra.mxu0 %v835
  %1710 = vmatpush.msra.mxu0 %v831
  %1711 = vmatpush.msra.mxu0 %v827
  %1712 = vmatpush.msra.mxu0 %v823
  %1713 = vmatpush.msra.mxu0 %v819
  %1714 = vmatpush.msra.mxu0 %v815
  %1715 = vmatpush.msra.mxu0 %v811
  %1716 = vmatpush.msra.mxu0 %v807
  %1717 = vmatpush.msra.mxu0 %v803
  %1718 = vmatpush.msra.mxu0 %v799
  %1719 = vmatpush.msra.mxu0 %v795
  %1720 = vmatpush.msra.mxu0 %v791
  %1721 = vmatpush.msra.mxu0 %v787
  %1722 = vmatpush.msra.mxu0 %v783
  %1723 = vmatmul.f32.gmra.mxu0 %v1649
  %v1724 = vpop.f32.mrf.mxu0
  %v1725 = vadd.f32 0.0, %v1724
  %1726 = vdwg.mxu0
  %1727 = vmatpush.msra.mxu0 %v907
  %1728 = vmatpush.msra.mxu0 %v903
  %1729 = vmatpush.msra.mxu0 %v899
  %1730 = vmatpush.msra.mxu0 %v895
  %1731 = vmatpush.msra.mxu0 %v891
  %1732 = vmatpush.msra.mxu0 %v887
  %1733 = vmatpush.msra.mxu0 %v883
  %1734 = vmatpush.msra.mxu0 %v879
  %1735 = vmatpush.msra.mxu0 %v875
  %1736 = vmatpush.msra.mxu0 %v871
  %1737 = vmatpush.msra.mxu0 %v867
  %1738 = vmatpush.msra.mxu0 %v863
  %1739 = vmatpush.msra.mxu0 %v859
  %1740 = vmatpush.msra.mxu0 %v855
  %1741 = vmatpush.msra.mxu0 %v851
  %1742 = vmatpush.msra.mxu0 %v847
  %1743 = vmatmul.f32.gmra.mxu0 %v1650
  %v1744 = vpop.f32.mrf.mxu0
  %v1745 = vadd.f32 %v1725, %v1744
  %1746 = vdwg.mxu0
  %1747 = vmatpush.msra.mxu0 %v971
  %1748 = vmatpush.msra.mxu0 %v967
  %1749 = vmatpush.msra.mxu0 %v963
  %1750 = vmatpush.msra.mxu0 %v959
  %1751 = vmatpush.msra.mxu0 %v955
  %1752 = vmatpush.msra.mxu0 %v951
  %1753 = vmatpush.msra.mxu0 %v947
  %1754 = vmatpush.msra.mxu0 %v943
  %1755 = vmatpush.msra.mxu0 %v939
  %1756 = vmatpush.msra.mxu0 %v935
  %1757 = vmatpush.msra.mxu0 %v931
  %1758 = vmatpush.msra.mxu0 %v927
  %1759 = vmatpush.msra.mxu0 %v923
  %1760 = vmatpush.msra.mxu0 %v919
  %1761 = vmatpush.msra.mxu0 %v915
  %1762 = vmatpush.msra.mxu0 %v911
  %1763 = vmatmul.f32.gmra.mxu0 %v1705
  %v1764 = vpop.f32.mrf.mxu0
  %v1765 = vadd.f32 %v1745, %v1764
  %1766 = vdwg.mxu0
  %1767 = vmatpush.msra.mxu0 %v844
  %1768 = vmatpush.msra.mxu0 %v840
  %1769 = vmatpush.msra.mxu0 %v836
  %1770 = vmatpush.msra.mxu0 %v832
  %1771 = vmatpush.msra.mxu0 %v828
  %1772 = vmatpush.msra.mxu0 %v824
  %1773 = vmatpush.msra.mxu0 %v820
  %1774 = vmatpush.msra.mxu0 %v816
  %1775 = vmatpush.msra.mxu0 %v812
  %1776 = vmatpush.msra.mxu0 %v808
  %1777 = vmatpush.msra.mxu0 %v804
  %1778 = vmatpush.msra.mxu0 %v800
  %1779 = vmatpush.msra.mxu0 %v796
  %1780 = vmatpush.msra.mxu0 %v792
  %1781 = vmatpush.msra.mxu0 %v788
  %1782 = vmatpush.msra.mxu0 %v784
  %1783 = vmatmul.f32.gmra.mxu0 %v1649
  %v1784 = vpop.f32.mrf.mxu0
  %v1785 = vadd.f32 0.0, %v1784
  %1786 = vdwg.mxu0
  %1787 = vmatpush.msra.mxu0 %v908
  %1788 = vmatpush.msra.mxu0 %v904
  %1789 = vmatpush.msra.mxu0 %v900
  %1790 = vmatpush.msra.mxu0 %v896
  %1791 = vmatpush.msra.mxu0 %v892
  %1792 = vmatpush.msra.mxu0 %v888
  %1793 = vmatpush.msra.mxu0 %v884
  %1794 = vmatpush.msra.mxu0 %v880
  %1795 = vmatpush.msra.mxu0 %v876
  %1796 = vmatpush.msra.mxu0 %v872
  %1797 = vmatpush.msra.mxu0 %v868
  %1798 = vmatpush.msra.mxu0 %v864
  %1799 = vmatpush.msra.mxu0 %v860
  %1800 = vmatpush.msra.mxu0 %v856
  %1801 = vmatpush.msra.mxu0 %v852
  %1802 = vmatpush.msra.mxu0 %v848
  %1803 = vmatmul.f32.gmra.mxu0 %v1650
  %v1804 = vpop.f32.mrf.mxu0
  %v1805 = vadd.f32 %v1785, %v1804
  %1806 = vdwg.mxu0
  %1807 = vmatpush.msra.mxu0 %v972
  %1808 = vmatpush.msra.mxu0 %v968
  %1809 = vmatpush.msra.mxu0 %v964
  %1810 = vmatpush.msra.mxu0 %v960
  %1811 = vmatpush.msra.mxu0 %v956
  %1812 = vmatpush.msra.mxu0 %v952
  %1813 = vmatpush.msra.mxu0 %v948
  %1814 = vmatpush.msra.mxu0 %v944
  %1815 = vmatpush.msra.mxu0 %v940
  %1816 = vmatpush.msra.mxu0 %v936
  %1817 = vmatpush.msra.mxu0 %v932
  %1818 = vmatpush.msra.mxu0 %v928
  %1819 = vmatpush.msra.mxu0 %v924
  %1820 = vmatpush.msra.mxu0 %v920
  %1821 = vmatpush.msra.mxu0 %v916
  %1822 = vmatpush.msra.mxu0 %v912
  %1823 = vmatmul.f32.gmra.mxu0 %v1705
  %v1824 = vpop.f32.mrf.mxu0
  %v1825 = vadd.f32 %v1805, %v1824
  %1826 = vdwg.mxu0
  %1827 = vmatpush.msra.mxu0 %v845
  %1828 = vmatpush.msra.mxu0 %v841
  %1829 = vmatpush.msra.mxu0 %v837
  %1830 = vmatpush.msra.mxu0 %v833
  %1831 = vmatpush.msra.mxu0 %v829
  %1832 = vmatpush.msra.mxu0 %v825
  %1833 = vmatpush.msra.mxu0 %v821
  %1834 = vmatpush.msra.mxu0 %v817
  %1835 = vmatpush.msra.mxu0 %v813
  %1836 = vmatpush.msra.mxu0 %v809
  %1837 = vmatpush.msra.mxu0 %v805
  %1838 = vmatpush.msra.mxu0 %v801
  %1839 = vmatpush.msra.mxu0 %v797
  %1840 = vmatpush.msra.mxu0 %v793
  %1841 = vmatpush.msra.mxu0 %v789
  %1842 = vmatpush.msra.mxu0 %v785
  %1843 = vmatmul.f32.gmra.mxu0 %v1649
  %v1844 = vpop.f32.mrf.mxu0
  %v1845 = vadd.f32 0.0, %v1844
  %1846 = vdwg.mxu0
  %1847 = vmatpush.msra.mxu0 %v909
  %1848 = vmatpush.msra.mxu0 %v905
  %1849 = vmatpush.msra.mxu0 %v901
  %1850 = vmatpush.msra.mxu0 %v897
  %1851 = vmatpush.msra.mxu0 %v893
  %1852 = vmatpush.msra.mxu0 %v889
  %1853 = vmatpush.msra.mxu0 %v885
  %1854 = vmatpush.msra.mxu0 %v881
  %1855 = vmatpush.msra.mxu0 %v877
  %1856 = vmatpush.msra.mxu0 %v873
  %1857 = vmatpush.msra.mxu0 %v869
  %1858 = vmatpush.msra.mxu0 %v865
  %1859 = vmatpush.msra.mxu0 %v861
  %1860 = vmatpush.msra.mxu0 %v857
  %1861 = vmatpush.msra.mxu0 %v853
  %1862 = vmatpush.msra.mxu0 %v849
  %1863 = vmatmul.f32.gmra.mxu0 %v1650
  %v1864 = vpop.f32.mrf.mxu0
  %v1865 = vadd.f32 %v1845, %v1864
  %1866 = vdwg.mxu0
  %1867 = vmatpush.msra.mxu0 %v973
  %1868 = vmatpush.msra.mxu0 %v969
  %1869 = vmatpush.msra.mxu0 %v965
  %1870 = vmatpush.msra.mxu0 %v961
  %1871 = vmatpush.msra.mxu0 %v957
  %1872 = vmatpush.msra.mxu0 %v953
  %1873 = vmatpush.msra.mxu0 %v949
  %1874 = vmatpush.msra.mxu0 %v945
  %1875 = vmatpush.msra.mxu0 %v941
  %1876 = vmatpush.msra.mxu0 %v937
  %1877 = vmatpush.msra.mxu0 %v933
  %1878 = vmatpush.msra.mxu0 %v929
  %1879 = vmatpush.msra.mxu0 %v925
  %1880 = vmatpush.msra.mxu0 %v921
  %1881 = vmatpush.msra.mxu0 %v917
  %1882 = vmatpush.msra.mxu0 %v913
  %1883 = vmatmul.f32.gmra.mxu0 %v1705
  %v1884 = vpop.f32.mrf.mxu0
  %v1885 = vadd.f32 %v1865, %v1884
  %1886 = vdwg.mxu0
  %1887 = vmatpush.msra.mxu0 %v846
  %1888 = vmatpush.msra.mxu0 %v842
  %1889 = vmatpush.msra.mxu0 %v838
  %1890 = vmatpush.msra.mxu0 %v834
  %1891 = vmatpush.msra.mxu0 %v830
  %1892 = vmatpush.msra.mxu0 %v826
  %1893 = vmatpush.msra.mxu0 %v822
  %1894 = vmatpush.msra.mxu0 %v818
  %1895 = vmatpush.msra.mxu0 %v814
  %1896 = vmatpush.msra.mxu0 %v810
  %1897 = vmatpush.msra.mxu0 %v806
  %1898 = vmatpush.msra.mxu0 %v802
  %1899 = vmatpush.msra.mxu0 %v798
  %1900 = vmatpush.msra.mxu0 %v794
  %1901 = vmatpush.msra.mxu0 %v790
  %1902 = vmatpush.msra.mxu0 %v786
  %1903 = vmatmul.f32.gmra.mxu0 %v1649
  %v1904 = vpop.f32.mrf.mxu0
  %v1905 = vadd.f32 0.0, %v1904
  %1906 = vdwg.mxu0
  %1907 = vmatpush.msra.mxu0 %v910
  %1908 = vmatpush.msra.mxu0 %v906
  %1909 = vmatpush.msra.mxu0 %v902
  %1910 = vmatpush.msra.mxu0 %v898
  %1911 = vmatpush.msra.mxu0 %v894
  %1912 = vmatpush.msra.mxu0 %v890
  %1913 = vmatpush.msra.mxu0 %v886
  %1914 = vmatpush.msra.mxu0 %v882
  %1915 = vmatpush.msra.mxu0 %v878
  %1916 = vmatpush.msra.mxu0 %v874
  %1917 = vmatpush.msra.mxu0 %v870
  %1918 = vmatpush.msra.mxu0 %v866
  %1919 = vmatpush.msra.mxu0 %v862
  %1920 = vmatpush.msra.mxu0 %v858
  %1921 = vmatpush.msra.mxu0 %v854
  %1922 = vmatpush.msra.mxu0 %v850
  %1923 = vmatmul.f32.gmra.mxu0 %v1650
  %v1924 = vpop.f32.mrf.mxu0
  %v1925 = vadd.f32 %v1905, %v1924
  %1926 = vdwg.mxu0
  %1927 = vmatpush.msra.mxu0 %v974
  %1928 = vmatpush.msra.mxu0 %v970
  %1929 = vmatpush.msra.mxu0 %v966
  %1930 = vmatpush.msra.mxu0 %v962
  %1931 = vmatpush.msra.mxu0 %v958
  %1932 = vmatpush.msra.mxu0 %v954
  %1933 = vmatpush.msra.mxu0 %v950
  %1934 = vmatpush.msra.mxu0 %v946
  %1935 = vmatpush.msra.mxu0 %v942
  %1936 = vmatpush.msra.mxu0 %v938
  %1937 = vmatpush.msra.mxu0 %v934
  %1938 = vmatpush.msra.mxu0 %v930
  %1939 = vmatpush.msra.mxu0 %v926
  %1940 = vmatpush.msra.mxu0 %v922
  %1941 = vmatpush.msra.mxu0 %v918
  %1942 = vmatpush.msra.mxu0 %v914
  %1943 = vmatmul.f32.gmra.mxu0 %v1705
  %v1944 = vpop.f32.mrf.mxu0
  %v1945 = vadd.f32 %v1925, %v1944
  %1946 = vdwg.mxu0
  %v1947 = vadd.f32 %v1482, %v1765
  %v1948 = vadd.f32 %v1502, %v1825
  %v1949 = vadd.f32 %v1522, %v1885
  %v1950 = vadd.f32 %v1542, %v1945
  %v1951 = vadd.f32 %v1947, %v1389
  %v1952 = vadd.f32 %v1948, %v1390
  %v1953 = vadd.f32 %v1949, %v1391
  %v1954 = vadd.f32 %v1950, %v1392
  %v1955 = vxor.u32 %v1951, 2147483648
  %v1956 = vxor.u32 %v1952, 2147483648
  %v1957 = vxor.u32 %v1953, 2147483648
  %v1958 = vmul.f32 %v1955, 1.442695
  %v1959 = vpow.pop %v1958
  %v1960 = vmul.f32 %v1956, 1.442695
  %v1961 = vpow.pop %v1960
  %v1962 = vmul.f32 %v1957, 1.442695
  %v1963 = vpow.pop %v1962
  %v1964 = vadd.f32 %v1959, 1.0
  %v1965 = vadd.f32 %v1961, 1.0
  %v1966 = vadd.f32 %v1963, 1.0
  %v1967 = vrcp.pop %v1964
  %v1968 = vmul.f32 %v1964, %v1967
  %v1969 = vsub.f32 1.0, %v1968
  %v1970 = vmul.f32 %v1967, %v1969
  %v1971 = vadd.f32 %v1967, %v1970
  %vm1972 = vweird.f32 %v1964
  %vm1973 = vweird.f32 %v1967
  %vm1974 = vmor %vm1972, %vm1973
  %v1975 = vsel %vm1974, %v1967, %v1971
  %v1976 = vand.u32 2147483647, %v1964
  %vm1977 = vcmp.eq.f32.partialorder %v1976, 8.507059e+37
  %v1978 = vand.u32 %v1964, 2147483648
  %v1979 = vor.u32 1.1754944e-38, %v1978
  %v1980 = vsel %vm1977, %v1979, %v1975
  %v1981 = vmul.f32 1.0, %v1980
  %v1982 = vrcp.pop %v1965
  %v1983 = vmul.f32 %v1965, %v1982
  %v1984 = vsub.f32 1.0, %v1983
  %v1985 = vmul.f32 %v1982, %v1984
  %v1986 = vadd.f32 %v1982, %v1985
  %vm1987 = vweird.f32 %v1965
  %vm1988 = vweird.f32 %v1982
  %vm1989 = vmor %vm1987, %vm1988
  %v1990 = vsel %vm1989, %v1982, %v1986
  %v1991 = vand.u32 2147483647, %v1965
  %vm1992 = vcmp.eq.f32.partialorder %v1991, 8.507059e+37
  %v1993 = vand.u32 %v1965, 2147483648
  %v1994 = vor.u32 1.1754944e-38, %v1993
  %v1995 = vsel %vm1992, %v1994, %v1990
  %v1996 = vmul.f32 1.0, %v1995
  %v1997 = vrcp.pop %v1966
  %v1998 = vmul.f32 %v1966, %v1997
  %v1999 = vsub.f32 1.0, %v1998
  %v2000 = vmul.f32 %v1997, %v1999
  %v2001 = vadd.f32 %v1997, %v2000
  %vm2002 = vweird.f32 %v1966
  %vm2003 = vweird.f32 %v1997
  %vm2004 = vmor %vm2002, %vm2003
  %v2005 = vsel %vm2004, %v1997, %v2001
  %v2006 = vand.u32 2147483647, %v1966
  %vm2007 = vcmp.eq.f32.partialorder %v2006, 8.507059e+37
  %v2008 = vand.u32 %v1966, 2147483648
  %v2009 = vor.u32 1.1754944e-38, %v2008
  %v2010 = vsel %vm2007, %v2009, %v2005
  %v2011 = vmul.f32 1.0, %v2010
  %v2012 = vtanh.pop %v1954
  %v2013 = vmul.f32 %v1996, %v1461
  %v2014 = vmul.f32 %v1981, %v2012
  %v2015 = vadd.f32 %v2013, %v2014
  %v2016 = vtanh.pop %v2015
  %v2017 = vmul.f32 %v2011, %v2016
  %2018 = vmatpush.msra.mxu0 %v680
  %2019 = vmatpush.msra.mxu0 %v673
  %2020 = vmatpush.msra.mxu0 %v666
  %2021 = vmatpush.msra.mxu0 %v659
  %2022 = vmatpush.msra.mxu0 %v652
  %2023 = vmatpush.msra.mxu0 %v645
  %2024 = vmatpush.msra.mxu0 %v638
  %2025 = vmatpush.msra.mxu0 %v631
  %2026 = vmatpush.msra.mxu0 %v624
  %2027 = vmatpush.msra.mxu0 %v617
  %2028 = vmatpush.msra.mxu0 %v610
  %2029 = vmatpush.msra.mxu0 %v603
  %2030 = vmatpush.msra.mxu0 %v596
  %2031 = vmatpush.msra.mxu0 %v589
  %2032 = vmatpush.msra.mxu0 %v582
  %2033 = vmatpush.msra.mxu0 %v575
  %2034 = vmatmul.f32.gmra.mxu0 %v2017
  %v2035 = vpop.f32.mrf.mxu0
  %v2036 = vadd.f32 0.0, %v2035
  %2037 = vdwg.mxu0
  %2038 = vmatpush.msra.mxu0 %v681
  %2039 = vmatpush.msra.mxu0 %v674
  %2040 = vmatpush.msra.mxu0 %v667
  %2041 = vmatpush.msra.mxu0 %v660
  %2042 = vmatpush.msra.mxu0 %v653
  %2043 = vmatpush.msra.mxu0 %v646
  %2044 = vmatpush.msra.mxu0 %v639
  %2045 = vmatpush.msra.mxu0 %v632
  %2046 = vmatpush.msra.mxu0 %v625
  %2047 = vmatpush.msra.mxu0 %v618
  %2048 = vmatpush.msra.mxu0 %v611
  %2049 = vmatpush.msra.mxu0 %v604
  %2050 = vmatpush.msra.mxu0 %v597
  %2051 = vmatpush.msra.mxu0 %v590
  %2052 = vmatpush.msra.mxu0 %v583
  %2053 = vmatpush.msra.mxu0 %v576
  %2054 = vmatmul.f32.gmra.mxu0 %v2017
  %v2055 = vpop.f32.mrf.mxu0
  %v2056 = vadd.f32 0.0, %v2055
  %2057 = vdwg.mxu0
  %2058 = vmatpush.msra.mxu0 %v682
  %2059 = vmatpush.msra.mxu0 %v675
  %2060 = vmatpush.msra.mxu0 %v668
  %2061 = vmatpush.msra.mxu0 %v661
  %2062 = vmatpush.msra.mxu0 %v654
  %2063 = vmatpush.msra.mxu0 %v647
  %2064 = vmatpush.msra.mxu0 %v640
  %2065 = vmatpush.msra.mxu0 %v633
  %2066 = vmatpush.msra.mxu0 %v626
  %2067 = vmatpush.msra.mxu0 %v619
  %2068 = vmatpush.msra.mxu0 %v612
  %2069 = vmatpush.msra.mxu0 %v605
  %2070 = vmatpush.msra.mxu0 %v598
  %2071 = vmatpush.msra.mxu0 %v591
  %2072 = vmatpush.msra.mxu0 %v584
  %2073 = vmatpush.msra.mxu0 %v577
  %2074 = vmatmul.f32.gmra.mxu0 %v2017
  %v2075 = vpop.f32.mrf.mxu0
  %v2076 = vadd.f32 0.0, %v2075
  %2077 = vdwg.mxu0
  %2078 = vmatpush.msra.mxu0 %v683
  %2079 = vmatpush.msra.mxu0 %v676
  %2080 = vmatpush.msra.mxu0 %v669
  %2081 = vmatpush.msra.mxu0 %v662
  %2082 = vmatpush.msra.mxu0 %v655
  %2083 = vmatpush.msra.mxu0 %v648
  %2084 = vmatpush.msra.mxu0 %v641
  %2085 = vmatpush.msra.mxu0 %v634
  %2086 = vmatpush.msra.mxu0 %v627
  %2087 = vmatpush.msra.mxu0 %v620
  %2088 = vmatpush.msra.mxu0 %v613
  %2089 = vmatpush.msra.mxu0 %v606
  %2090 = vmatpush.msra.mxu0 %v599
  %2091 = vmatpush.msra.mxu0 %v592
  %2092 = vmatpush.msra.mxu0 %v585
  %2093 = vmatpush.msra.mxu0 %v578
  %2094 = vmatmul.f32.gmra.mxu0 %v2017
  %v2095 = vpop.f32.mrf.mxu0
  %v2096 = vadd.f32 0.0, %v2095
  %2097 = vdwg.mxu0
  %2098 = vmatpush.msra.mxu0 %v684
  %2099 = vmatpush.msra.mxu0 %v677
  %2100 = vmatpush.msra.mxu0 %v670
  %2101 = vmatpush.msra.mxu0 %v663
  %2102 = vmatpush.msra.mxu0 %v656
  %2103 = vmatpush.msra.mxu0 %v649
  %2104 = vmatpush.msra.mxu0 %v642
  %2105 = vmatpush.msra.mxu0 %v635
  %2106 = vmatpush.msra.mxu0 %v628
  %2107 = vmatpush.msra.mxu0 %v621
  %2108 = vmatpush.msra.mxu0 %v614
  %2109 = vmatpush.msra.mxu0 %v607
  %2110 = vmatpush.msra.mxu0 %v600
  %2111 = vmatpush.msra.mxu0 %v593
  %2112 = vmatpush.msra.mxu0 %v586
  %2113 = vmatpush.msra.mxu0 %v579
  %2114 = vmatmul.f32.gmra.mxu0 %v2017
  %v2115 = vpop.f32.mrf.mxu0
  %v2116 = vadd.f32 0.0, %v2115
  %2117 = vdwg.mxu0
  %2118 = vmatpush.msra.mxu0 %v685
  %2119 = vmatpush.msra.mxu0 %v678
  %2120 = vmatpush.msra.mxu0 %v671
  %2121 = vmatpush.msra.mxu0 %v664
  %2122 = vmatpush.msra.mxu0 %v657
  %2123 = vmatpush.msra.mxu0 %v650
  %2124 = vmatpush.msra.mxu0 %v643
  %2125 = vmatpush.msra.mxu0 %v636
  %2126 = vmatpush.msra.mxu0 %v629
  %2127 = vmatpush.msra.mxu0 %v622
  %2128 = vmatpush.msra.mxu0 %v615
  %2129 = vmatpush.msra.mxu0 %v608
  %2130 = vmatpush.msra.mxu0 %v601
  %2131 = vmatpush.msra.mxu0 %v594
  %2132 = vmatpush.msra.mxu0 %v587
  %2133 = vmatpush.msra.mxu0 %v580
  %2134 = vmatmul.f32.gmra.mxu0 %v2017
  %v2135 = vpop.f32.mrf.mxu0
  %v2136 = vadd.f32 0.0, %v2135
  %2137 = vdwg.mxu0
  %2138 = vmatpush.msra.mxu0 %v686
  %2139 = vmatpush.msra.mxu0 %v679
  %2140 = vmatpush.msra.mxu0 %v672
  %2141 = vmatpush.msra.mxu0 %v665
  %2142 = vmatpush.msra.mxu0 %v658
  %2143 = vmatpush.msra.mxu0 %v651
  %2144 = vmatpush.msra.mxu0 %v644
  %2145 = vmatpush.msra.mxu0 %v637
  %2146 = vmatpush.msra.mxu0 %v630
  %2147 = vmatpush.msra.mxu0 %v623
  %2148 = vmatpush.msra.mxu0 %v616
  %2149 = vmatpush.msra.mxu0 %v609
  %2150 = vmatpush.msra.mxu0 %v602
  %2151 = vmatpush.msra.mxu0 %v595
  %2152 = vmatpush.msra.mxu0 %v588
  %2153 = vmatpush.msra.mxu0 %v581
  %2154 = vmatmul.f32.gmra.mxu0 %v2017
  %v2155 = vpop.f32.mrf.mxu0
  %v2156 = vadd.f32 0.0, %v2155
  %2157 = vdwg.mxu0
  %v2158 = vadd.f32 %v2136, %v1605
  %v2159 = vadd.f32 %v2156, %v1606
  %v2162 = vrot.slane %v2159, 6
  %v2163 = vsel %vm1614, %v2158, %v2162
  %s2165 = scalar_lea.vmem %s15, 4
  %2166 = vst [vmem:[%s2165] sm:$0xf] %v2163
  %v2167 = vsel %vm1614, %v2158, -inf
  %v2168 = vsel %vm1614, %v2159, -inf
  %v2169 = vmax.f32 %v2167, %v2168
  %2170 = vmax.xlane.f32.xlu0 %v2169
  %v2171 = vpop.xlane.xlu0 %2170
  %vm2172 = vcmp.ge.f32.partialorder %v2158, %v2171
  %vm2173 = vcmp.ge.f32.partialorder %v2159, %v2171
  %v2174 = vsel %vm2172, %v979, 256
  %v2175 = vsel %vm2173, %v980, 256
  %v2176 = vsel %vm1614, %v2174, 2147483647
  %v2177 = vsel %vm1614, %v2175, 2147483647
  %vm2178 = vcmp.lt.s32.totalorder %v2176, %v2177
  %v2179 = vsel %vm2178, %v2176, %v2177
  %v2180 = vand.u32 %v2179, 65535
  %v2181 = vshra.s32 %v2179, 16
  %v2182 = vcvt.s32.f32 %v2180
  %v2183 = vcvt.s32.f32 %v2181
  %2184 = vmin.xlane.f32.xlu0 %v2183
  %v2185 = vpop.xlane.xlu0 %2184
  %vm2186 = vcmp.eq.f32.partialorder %v2183, %v2185
  %v2187 = vsel %vm2186, %v2182, inf
  %2188 = vmin.xlane.f32.xlu0 %v2187
  %v2189 = vpop.xlane.xlu0 %2188
  %v2190 = vcvt.f32.s32 %v2189
  %v2191 = vcvt.f32.s32 %v2185
  %v2192 = vshll.u32 %v2191, 16
  %v2193 = vadd.s32 %v2192, %v2190
  %vm2194 = vcmp.eq.s32.totalorder %v979, %v2193
  %vm2195 = vcmp.eq.s32.totalorder %v980, %v2193
  %v2196 = vsel %vm2194, 1, 0
  %v2197 = vsel %vm2195, 1, 0
  %v2198 = vcvt.s32.f32 %v2196
  %v2199 = vcvt.s32.f32 %v2197
  %2200 = vmatpush.xpose.msra.mxu0 0.0
  %2201 = vmatpush.xpose.msra.mxu0 0.0
  %2202 = vmatpush.xpose.msra.mxu0 0.0
  %2203 = vmatpush.xpose.msra.mxu0 0.0
  %2204 = vmatpush.xpose.msra.mxu0 0.0
  %2205 = vmatpush.xpose.msra.mxu0 0.0
  %2206 = vmatpush.xpose.msra.mxu0 0.0
  %2207 = vmatpush.xpose.msra.mxu0 0.0
  %2208 = vmatpush.xpose.msra.mxu0 0.0
  %2209 = vmatpush.xpose.msra.mxu0 0.0
  %2210 = vmatpush.xpose.msra.mxu0 0.0
  %2211 = vmatpush.xpose.msra.mxu0 0.0
  %2212 = vmatpush.xpose.msra.mxu0 0.0
  %2213 = vmatpush.xpose.msra.mxu0 0.0
  %2214 = vmatpush.xpose.msra.mxu0 %v367
  %2215 = vmatpush.xpose.msra.mxu0 %v364
  %2216 = vmatmul.f32.gmra.mxu0 %v2116
  %v2217 = vpop.f32.mrf.mxu0
  %v2218 = vadd.f32 0.0, %v2217
  %2219 = vdwg.mxu0
  %v2220 = vmul.f32 %v2218, 0.088388346
  %v2221 = vadd.f32 %v2220, %v977
  %v2222 = vsel %vm1109, %v2221, -inf
  %2223 = vmax.xlane.f32.xlu0 %v2222
  %v2224 = vpop.xlane.xlu0 %2223
  %v2225 = vsub.f32 %v2221, %v2224
  %v2226 = vmul.f32 %v2225, 1.442695
  %v2227 = vpow.pop %v2226
  %v2228 = vsel %vm1109, %v2227, 0.0
  %2229 = vadd.xlane.f32.xlu0 %v2228
  %v2230 = vpop.xlane.xlu0 %2229
  %v2231 = vrcp.pop %v2230
  %v2232 = vmul.f32 %v2227, %v2231
  %v2234 = vsel %vm393, %v2232, 0
  %2236 = vmatpush.msra.mxu0 0.0
  %2237 = vmatpush.msra.mxu0 0.0
  %2238 = vmatpush.msra.mxu0 0.0
  %2239 = vmatpush.msra.mxu0 0.0
  %2240 = vmatpush.msra.mxu0 0.0
  %2241 = vmatpush.msra.mxu0 0.0
  %2242 = vmatpush.msra.mxu0 0.0
  %2243 = vmatpush.msra.mxu0 0.0
  %2244 = vmatpush.msra.mxu0 0.0
  %2245 = vmatpush.msra.mxu0 0.0
  %2246 = vmatpush.msra.mxu0 0.0
  %2247 = vmatpush.msra.mxu0 0.0
  %2248 = vmatpush.msra.mxu0 0.0
  %2249 = vmatpush.msra.mxu0 0.0
  %2250 = vmatpush.msra.mxu0 %v390
  %2251 = vmatpush.msra.mxu0 %v387
  %2252 = vmatmul.f32.gmra.mxu0 %v2234
  %v2253 = vpop.f32.mrf.mxu0
  %v2254 = vadd.f32 0.0, %v2253
  %2255 = vdwg.mxu0
  %2256 = vmatpush.msra.mxu0 %v843
  %2257 = vmatpush.msra.mxu0 %v839
  %2258 = vmatpush.msra.mxu0 %v835
  %2259 = vmatpush.msra.mxu0 %v831
  %2260 = vmatpush.msra.mxu0 %v827
  %2261 = vmatpush.msra.mxu0 %v823
  %2262 = vmatpush.msra.mxu0 %v819
  %2263 = vmatpush.msra.mxu0 %v815
  %2264 = vmatpush.msra.mxu0 %v811
  %2265 = vmatpush.msra.mxu0 %v807
  %2266 = vmatpush.msra.mxu0 %v803
  %2267 = vmatpush.msra.mxu0 %v799
  %2268 = vmatpush.msra.mxu0 %v795
  %2269 = vmatpush.msra.mxu0 %v791
  %2270 = vmatpush.msra.mxu0 %v787
  %2271 = vmatpush.msra.mxu0 %v783
  %2272 = vmatmul.f32.gmra.mxu0 %v2198
  %v2273 = vpop.f32.mrf.mxu0
  %v2274 = vadd.f32 0.0, %v2273
  %2275 = vdwg.mxu0
  %2276 = vmatpush.msra.mxu0 %v907
  %2277 = vmatpush.msra.mxu0 %v903
  %2278 = vmatpush.msra.mxu0 %v899
  %2279 = vmatpush.msra.mxu0 %v895
  %2280 = vmatpush.msra.mxu0 %v891
  %2281 = vmatpush.msra.mxu0 %v887
  %2282 = vmatpush.msra.mxu0 %v883
  %2283 = vmatpush.msra.mxu0 %v879
  %2284 = vmatpush.msra.mxu0 %v875
  %2285 = vmatpush.msra.mxu0 %v871
  %2286 = vmatpush.msra.mxu0 %v867
  %2287 = vmatpush.msra.mxu0 %v863
  %2288 = vmatpush.msra.mxu0 %v859
  %2289 = vmatpush.msra.mxu0 %v855
  %2290 = vmatpush.msra.mxu0 %v851
  %2291 = vmatpush.msra.mxu0 %v847
  %2292 = vmatmul.f32.gmra.mxu0 %v2199
  %v2293 = vpop.f32.mrf.mxu0
  %v2294 = vadd.f32 %v2274, %v2293
  %2295 = vdwg.mxu0
  %2296 = vmatpush.msra.mxu0 %v971
  %2297 = vmatpush.msra.mxu0 %v967
  %2298 = vmatpush.msra.mxu0 %v963
  %2299 = vmatpush.msra.mxu0 %v959
  %2300 = vmatpush.msra.mxu0 %v955
  %2301 = vmatpush.msra.mxu0 %v951
  %2302 = vmatpush.msra.mxu0 %v947
  %2303 = vmatpush.msra.mxu0 %v943
  %2304 = vmatpush.msra.mxu0 %v939
  %2305 = vmatpush.msra.mxu0 %v935
  %2306 = vmatpush.msra.mxu0 %v931
  %2307 = vmatpush.msra.mxu0 %v927
  %2308 = vmatpush.msra.mxu0 %v923
  %2309 = vmatpush.msra.mxu0 %v919
  %2310 = vmatpush.msra.mxu0 %v915
  %2311 = vmatpush.msra.mxu0 %v911
  %2312 = vmatmul.f32.gmra.mxu0 %v2254
  %v2313 = vpop.f32.mrf.mxu0
  %v2314 = vadd.f32 %v2294, %v2313
  %2315 = vdwg.mxu0
  %2316 = vmatpush.msra.mxu0 %v844
  %2317 = vmatpush.msra.mxu0 %v840
  %2318 = vmatpush.msra.mxu0 %v836
  %2319 = vmatpush.msra.mxu0 %v832
  %2320 = vmatpush.msra.mxu0 %v828
  %2321 = vmatpush.msra.mxu0 %v824
  %2322 = vmatpush.msra.mxu0 %v820
  %2323 = vmatpush.msra.mxu0 %v816
  %2324 = vmatpush.msra.mxu0 %v812
  %2325 = vmatpush.msra.mxu0 %v808
  %2326 = vmatpush.msra.mxu0 %v804
  %2327 = vmatpush.msra.mxu0 %v800
  %2328 = vmatpush.msra.mxu0 %v796
  %2329 = vmatpush.msra.mxu0 %v792
  %2330 = vmatpush.msra.mxu0 %v788
  %2331 = vmatpush.msra.mxu0 %v784
  %2332 = vmatmul.f32.gmra.mxu0 %v2198
  %v2333 = vpop.f32.mrf.mxu0
  %v2334 = vadd.f32 0.0, %v2333
  %2335 = vdwg.mxu0
  %2336 = vmatpush.msra.mxu0 %v908
  %2337 = vmatpush.msra.mxu0 %v904
  %2338 = vmatpush.msra.mxu0 %v900
  %2339 = vmatpush.msra.mxu0 %v896
  %2340 = vmatpush.msra.mxu0 %v892
  %2341 = vmatpush.msra.mxu0 %v888
  %2342 = vmatpush.msra.mxu0 %v884
  %2343 = vmatpush.msra.mxu0 %v880
  %2344 = vmatpush.msra.mxu0 %v876
  %2345 = vmatpush.msra.mxu0 %v872
  %2346 = vmatpush.msra.mxu0 %v868
  %2347 = vmatpush.msra.mxu0 %v864
  %2348 = vmatpush.msra.mxu0 %v860
  %2349 = vmatpush.msra.mxu0 %v856
  %2350 = vmatpush.msra.mxu0 %v852
  %2351 = vmatpush.msra.mxu0 %v848
  %2352 = vmatmul.f32.gmra.mxu0 %v2199
  %v2353 = vpop.f32.mrf.mxu0
  %v2354 = vadd.f32 %v2334, %v2353
  %2355 = vdwg.mxu0
  %2356 = vmatpush.msra.mxu0 %v972
  %2357 = vmatpush.msra.mxu0 %v968
  %2358 = vmatpush.msra.mxu0 %v964
  %2359 = vmatpush.msra.mxu0 %v960
  %2360 = vmatpush.msra.mxu0 %v956
  %2361 = vmatpush.msra.mxu0 %v952
  %2362 = vmatpush.msra.mxu0 %v948
  %2363 = vmatpush.msra.mxu0 %v944
  %2364 = vmatpush.msra.mxu0 %v940
  %2365 = vmatpush.msra.mxu0 %v936
  %2366 = vmatpush.msra.mxu0 %v932
  %2367 = vmatpush.msra.mxu0 %v928
  %2368 = vmatpush.msra.mxu0 %v924
  %2369 = vmatpush.msra.mxu0 %v920
  %2370 = vmatpush.msra.mxu0 %v916
  %2371 = vmatpush.msra.mxu0 %v912
  %2372 = vmatmul.f32.gmra.mxu0 %v2254
  %v2373 = vpop.f32.mrf.mxu0
  %v2374 = vadd.f32 %v2354, %v2373
  %2375 = vdwg.mxu0
  %2376 = vmatpush.msra.mxu0 %v845
  %2377 = vmatpush.msra.mxu0 %v841
  %2378 = vmatpush.msra.mxu0 %v837
  %2379 = vmatpush.msra.mxu0 %v833
  %2380 = vmatpush.msra.mxu0 %v829
  %2381 = vmatpush.msra.mxu0 %v825
  %2382 = vmatpush.msra.mxu0 %v821
  %2383 = vmatpush.msra.mxu0 %v817
  %2384 = vmatpush.msra.mxu0 %v813
  %2385 = vmatpush.msra.mxu0 %v809
  %2386 = vmatpush.msra.mxu0 %v805
  %2387 = vmatpush.msra.mxu0 %v801
  %2388 = vmatpush.msra.mxu0 %v797
  %2389 = vmatpush.msra.mxu0 %v793
  %2390 = vmatpush.msra.mxu0 %v789
  %2391 = vmatpush.msra.mxu0 %v785
  %2392 = vmatmul.f32.gmra.mxu0 %v2198
  %v2393 = vpop.f32.mrf.mxu0
  %v2394 = vadd.f32 0.0, %v2393
  %2395 = vdwg.mxu0
  %2396 = vmatpush.msra.mxu0 %v909
  %2397 = vmatpush.msra.mxu0 %v905
  %2398 = vmatpush.msra.mxu0 %v901
  %2399 = vmatpush.msra.mxu0 %v897
  %2400 = vmatpush.msra.mxu0 %v893
  %2401 = vmatpush.msra.mxu0 %v889
  %2402 = vmatpush.msra.mxu0 %v885
  %2403 = vmatpush.msra.mxu0 %v881
  %2404 = vmatpush.msra.mxu0 %v877
  %2405 = vmatpush.msra.mxu0 %v873
  %2406 = vmatpush.msra.mxu0 %v869
  %2407 = vmatpush.msra.mxu0 %v865
  %2408 = vmatpush.msra.mxu0 %v861
  %2409 = vmatpush.msra.mxu0 %v857
  %2410 = vmatpush.msra.mxu0 %v853
  %2411 = vmatpush.msra.mxu0 %v849
  %2412 = vmatmul.f32.gmra.mxu0 %v2199
  %v2413 = vpop.f32.mrf.mxu0
  %v2414 = vadd.f32 %v2394, %v2413
  %2415 = vdwg.mxu0
  %2416 = vmatpush.msra.mxu0 %v973
  %2417 = vmatpush.msra.mxu0 %v969
  %2418 = vmatpush.msra.mxu0 %v965
  %2419 = vmatpush.msra.mxu0 %v961
  %2420 = vmatpush.msra.mxu0 %v957
  %2421 = vmatpush.msra.mxu0 %v953
  %2422 = vmatpush.msra.mxu0 %v949
  %2423 = vmatpush.msra.mxu0 %v945
  %2424 = vmatpush.msra.mxu0 %v941
  %2425 = vmatpush.msra.mxu0 %v937
  %2426 = vmatpush.msra.mxu0 %v933
  %2427 = vmatpush.msra.mxu0 %v929
  %2428 = vmatpush.msra.mxu0 %v925
  %2429 = vmatpush.msra.mxu0 %v921
  %2430 = vmatpush.msra.mxu0 %v917
  %2431 = vmatpush.msra.mxu0 %v913
  %2432 = vmatmul.f32.gmra.mxu0 %v2254
  %v2433 = vpop.f32.mrf.mxu0
  %v2434 = vadd.f32 %v2414, %v2433
  %2435 = vdwg.mxu0
  %2436 = vmatpush.msra.mxu0 %v846
  %2437 = vmatpush.msra.mxu0 %v842
  %2438 = vmatpush.msra.mxu0 %v838
  %2439 = vmatpush.msra.mxu0 %v834
  %2440 = vmatpush.msra.mxu0 %v830
  %2441 = vmatpush.msra.mxu0 %v826
  %2442 = vmatpush.msra.mxu0 %v822
  %2443 = vmatpush.msra.mxu0 %v818
  %2444 = vmatpush.msra.mxu0 %v814
  %2445 = vmatpush.msra.mxu0 %v810
  %2446 = vmatpush.msra.mxu0 %v806
  %2447 = vmatpush.msra.mxu0 %v802
  %2448 = vmatpush.msra.mxu0 %v798
  %2449 = vmatpush.msra.mxu0 %v794
  %2450 = vmatpush.msra.mxu0 %v790
  %2451 = vmatpush.msra.mxu0 %v786
  %2452 = vmatmul.f32.gmra.mxu0 %v2198
  %v2453 = vpop.f32.mrf.mxu0
  %v2454 = vadd.f32 0.0, %v2453
  %2455 = vdwg.mxu0
  %2456 = vmatpush.msra.mxu0 %v910
  %2457 = vmatpush.msra.mxu0 %v906
  %2458 = vmatpush.msra.mxu0 %v902
  %2459 = vmatpush.msra.mxu0 %v898
  %2460 = vmatpush.msra.mxu0 %v894
  %2461 = vmatpush.msra.mxu0 %v890
  %2462 = vmatpush.msra.mxu0 %v886
  %2463 = vmatpush.msra.mxu0 %v882
  %2464 = vmatpush.msra.mxu0 %v878
  %2465 = vmatpush.msra.mxu0 %v874
  %2466 = vmatpush.msra.mxu0 %v870
  %2467 = vmatpush.msra.mxu0 %v866
  %2468 = vmatpush.msra.mxu0 %v862
  %2469 = vmatpush.msra.mxu0 %v858
  %2470 = vmatpush.msra.mxu0 %v854
  %2471 = vmatpush.msra.mxu0 %v850
  %2472 = vmatmul.f32.gmra.mxu0 %v2199
  %v2473 = vpop.f32.mrf.mxu0
  %v2474 = vadd.f32 %v2454, %v2473
  %2475 = vdwg.mxu0
  %2476 = vmatpush.msra.mxu0 %v974
  %2477 = vmatpush.msra.mxu0 %v970
  %2478 = vmatpush.msra.mxu0 %v966
  %2479 = vmatpush.msra.mxu0 %v962
  %2480 = vmatpush.msra.mxu0 %v958
  %2481 = vmatpush.msra.mxu0 %v954
  %2482 = vmatpush.msra.mxu0 %v950
  %2483 = vmatpush.msra.mxu0 %v946
  %2484 = vmatpush.msra.mxu0 %v942
  %2485 = vmatpush.msra.mxu0 %v938
  %2486 = vmatpush.msra.mxu0 %v934
  %2487 = vmatpush.msra.mxu0 %v930
  %2488 = vmatpush.msra.mxu0 %v926
  %2489 = vmatpush.msra.mxu0 %v922
  %2490 = vmatpush.msra.mxu0 %v918
  %2491 = vmatpush.msra.mxu0 %v914
  %2492 = vmatmul.f32.gmra.mxu0 %v2254
  %v2493 = vpop.f32.mrf.mxu0
  %v2494 = vadd.f32 %v2474, %v2493
  %2495 = vdwg.mxu0
  %v2496 = vadd.f32 %v2036, %v2314
  %v2497 = vadd.f32 %v2056, %v2374
  %v2498 = vadd.f32 %v2076, %v2434
  %v2499 = vadd.f32 %v2096, %v2494
  %v2500 = vadd.f32 %v2496, %v1389
  %v2501 = vadd.f32 %v2497, %v1390
  %v2502 = vadd.f32 %v2498, %v1391
  %v2503 = vadd.f32 %v2499, %v1392
  %v2504 = vxor.u32 %v2500, 2147483648
  %v2505 = vxor.u32 %v2501, 2147483648
  %v2506 = vxor.u32 %v2502, 2147483648
  %v2507 = vmul.f32 %v2504, 1.442695
  %v2508 = vpow.pop %v2507
  %v2509 = vmul.f32 %v2505, 1.442695
  %v2510 = vpow.pop %v2509
  %v2511 = vmul.f32 %v2506, 1.442695
  %v2512 = vpow.pop %v2511
  %v2513 = vadd.f32 %v2508, 1.0
  %v2514 = vadd.f32 %v2510, 1.0
  %v2515 = vadd.f32 %v2512, 1.0
  %v2516 = vrcp.pop %v2513
  %v2517 = vmul.f32 %v2513, %v2516
  %v2518 = vsub.f32 1.0, %v2517
  %v2519 = vmul.f32 %v2516, %v2518
  %v2520 = vadd.f32 %v2516, %v2519
  %vm2521 = vweird.f32 %v2513
  %vm2522 = vweird.f32 %v2516
  %vm2523 = vmor %vm2521, %vm2522
  %v2524 = vsel %vm2523, %v2516, %v2520
  %v2525 = vand.u32 2147483647, %v2513
  %vm2526 = vcmp.eq.f32.partialorder %v2525, 8.507059e+37
  %v2527 = vand.u32 %v2513, 2147483648
  %v2528 = vor.u32 1.1754944e-38, %v2527
  %v2529 = vsel %vm2526, %v2528, %v2524
  %v2530 = vmul.f32 1.0, %v2529
  %v2531 = vrcp.pop %v2514
  %v2532 = vmul.f32 %v2514, %v2531
  %v2533 = vsub.f32 1.0, %v2532
  %v2534 = vmul.f32 %v2531, %v2533
  %v2535 = vadd.f32 %v2531, %v2534
  %vm2536 = vweird.f32 %v2514
  %vm2537 = vweird.f32 %v2531
  %vm2538 = vmor %vm2536, %vm2537
  %v2539 = vsel %vm2538, %v2531, %v2535
  %v2540 = vand.u32 2147483647, %v2514
  %vm2541 = vcmp.eq.f32.partialorder %v2540, 8.507059e+37
  %v2542 = vand.u32 %v2514, 2147483648
  %v2543 = vor.u32 1.1754944e-38, %v2542
  %v2544 = vsel %vm2541, %v2543, %v2539
  %v2545 = vmul.f32 1.0, %v2544
  %v2546 = vrcp.pop %v2515
  %v2547 = vmul.f32 %v2515, %v2546
  %v2548 = vsub.f32 1.0, %v2547
  %v2549 = vmul.f32 %v2546, %v2548
  %v2550 = vadd.f32 %v2546, %v2549
  %vm2551 = vweird.f32 %v2515
  %vm2552 = vweird.f32 %v2546
  %vm2553 = vmor %vm2551, %vm2552
  %v2554 = vsel %vm2553, %v2546, %v2550
  %v2555 = vand.u32 2147483647, %v2515
  %vm2556 = vcmp.eq.f32.partialorder %v2555, 8.507059e+37
  %v2557 = vand.u32 %v2515, 2147483648
  %v2558 = vor.u32 1.1754944e-38, %v2557
  %v2559 = vsel %vm2556, %v2558, %v2554
  %v2560 = vmul.f32 1.0, %v2559
  %v2561 = vtanh.pop %v2503
  %v2562 = vmul.f32 %v2545, %v2015
  %v2563 = vmul.f32 %v2530, %v2561
  %v2564 = vadd.f32 %v2562, %v2563
  %v2565 = vtanh.pop %v2564
  %v2566 = vmul.f32 %v2560, %v2565
  %2567 = vmatpush.msra.mxu0 %v680
  %2568 = vmatpush.msra.mxu0 %v673
  %2569 = vmatpush.msra.mxu0 %v666
  %2570 = vmatpush.msra.mxu0 %v659
  %2571 = vmatpush.msra.mxu0 %v652
  %2572 = vmatpush.msra.mxu0 %v645
  %2573 = vmatpush.msra.mxu0 %v638
  %2574 = vmatpush.msra.mxu0 %v631
  %2575 = vmatpush.msra.mxu0 %v624
  %2576 = vmatpush.msra.mxu0 %v617
  %2577 = vmatpush.msra.mxu0 %v610
  %2578 = vmatpush.msra.mxu0 %v603
  %2579 = vmatpush.msra.mxu0 %v596
  %2580 = vmatpush.msra.mxu0 %v589
  %2581 = vmatpush.msra.mxu0 %v582
  %2582 = vmatpush.msra.mxu0 %v575
  %2583 = vmatmul.f32.gmra.mxu0 %v2566
  %v2584 = vpop.f32.mrf.mxu0
  %v2585 = vadd.f32 0.0, %v2584
  %2586 = vdwg.mxu0
  %2587 = vmatpush.msra.mxu0 %v681
  %2588 = vmatpush.msra.mxu0 %v674
  %2589 = vmatpush.msra.mxu0 %v667
  %2590 = vmatpush.msra.mxu0 %v660
  %2591 = vmatpush.msra.mxu0 %v653
  %2592 = vmatpush.msra.mxu0 %v646
  %2593 = vmatpush.msra.mxu0 %v639
  %2594 = vmatpush.msra.mxu0 %v632
  %2595 = vmatpush.msra.mxu0 %v625
  %2596 = vmatpush.msra.mxu0 %v618
  %2597 = vmatpush.msra.mxu0 %v611
  %2598 = vmatpush.msra.mxu0 %v604
  %2599 = vmatpush.msra.mxu0 %v597
  %2600 = vmatpush.msra.mxu0 %v590
  %2601 = vmatpush.msra.mxu0 %v583
  %2602 = vmatpush.msra.mxu0 %v576
  %2603 = vmatmul.f32.gmra.mxu0 %v2566
  %v2604 = vpop.f32.mrf.mxu0
  %v2605 = vadd.f32 0.0, %v2604
  %2606 = vdwg.mxu0
  %2607 = vmatpush.msra.mxu0 %v682
  %2608 = vmatpush.msra.mxu0 %v675
  %2609 = vmatpush.msra.mxu0 %v668
  %2610 = vmatpush.msra.mxu0 %v661
  %2611 = vmatpush.msra.mxu0 %v654
  %2612 = vmatpush.msra.mxu0 %v647
  %2613 = vmatpush.msra.mxu0 %v640
  %2614 = vmatpush.msra.mxu0 %v633
  %2615 = vmatpush.msra.mxu0 %v626
  %2616 = vmatpush.msra.mxu0 %v619
  %2617 = vmatpush.msra.mxu0 %v612
  %2618 = vmatpush.msra.mxu0 %v605
  %2619 = vmatpush.msra.mxu0 %v598
  %2620 = vmatpush.msra.mxu0 %v591
  %2621 = vmatpush.msra.mxu0 %v584
  %2622 = vmatpush.msra.mxu0 %v577
  %2623 = vmatmul.f32.gmra.mxu0 %v2566
  %v2624 = vpop.f32.mrf.mxu0
  %v2625 = vadd.f32 0.0, %v2624
  %2626 = vdwg.mxu0
  %2627 = vmatpush.msra.mxu0 %v683
  %2628 = vmatpush.msra.mxu0 %v676
  %2629 = vmatpush.msra.mxu0 %v669
  %2630 = vmatpush.msra.mxu0 %v662
  %2631 = vmatpush.msra.mxu0 %v655
  %2632 = vmatpush.msra.mxu0 %v648
  %2633 = vmatpush.msra.mxu0 %v641
  %2634 = vmatpush.msra.mxu0 %v634
  %2635 = vmatpush.msra.mxu0 %v627
  %2636 = vmatpush.msra.mxu0 %v620
  %2637 = vmatpush.msra.mxu0 %v613
  %2638 = vmatpush.msra.mxu0 %v606
  %2639 = vmatpush.msra.mxu0 %v599
  %2640 = vmatpush.msra.mxu0 %v592
  %2641 = vmatpush.msra.mxu0 %v585
  %2642 = vmatpush.msra.mxu0 %v578
  %2643 = vmatmul.f32.gmra.mxu0 %v2566
  %v2644 = vpop.f32.mrf.mxu0
  %v2645 = vadd.f32 0.0, %v2644
  %2646 = vdwg.mxu0
  %2647 = vmatpush.msra.mxu0 %v684
  %2648 = vmatpush.msra.mxu0 %v677
  %2649 = vmatpush.msra.mxu0 %v670
  %2650 = vmatpush.msra.mxu0 %v663
  %2651 = vmatpush.msra.mxu0 %v656
  %2652 = vmatpush.msra.mxu0 %v649
  %2653 = vmatpush.msra.mxu0 %v642
  %2654 = vmatpush.msra.mxu0 %v635
  %2655 = vmatpush.msra.mxu0 %v628
  %2656 = vmatpush.msra.mxu0 %v621
  %2657 = vmatpush.msra.mxu0 %v614
  %2658 = vmatpush.msra.mxu0 %v607
  %2659 = vmatpush.msra.mxu0 %v600
  %2660 = vmatpush.msra.mxu0 %v593
  %2661 = vmatpush.msra.mxu0 %v586
  %2662 = vmatpush.msra.mxu0 %v579
  %2663 = vmatmul.f32.gmra.mxu0 %v2566
  %v2664 = vpop.f32.mrf.mxu0
  %v2665 = vadd.f32 0.0, %v2664
  %2666 = vdwg.mxu0
  %2667 = vmatpush.msra.mxu0 %v685
  %2668 = vmatpush.msra.mxu0 %v678
  %2669 = vmatpush.msra.mxu0 %v671
  %2670 = vmatpush.msra.mxu0 %v664
  %2671 = vmatpush.msra.mxu0 %v657
  %2672 = vmatpush.msra.mxu0 %v650
  %2673 = vmatpush.msra.mxu0 %v643
  %2674 = vmatpush.msra.mxu0 %v636
  %2675 = vmatpush.msra.mxu0 %v629
  %2676 = vmatpush.msra.mxu0 %v622
  %2677 = vmatpush.msra.mxu0 %v615
  %2678 = vmatpush.msra.mxu0 %v608
  %2679 = vmatpush.msra.mxu0 %v601
  %2680 = vmatpush.msra.mxu0 %v594
  %2681 = vmatpush.msra.mxu0 %v587
  %2682 = vmatpush.msra.mxu0 %v580
  %2683 = vmatmul.f32.gmra.mxu0 %v2566
  %v2684 = vpop.f32.mrf.mxu0
  %v2685 = vadd.f32 0.0, %v2684
  %2686 = vdwg.mxu0
  %2687 = vmatpush.msra.mxu0 %v686
  %2688 = vmatpush.msra.mxu0 %v679
  %2689 = vmatpush.msra.mxu0 %v672
  %2690 = vmatpush.msra.mxu0 %v665
  %2691 = vmatpush.msra.mxu0 %v658
  %2692 = vmatpush.msra.mxu0 %v651
  %2693 = vmatpush.msra.mxu0 %v644
  %2694 = vmatpush.msra.mxu0 %v637
  %2695 = vmatpush.msra.mxu0 %v630
  %2696 = vmatpush.msra.mxu0 %v623
  %2697 = vmatpush.msra.mxu0 %v616
  %2698 = vmatpush.msra.mxu0 %v609
  %2699 = vmatpush.msra.mxu0 %v602
  %2700 = vmatpush.msra.mxu0 %v595
  %2701 = vmatpush.msra.mxu0 %v588
  %2702 = vmatpush.msra.mxu0 %v581
  %2703 = vmatmul.f32.gmra.mxu0 %v2566
  %v2704 = vpop.f32.mrf.mxu0
  %v2705 = vadd.f32 0.0, %v2704
  %2706 = vdwg.mxu0
  %v2707 = vadd.f32 %v2685, %v1605
  %v2708 = vadd.f32 %v2705, %v1606
  %v2711 = vrot.slane %v2708, 6
  %v2712 = vsel %vm1614, %v2707, %v2711
  %s2714 = scalar_lea.vmem %s15, 8
  %2715 = vst [vmem:[%s2714] sm:$0xf] %v2712
  %v2716 = vsel %vm1614, %v2707, -inf
  %v2717 = vsel %vm1614, %v2708, -inf
  %v2718 = vmax.f32 %v2716, %v2717
  %2719 = vmax.xlane.f32.xlu0 %v2718
  %v2720 = vpop.xlane.xlu0 %2719
  %vm2721 = vcmp.ge.f32.partialorder %v2707, %v2720
  %vm2722 = vcmp.ge.f32.partialorder %v2708, %v2720
  %v2723 = vsel %vm2721, %v979, 256
  %v2724 = vsel %vm2722, %v980, 256
  %v2725 = vsel %vm1614, %v2723, 2147483647
  %v2726 = vsel %vm1614, %v2724, 2147483647
  %vm2727 = vcmp.lt.s32.totalorder %v2725, %v2726
  %v2728 = vsel %vm2727, %v2725, %v2726
  %v2729 = vand.u32 %v2728, 65535
  %v2730 = vshra.s32 %v2728, 16
  %v2731 = vcvt.s32.f32 %v2729
  %v2732 = vcvt.s32.f32 %v2730
  %2733 = vmin.xlane.f32.xlu0 %v2732
  %v2734 = vpop.xlane.xlu0 %2733
  %vm2735 = vcmp.eq.f32.partialorder %v2732, %v2734
  %v2736 = vsel %vm2735, %v2731, inf
  %2737 = vmin.xlane.f32.xlu0 %v2736
  %v2738 = vpop.xlane.xlu0 %2737
  %v2739 = vcvt.f32.s32 %v2738
  %v2740 = vcvt.f32.s32 %v2734
  %v2741 = vshll.u32 %v2740, 16
  %v2742 = vadd.s32 %v2741, %v2739
  %vm2743 = vcmp.eq.s32.totalorder %v979, %v2742
  %vm2744 = vcmp.eq.s32.totalorder %v980, %v2742
  %v2745 = vsel %vm2743, 1, 0
  %v2746 = vsel %vm2744, 1, 0
  %v2747 = vcvt.s32.f32 %v2745
  %v2748 = vcvt.s32.f32 %v2746
  %2749 = vmatpush.xpose.msra.mxu0 0.0
  %2750 = vmatpush.xpose.msra.mxu0 0.0
  %2751 = vmatpush.xpose.msra.mxu0 0.0
  %2752 = vmatpush.xpose.msra.mxu0 0.0
  %2753 = vmatpush.xpose.msra.mxu0 0.0
  %2754 = vmatpush.xpose.msra.mxu0 0.0
  %2755 = vmatpush.xpose.msra.mxu0 0.0
  %2756 = vmatpush.xpose.msra.mxu0 0.0
  %2757 = vmatpush.xpose.msra.mxu0 0.0
  %2758 = vmatpush.xpose.msra.mxu0 0.0
  %2759 = vmatpush.xpose.msra.mxu0 0.0
  %2760 = vmatpush.xpose.msra.mxu0 0.0
  %2761 = vmatpush.xpose.msra.mxu0 0.0
  %2762 = vmatpush.xpose.msra.mxu0 0.0
  %2763 = vmatpush.xpose.msra.mxu0 %v367
  %2764 = vmatpush.xpose.msra.mxu0 %v364
  %2765 = vmatmul.f32.gmra.mxu0 %v2665
  %v2766 = vpop.f32.mrf.mxu0
  %v2767 = vadd.f32 0.0, %v2766
  %2768 = vdwg.mxu0
  %v2769 = vmul.f32 %v2767, 0.088388346
  %v2770 = vadd.f32 %v2769, %v977
  %v2771 = vsel %vm1109, %v2770, -inf
  %2772 = vmax.xlane.f32.xlu0 %v2771
  %v2773 = vpop.xlane.xlu0 %2772
  %v2774 = vsub.f32 %v2770, %v2773
  %v2775 = vmul.f32 %v2774, 1.442695
  %v2776 = vpow.pop %v2775
  %v2777 = vsel %vm1109, %v2776, 0.0
  %2778 = vadd.xlane.f32.xlu0 %v2777
  %v2779 = vpop.xlane.xlu0 %2778
  %v2780 = vrcp.pop %v2779
  %v2781 = vmul.f32 %v2776, %v2780
  %v2783 = vsel %vm393, %v2781, 0
  %2785 = vmatpush.msra.mxu0 0.0
  %2786 = vmatpush.msra.mxu0 0.0
  %2787 = vmatpush.msra.mxu0 0.0
  %2788 = vmatpush.msra.mxu0 0.0
  %2789 = vmatpush.msra.mxu0 0.0
  %2790 = vmatpush.msra.mxu0 0.0
  %2791 = vmatpush.msra.mxu0 0.0
  %2792 = vmatpush.msra.mxu0 0.0
  %2793 = vmatpush.msra.mxu0 0.0
  %2794 = vmatpush.msra.mxu0 0.0
  %2795 = vmatpush.msra.mxu0 0.0
  %2796 = vmatpush.msra.mxu0 0.0
  %2797 = vmatpush.msra.mxu0 0.0
  %2798 = vmatpush.msra.mxu0 0.0
  %2799 = vmatpush.msra.mxu0 %v390
  %2800 = vmatpush.msra.mxu0 %v387
  %2801 = vmatmul.f32.gmra.mxu0 %v2783
  %v2802 = vpop.f32.mrf.mxu0
  %v2803 = vadd.f32 0.0, %v2802
  %2804 = vdwg.mxu0
  %2805 = vmatpush.msra.mxu0 %v843
  %2806 = vmatpush.msra.mxu0 %v839
  %2807 = vmatpush.msra.mxu0 %v835
  %2808 = vmatpush.msra.mxu0 %v831
  %2809 = vmatpush.msra.mxu0 %v827
  %2810 = vmatpush.msra.mxu0 %v823
  %2811 = vmatpush.msra.mxu0 %v819
  %2812 = vmatpush.msra.mxu0 %v815
  %2813 = vmatpush.msra.mxu0 %v811
  %2814 = vmatpush.msra.mxu0 %v807
  %2815 = vmatpush.msra.mxu0 %v803
  %2816 = vmatpush.msra.mxu0 %v799
  %2817 = vmatpush.msra.mxu0 %v795
  %2818 = vmatpush.msra.mxu0 %v791
  %2819 = vmatpush.msra.mxu0 %v787
  %2820 = vmatpush.msra.mxu0 %v783
  %2821 = vmatmul.f32.gmra.mxu0 %v2747
  %v2822 = vpop.f32.mrf.mxu0
  %v2823 = vadd.f32 0.0, %v2822
  %2824 = vdwg.mxu0
  %2825 = vmatpush.msra.mxu0 %v907
  %2826 = vmatpush.msra.mxu0 %v903
  %2827 = vmatpush.msra.mxu0 %v899
  %2828 = vmatpush.msra.mxu0 %v895
  %2829 = vmatpush.msra.mxu0 %v891
  %2830 = vmatpush.msra.mxu0 %v887
  %2831 = vmatpush.msra.mxu0 %v883
  %2832 = vmatpush.msra.mxu0 %v879
  %2833 = vmatpush.msra.mxu0 %v875
  %2834 = vmatpush.msra.mxu0 %v871
  %2835 = vmatpush.msra.mxu0 %v867
  %2836 = vmatpush.msra.mxu0 %v863
  %2837 = vmatpush.msra.mxu0 %v859
  %2838 = vmatpush.msra.mxu0 %v855
  %2839 = vmatpush.msra.mxu0 %v851
  %2840 = vmatpush.msra.mxu0 %v847
  %2841 = vmatmul.f32.gmra.mxu0 %v2748
  %v2842 = vpop.f32.mrf.mxu0
  %v2843 = vadd.f32 %v2823, %v2842
  %2844 = vdwg.mxu0
  %2845 = vmatpush.msra.mxu0 %v971
  %2846 = vmatpush.msra.mxu0 %v967
  %2847 = vmatpush.msra.mxu0 %v963
  %2848 = vmatpush.msra.mxu0 %v959
  %2849 = vmatpush.msra.mxu0 %v955
  %2850 = vmatpush.msra.mxu0 %v951
  %2851 = vmatpush.msra.mxu0 %v947
  %2852 = vmatpush.msra.mxu0 %v943
  %2853 = vmatpush.msra.mxu0 %v939
  %2854 = vmatpush.msra.mxu0 %v935
  %2855 = vmatpush.msra.mxu0 %v931
  %2856 = vmatpush.msra.mxu0 %v927
  %2857 = vmatpush.msra.mxu0 %v923
  %2858 = vmatpush.msra.mxu0 %v919
  %2859 = vmatpush.msra.mxu0 %v915
  %2860 = vmatpush.msra.mxu0 %v911
  %2861 = vmatmul.f32.gmra.mxu0 %v2803
  %v2862 = vpop.f32.mrf.mxu0
  %v2863 = vadd.f32 %v2843, %v2862
  %2864 = vdwg.mxu0
  %2865 = vmatpush.msra.mxu0 %v844
  %2866 = vmatpush.msra.mxu0 %v840
  %2867 = vmatpush.msra.mxu0 %v836
  %2868 = vmatpush.msra.mxu0 %v832
  %2869 = vmatpush.msra.mxu0 %v828
  %2870 = vmatpush.msra.mxu0 %v824
  %2871 = vmatpush.msra.mxu0 %v820
  %2872 = vmatpush.msra.mxu0 %v816
  %2873 = vmatpush.msra.mxu0 %v812
  %2874 = vmatpush.msra.mxu0 %v808
  %2875 = vmatpush.msra.mxu0 %v804
  %2876 = vmatpush.msra.mxu0 %v800
  %2877 = vmatpush.msra.mxu0 %v796
  %2878 = vmatpush.msra.mxu0 %v792
  %2879 = vmatpush.msra.mxu0 %v788
  %2880 = vmatpush.msra.mxu0 %v784
  %2881 = vmatmul.f32.gmra.mxu0 %v2747
  %v2882 = vpop.f32.mrf.mxu0
  %v2883 = vadd.f32 0.0, %v2882
  %2884 = vdwg.mxu0
  %2885 = vmatpush.msra.mxu0 %v908
  %2886 = vmatpush.msra.mxu0 %v904
  %2887 = vmatpush.msra.mxu0 %v900
  %2888 = vmatpush.msra.mxu0 %v896
  %2889 = vmatpush.msra.mxu0 %v892
  %2890 = vmatpush.msra.mxu0 %v888
  %2891 = vmatpush.msra.mxu0 %v884
  %2892 = vmatpush.msra.mxu0 %v880
  %2893 = vmatpush.msra.mxu0 %v876
  %2894 = vmatpush.msra.mxu0 %v872
  %2895 = vmatpush.msra.mxu0 %v868
  %2896 = vmatpush.msra.mxu0 %v864
  %2897 = vmatpush.msra.mxu0 %v860
  %2898 = vmatpush.msra.mxu0 %v856
  %2899 = vmatpush.msra.mxu0 %v852
  %2900 = vmatpush.msra.mxu0 %v848
  %2901 = vmatmul.f32.gmra.mxu0 %v2748
  %v2902 = vpop.f32.mrf.mxu0
  %v2903 = vadd.f32 %v2883, %v2902
  %2904 = vdwg.mxu0
  %2905 = vmatpush.msra.mxu0 %v972
  %2906 = vmatpush.msra.mxu0 %v968
  %2907 = vmatpush.msra.mxu0 %v964
  %2908 = vmatpush.msra.mxu0 %v960
  %2909 = vmatpush.msra.mxu0 %v956
  %2910 = vmatpush.msra.mxu0 %v952
  %2911 = vmatpush.msra.mxu0 %v948
  %2912 = vmatpush.msra.mxu0 %v944
  %2913 = vmatpush.msra.mxu0 %v940
  %2914 = vmatpush.msra.mxu0 %v936
  %2915 = vmatpush.msra.mxu0 %v932
  %2916 = vmatpush.msra.mxu0 %v928
  %2917 = vmatpush.msra.mxu0 %v924
  %2918 = vmatpush.msra.mxu0 %v920
  %2919 = vmatpush.msra.mxu0 %v916
  %2920 = vmatpush.msra.mxu0 %v912
  %2921 = vmatmul.f32.gmra.mxu0 %v2803
  %v2922 = vpop.f32.mrf.mxu0
  %v2923 = vadd.f32 %v2903, %v2922
  %2924 = vdwg.mxu0
  %2925 = vmatpush.msra.mxu0 %v845
  %2926 = vmatpush.msra.mxu0 %v841
  %2927 = vmatpush.msra.mxu0 %v837
  %2928 = vmatpush.msra.mxu0 %v833
  %2929 = vmatpush.msra.mxu0 %v829
  %2930 = vmatpush.msra.mxu0 %v825
  %2931 = vmatpush.msra.mxu0 %v821
  %2932 = vmatpush.msra.mxu0 %v817
  %2933 = vmatpush.msra.mxu0 %v813
  %2934 = vmatpush.msra.mxu0 %v809
  %2935 = vmatpush.msra.mxu0 %v805
  %2936 = vmatpush.msra.mxu0 %v801
  %2937 = vmatpush.msra.mxu0 %v797
  %2938 = vmatpush.msra.mxu0 %v793
  %2939 = vmatpush.msra.mxu0 %v789
  %2940 = vmatpush.msra.mxu0 %v785
  %2941 = vmatmul.f32.gmra.mxu0 %v2747
  %v2942 = vpop.f32.mrf.mxu0
  %v2943 = vadd.f32 0.0, %v2942
  %2944 = vdwg.mxu0
  %2945 = vmatpush.msra.mxu0 %v909
  %2946 = vmatpush.msra.mxu0 %v905
  %2947 = vmatpush.msra.mxu0 %v901
  %2948 = vmatpush.msra.mxu0 %v897
  %2949 = vmatpush.msra.mxu0 %v893
  %2950 = vmatpush.msra.mxu0 %v889
  %2951 = vmatpush.msra.mxu0 %v885
  %2952 = vmatpush.msra.mxu0 %v881
  %2953 = vmatpush.msra.mxu0 %v877
  %2954 = vmatpush.msra.mxu0 %v873
  %2955 = vmatpush.msra.mxu0 %v869
  %2956 = vmatpush.msra.mxu0 %v865
  %2957 = vmatpush.msra.mxu0 %v861
  %2958 = vmatpush.msra.mxu0 %v857
  %2959 = vmatpush.msra.mxu0 %v853
  %2960 = vmatpush.msra.mxu0 %v849
  %2961 = vmatmul.f32.gmra.mxu0 %v2748
  %v2962 = vpop.f32.mrf.mxu0
  %v2963 = vadd.f32 %v2943, %v2962
  %2964 = vdwg.mxu0
  %2965 = vmatpush.msra.mxu0 %v973
  %2966 = vmatpush.msra.mxu0 %v969
  %2967 = vmatpush.msra.mxu0 %v965
  %2968 = vmatpush.msra.mxu0 %v961
  %2969 = vmatpush.msra.mxu0 %v957
  %2970 = vmatpush.msra.mxu0 %v953
  %2971 = vmatpush.msra.mxu0 %v949
  %2972 = vmatpush.msra.mxu0 %v945
  %2973 = vmatpush.msra.mxu0 %v941
  %2974 = vmatpush.msra.mxu0 %v937
  %2975 = vmatpush.msra.mxu0 %v933
  %2976 = vmatpush.msra.mxu0 %v929
  %2977 = vmatpush.msra.mxu0 %v925
  %2978 = vmatpush.msra.mxu0 %v921
  %2979 = vmatpush.msra.mxu0 %v917
  %2980 = vmatpush.msra.mxu0 %v913
  %2981 = vmatmul.f32.gmra.mxu0 %v2803
  %v2982 = vpop.f32.mrf.mxu0
  %v2983 = vadd.f32 %v2963, %v2982
  %2984 = vdwg.mxu0
  %2985 = vmatpush.msra.mxu0 %v846
  %2986 = vmatpush.msra.mxu0 %v842
  %2987 = vmatpush.msra.mxu0 %v838
  %2988 = vmatpush.msra.mxu0 %v834
  %2989 = vmatpush.msra.mxu0 %v830
  %2990 = vmatpush.msra.mxu0 %v826
  %2991 = vmatpush.msra.mxu0 %v822
  %2992 = vmatpush.msra.mxu0 %v818
  %2993 = vmatpush.msra.mxu0 %v814
  %2994 = vmatpush.msra.mxu0 %v810
  %2995 = vmatpush.msra.mxu0 %v806
  %2996 = vmatpush.msra.mxu0 %v802
  %2997 = vmatpush.msra.mxu0 %v798
  %2998 = vmatpush.msra.mxu0 %v794
  %2999 = vmatpush.msra.mxu0 %v790
  %3000 = vmatpush.msra.mxu0 %v786
  %3001 = vmatmul.f32.gmra.mxu0 %v2747
  %v3002 = vpop.f32.mrf.mxu0
  %v3003 = vadd.f32 0.0, %v3002
  %3004 = vdwg.mxu0
  %3005 = vmatpush.msra.mxu0 %v910
  %3006 = vmatpush.msra.mxu0 %v906
  %3007 = vmatpush.msra.mxu0 %v902
  %3008 = vmatpush.msra.mxu0 %v898
  %3009 = vmatpush.msra.mxu0 %v894
  %3010 = vmatpush.msra.mxu0 %v890
  %3011 = vmatpush.msra.mxu0 %v886
  %3012 = vmatpush.msra.mxu0 %v882
  %3013 = vmatpush.msra.mxu0 %v878
  %3014 = vmatpush.msra.mxu0 %v874
  %3015 = vmatpush.msra.mxu0 %v870
  %3016 = vmatpush.msra.mxu0 %v866
  %3017 = vmatpush.msra.mxu0 %v862
  %3018 = vmatpush.msra.mxu0 %v858
  %3019 = vmatpush.msra.mxu0 %v854
  %3020 = vmatpush.msra.mxu0 %v850
  %3021 = vmatmul.f32.gmra.mxu0 %v2748
  %v3022 = vpop.f32.mrf.mxu0
  %v3023 = vadd.f32 %v3003, %v3022
  %3024 = vdwg.mxu0
  %3025 = vmatpush.msra.mxu0 %v974
  %3026 = vmatpush.msra.mxu0 %v970
  %3027 = vmatpush.msra.mxu0 %v966
  %3028 = vmatpush.msra.mxu0 %v962
  %3029 = vmatpush.msra.mxu0 %v958
  %3030 = vmatpush.msra.mxu0 %v954
  %3031 = vmatpush.msra.mxu0 %v950
  %3032 = vmatpush.msra.mxu0 %v946
  %3033 = vmatpush.msra.mxu0 %v942
  %3034 = vmatpush.msra.mxu0 %v938
  %3035 = vmatpush.msra.mxu0 %v934
  %3036 = vmatpush.msra.mxu0 %v930
  %3037 = vmatpush.msra.mxu0 %v926
  %3038 = vmatpush.msra.mxu0 %v922
  %3039 = vmatpush.msra.mxu0 %v918
  %3040 = vmatpush.msra.mxu0 %v914
  %3041 = vmatmul.f32.gmra.mxu0 %v2803
  %v3042 = vpop.f32.mrf.mxu0
  %v3043 = vadd.f32 %v3023, %v3042
  %3044 = vdwg.mxu0
  %v3045 = vadd.f32 %v2585, %v2863
  %v3046 = vadd.f32 %v2605, %v2923
  %v3047 = vadd.f32 %v2625, %v2983
  %v3048 = vadd.f32 %v2645, %v3043
  %v3049 = vadd.f32 %v3045, %v1389
  %v3050 = vadd.f32 %v3046, %v1390
  %v3051 = vadd.f32 %v3047, %v1391
  %v3052 = vadd.f32 %v3048, %v1392
  %v3053 = vxor.u32 %v3049, 2147483648
  %v3054 = vxor.u32 %v3050, 2147483648
  %v3055 = vxor.u32 %v3051, 2147483648
  %v3056 = vmul.f32 %v3053, 1.442695
  %v3057 = vpow.pop %v3056
  %v3058 = vmul.f32 %v3054, 1.442695
  %v3059 = vpow.pop %v3058
  %v3060 = vmul.f32 %v3055, 1.442695
  %v3061 = vpow.pop %v3060
  %v3062 = vadd.f32 %v3057, 1.0
  %v3063 = vadd.f32 %v3059, 1.0
  %v3064 = vadd.f32 %v3061, 1.0
  %v3065 = vrcp.pop %v3062
  %v3066 = vmul.f32 %v3062, %v3065
  %v3067 = vsub.f32 1.0, %v3066
  %v3068 = vmul.f32 %v3065, %v3067
  %v3069 = vadd.f32 %v3065, %v3068
  %vm3070 = vweird.f32 %v3062
  %vm3071 = vweird.f32 %v3065
  %vm3072 = vmor %vm3070, %vm3071
  %v3073 = vsel %vm3072, %v3065, %v3069
  %v3074 = vand.u32 2147483647, %v3062
  %vm3075 = vcmp.eq.f32.partialorder %v3074, 8.507059e+37
  %v3076 = vand.u32 %v3062, 2147483648
  %v3077 = vor.u32 1.1754944e-38, %v3076
  %v3078 = vsel %vm3075, %v3077, %v3073
  %v3079 = vmul.f32 1.0, %v3078
  %v3080 = vrcp.pop %v3063
  %v3081 = vmul.f32 %v3063, %v3080
  %v3082 = vsub.f32 1.0, %v3081
  %v3083 = vmul.f32 %v3080, %v3082
  %v3084 = vadd.f32 %v3080, %v3083
  %vm3085 = vweird.f32 %v3063
  %vm3086 = vweird.f32 %v3080
  %vm3087 = vmor %vm3085, %vm3086
  %v3088 = vsel %vm3087, %v3080, %v3084
  %v3089 = vand.u32 2147483647, %v3063
  %vm3090 = vcmp.eq.f32.partialorder %v3089, 8.507059e+37
  %v3091 = vand.u32 %v3063, 2147483648
  %v3092 = vor.u32 1.1754944e-38, %v3091
  %v3093 = vsel %vm3090, %v3092, %v3088
  %v3094 = vmul.f32 1.0, %v3093
  %v3095 = vrcp.pop %v3064
  %v3096 = vmul.f32 %v3064, %v3095
  %v3097 = vsub.f32 1.0, %v3096
  %v3098 = vmul.f32 %v3095, %v3097
  %v3099 = vadd.f32 %v3095, %v3098
  %vm3100 = vweird.f32 %v3064
  %vm3101 = vweird.f32 %v3095
  %vm3102 = vmor %vm3100, %vm3101
  %v3103 = vsel %vm3102, %v3095, %v3099
  %v3104 = vand.u32 2147483647, %v3064
  %vm3105 = vcmp.eq.f32.partialorder %v3104, 8.507059e+37
  %v3106 = vand.u32 %v3064, 2147483648
  %v3107 = vor.u32 1.1754944e-38, %v3106
  %v3108 = vsel %vm3105, %v3107, %v3103
  %v3109 = vmul.f32 1.0, %v3108
  %v3110 = vtanh.pop %v3052
  %v3111 = vmul.f32 %v3094, %v2564
  %v3112 = vmul.f32 %v3079, %v3110
  %v3113 = vadd.f32 %v3111, %v3112
  %v3114 = vtanh.pop %v3113
  %v3115 = vmul.f32 %v3109, %v3114
  %3116 = vmatpush.msra.mxu0 %v680
  %3117 = vmatpush.msra.mxu0 %v673
  %3118 = vmatpush.msra.mxu0 %v666
  %3119 = vmatpush.msra.mxu0 %v659
  %3120 = vmatpush.msra.mxu0 %v652
  %3121 = vmatpush.msra.mxu0 %v645
  %3122 = vmatpush.msra.mxu0 %v638
  %3123 = vmatpush.msra.mxu0 %v631
  %3124 = vmatpush.msra.mxu0 %v624
  %3125 = vmatpush.msra.mxu0 %v617
  %3126 = vmatpush.msra.mxu0 %v610
  %3127 = vmatpush.msra.mxu0 %v603
  %3128 = vmatpush.msra.mxu0 %v596
  %3129 = vmatpush.msra.mxu0 %v589
  %3130 = vmatpush.msra.mxu0 %v582
  %3131 = vmatpush.msra.mxu0 %v575
  %3132 = vmatmul.f32.gmra.mxu0 %v3115
  %v3133 = vpop.f32.mrf.mxu0
  %v3134 = vadd.f32 0.0, %v3133
  %3135 = vdwg.mxu0
  %3136 = vmatpush.msra.mxu0 %v681
  %3137 = vmatpush.msra.mxu0 %v674
  %3138 = vmatpush.msra.mxu0 %v667
  %3139 = vmatpush.msra.mxu0 %v660
  %3140 = vmatpush.msra.mxu0 %v653
  %3141 = vmatpush.msra.mxu0 %v646
  %3142 = vmatpush.msra.mxu0 %v639
  %3143 = vmatpush.msra.mxu0 %v632
  %3144 = vmatpush.msra.mxu0 %v625
  %3145 = vmatpush.msra.mxu0 %v618
  %3146 = vmatpush.msra.mxu0 %v611
  %3147 = vmatpush.msra.mxu0 %v604
  %3148 = vmatpush.msra.mxu0 %v597
  %3149 = vmatpush.msra.mxu0 %v590
  %3150 = vmatpush.msra.mxu0 %v583
  %3151 = vmatpush.msra.mxu0 %v576
  %3152 = vmatmul.f32.gmra.mxu0 %v3115
  %v3153 = vpop.f32.mrf.mxu0
  %v3154 = vadd.f32 0.0, %v3153
  %3155 = vdwg.mxu0
  %3156 = vmatpush.msra.mxu0 %v682
  %3157 = vmatpush.msra.mxu0 %v675
  %3158 = vmatpush.msra.mxu0 %v668
  %3159 = vmatpush.msra.mxu0 %v661
  %3160 = vmatpush.msra.mxu0 %v654
  %3161 = vmatpush.msra.mxu0 %v647
  %3162 = vmatpush.msra.mxu0 %v640
  %3163 = vmatpush.msra.mxu0 %v633
  %3164 = vmatpush.msra.mxu0 %v626
  %3165 = vmatpush.msra.mxu0 %v619
  %3166 = vmatpush.msra.mxu0 %v612
  %3167 = vmatpush.msra.mxu0 %v605
  %3168 = vmatpush.msra.mxu0 %v598
  %3169 = vmatpush.msra.mxu0 %v591
  %3170 = vmatpush.msra.mxu0 %v584
  %3171 = vmatpush.msra.mxu0 %v577
  %3172 = vmatmul.f32.gmra.mxu0 %v3115
  %v3173 = vpop.f32.mrf.mxu0
  %v3174 = vadd.f32 0.0, %v3173
  %3175 = vdwg.mxu0
  %3176 = vmatpush.msra.mxu0 %v683
  %3177 = vmatpush.msra.mxu0 %v676
  %3178 = vmatpush.msra.mxu0 %v669
  %3179 = vmatpush.msra.mxu0 %v662
  %3180 = vmatpush.msra.mxu0 %v655
  %3181 = vmatpush.msra.mxu0 %v648
  %3182 = vmatpush.msra.mxu0 %v641
  %3183 = vmatpush.msra.mxu0 %v634
  %3184 = vmatpush.msra.mxu0 %v627
  %3185 = vmatpush.msra.mxu0 %v620
  %3186 = vmatpush.msra.mxu0 %v613
  %3187 = vmatpush.msra.mxu0 %v606
  %3188 = vmatpush.msra.mxu0 %v599
  %3189 = vmatpush.msra.mxu0 %v592
  %3190 = vmatpush.msra.mxu0 %v585
  %3191 = vmatpush.msra.mxu0 %v578
  %3192 = vmatmul.f32.gmra.mxu0 %v3115
  %v3193 = vpop.f32.mrf.mxu0
  %v3194 = vadd.f32 0.0, %v3193
  %3195 = vdwg.mxu0
  %3196 = vmatpush.msra.mxu0 %v684
  %3197 = vmatpush.msra.mxu0 %v677
  %3198 = vmatpush.msra.mxu0 %v670
  %3199 = vmatpush.msra.mxu0 %v663
  %3200 = vmatpush.msra.mxu0 %v656
  %3201 = vmatpush.msra.mxu0 %v649
  %3202 = vmatpush.msra.mxu0 %v642
  %3203 = vmatpush.msra.mxu0 %v635
  %3204 = vmatpush.msra.mxu0 %v628
  %3205 = vmatpush.msra.mxu0 %v621
  %3206 = vmatpush.msra.mxu0 %v614
  %3207 = vmatpush.msra.mxu0 %v607
  %3208 = vmatpush.msra.mxu0 %v600
  %3209 = vmatpush.msra.mxu0 %v593
  %3210 = vmatpush.msra.mxu0 %v586
  %3211 = vmatpush.msra.mxu0 %v579
  %3212 = vmatmul.f32.gmra.mxu0 %v3115
  %v3213 = vpop.f32.mrf.mxu0
  %v3214 = vadd.f32 0.0, %v3213
  %3215 = vdwg.mxu0
  %3216 = vmatpush.msra.mxu0 %v685
  %3217 = vmatpush.msra.mxu0 %v678
  %3218 = vmatpush.msra.mxu0 %v671
  %3219 = vmatpush.msra.mxu0 %v664
  %3220 = vmatpush.msra.mxu0 %v657
  %3221 = vmatpush.msra.mxu0 %v650
  %3222 = vmatpush.msra.mxu0 %v643
  %3223 = vmatpush.msra.mxu0 %v636
  %3224 = vmatpush.msra.mxu0 %v629
  %3225 = vmatpush.msra.mxu0 %v622
  %3226 = vmatpush.msra.mxu0 %v615
  %3227 = vmatpush.msra.mxu0 %v608
  %3228 = vmatpush.msra.mxu0 %v601
  %3229 = vmatpush.msra.mxu0 %v594
  %3230 = vmatpush.msra.mxu0 %v587
  %3231 = vmatpush.msra.mxu0 %v580
  %3232 = vmatmul.f32.gmra.mxu0 %v3115
  %v3233 = vpop.f32.mrf.mxu0
  %v3234 = vadd.f32 0.0, %v3233
  %3235 = vdwg.mxu0
  %3236 = vmatpush.msra.mxu0 %v686
  %3237 = vmatpush.msra.mxu0 %v679
  %3238 = vmatpush.msra.mxu0 %v672
  %3239 = vmatpush.msra.mxu0 %v665
  %3240 = vmatpush.msra.mxu0 %v658
  %3241 = vmatpush.msra.mxu0 %v651
  %3242 = vmatpush.msra.mxu0 %v644
  %3243 = vmatpush.msra.mxu0 %v637
  %3244 = vmatpush.msra.mxu0 %v630
  %3245 = vmatpush.msra.mxu0 %v623
  %3246 = vmatpush.msra.mxu0 %v616
  %3247 = vmatpush.msra.mxu0 %v609
  %3248 = vmatpush.msra.mxu0 %v602
  %3249 = vmatpush.msra.mxu0 %v595
  %3250 = vmatpush.msra.mxu0 %v588
  %3251 = vmatpush.msra.mxu0 %v581
  %3252 = vmatmul.f32.gmra.mxu0 %v3115
  %v3253 = vpop.f32.mrf.mxu0
  %v3254 = vadd.f32 0.0, %v3253
  %3255 = vdwg.mxu0
  %v3256 = vadd.f32 %v3234, %v1605
  %v3257 = vadd.f32 %v3254, %v1606
  %v3260 = vrot.slane %v3257, 6
  %v3261 = vsel %vm1614, %v3256, %v3260
  %s3263 = scalar_lea.vmem %s15, 12
  %3264 = vst [vmem:[%s3263] sm:$0xf] %v3261
  %v3265 = vsel %vm1614, %v3256, -inf
  %v3266 = vsel %vm1614, %v3257, -inf
  %v3267 = vmax.f32 %v3265, %v3266
  %3268 = vmax.xlane.f32.xlu0 %v3267
  %v3269 = vpop.xlane.xlu0 %3268
  %vm3270 = vcmp.ge.f32.partialorder %v3256, %v3269
  %vm3271 = vcmp.ge.f32.partialorder %v3257, %v3269
  %v3272 = vsel %vm3270, %v979, 256
  %v3273 = vsel %vm3271, %v980, 256
  %v3274 = vsel %vm1614, %v3272, 2147483647
  %v3275 = vsel %vm1614, %v3273, 2147483647
  %vm3276 = vcmp.lt.s32.totalorder %v3274, %v3275
  %v3277 = vsel %vm3276, %v3274, %v3275
  %v3278 = vand.u32 %v3277, 65535
  %v3279 = vshra.s32 %v3277, 16
  %v3280 = vcvt.s32.f32 %v3278
  %v3281 = vcvt.s32.f32 %v3279
  %3282 = vmin.xlane.f32.xlu0 %v3281
  %v3283 = vpop.xlane.xlu0 %3282
  %vm3284 = vcmp.eq.f32.partialorder %v3281, %v3283
  %v3285 = vsel %vm3284, %v3280, inf
  %3286 = vmin.xlane.f32.xlu0 %v3285
  %v3287 = vpop.xlane.xlu0 %3286
  %v3288 = vcvt.f32.s32 %v3287
  %v3289 = vcvt.f32.s32 %v3283
  %v3290 = vshll.u32 %v3289, 16
  %v3291 = vadd.s32 %v3290, %v3288
  %vm3292 = vcmp.eq.s32.totalorder %v979, %v3291
  %vm3293 = vcmp.eq.s32.totalorder %v980, %v3291
  %v3294 = vsel %vm3292, 1, 0
  %v3295 = vsel %vm3293, 1, 0
  %v3296 = vcvt.s32.f32 %v3294
  %v3297 = vcvt.s32.f32 %v3295
  %3298 = vmatpush.xpose.msra.mxu0 0.0
  %3299 = vmatpush.xpose.msra.mxu0 0.0
  %3300 = vmatpush.xpose.msra.mxu0 0.0
  %3301 = vmatpush.xpose.msra.mxu0 0.0
  %3302 = vmatpush.xpose.msra.mxu0 0.0
  %3303 = vmatpush.xpose.msra.mxu0 0.0
  %3304 = vmatpush.xpose.msra.mxu0 0.0
  %3305 = vmatpush.xpose.msra.mxu0 0.0
  %3306 = vmatpush.xpose.msra.mxu0 0.0
  %3307 = vmatpush.xpose.msra.mxu0 0.0
  %3308 = vmatpush.xpose.msra.mxu0 0.0
  %3309 = vmatpush.xpose.msra.mxu0 0.0
  %3310 = vmatpush.xpose.msra.mxu0 0.0
  %3311 = vmatpush.xpose.msra.mxu0 0.0
  %3312 = vmatpush.xpose.msra.mxu0 %v367
  %3313 = vmatpush.xpose.msra.mxu0 %v364
  %3314 = vmatmul.f32.gmra.mxu0 %v3214
  %v3315 = vpop.f32.mrf.mxu0
  %v3316 = vadd.f32 0.0, %v3315
  %3317 = vdwg.mxu0
  %v3318 = vmul.f32 %v3316, 0.088388346
  %v3319 = vadd.f32 %v3318, %v977
  %v3320 = vsel %vm1109, %v3319, -inf
  %3321 = vmax.xlane.f32.xlu0 %v3320
  %v3322 = vpop.xlane.xlu0 %3321
  %v3323 = vsub.f32 %v3319, %v3322
  %v3324 = vmul.f32 %v3323, 1.442695
  %v3325 = vpow.pop %v3324
  %v3326 = vsel %vm1109, %v3325, 0.0
  %3327 = vadd.xlane.f32.xlu0 %v3326
  %v3328 = vpop.xlane.xlu0 %3327
  %v3329 = vrcp.pop %v3328
  %v3330 = vmul.f32 %v3325, %v3329
  %v3332 = vsel %vm393, %v3330, 0
  %3334 = vmatpush.msra.mxu0 0.0
  %3335 = vmatpush.msra.mxu0 0.0
  %3336 = vmatpush.msra.mxu0 0.0
  %3337 = vmatpush.msra.mxu0 0.0
  %3338 = vmatpush.msra.mxu0 0.0
  %3339 = vmatpush.msra.mxu0 0.0
  %3340 = vmatpush.msra.mxu0 0.0
  %3341 = vmatpush.msra.mxu0 0.0
  %3342 = vmatpush.msra.mxu0 0.0
  %3343 = vmatpush.msra.mxu0 0.0
  %3344 = vmatpush.msra.mxu0 0.0
  %3345 = vmatpush.msra.mxu0 0.0
  %3346 = vmatpush.msra.mxu0 0.0
  %3347 = vmatpush.msra.mxu0 0.0
  %3348 = vmatpush.msra.mxu0 %v390
  %3349 = vmatpush.msra.mxu0 %v387
  %3350 = vmatmul.f32.gmra.mxu0 %v3332
  %v3351 = vpop.f32.mrf.mxu0
  %v3352 = vadd.f32 0.0, %v3351
  %3353 = vdwg.mxu0
  %3354 = vmatpush.msra.mxu0 %v843
  %3355 = vmatpush.msra.mxu0 %v839
  %3356 = vmatpush.msra.mxu0 %v835
  %3357 = vmatpush.msra.mxu0 %v831
  %3358 = vmatpush.msra.mxu0 %v827
  %3359 = vmatpush.msra.mxu0 %v823
  %3360 = vmatpush.msra.mxu0 %v819
  %3361 = vmatpush.msra.mxu0 %v815
  %3362 = vmatpush.msra.mxu0 %v811
  %3363 = vmatpush.msra.mxu0 %v807
  %3364 = vmatpush.msra.mxu0 %v803
  %3365 = vmatpush.msra.mxu0 %v799
  %3366 = vmatpush.msra.mxu0 %v795
  %3367 = vmatpush.msra.mxu0 %v791
  %3368 = vmatpush.msra.mxu0 %v787
  %3369 = vmatpush.msra.mxu0 %v783
  %3370 = vmatmul.f32.gmra.mxu0 %v3296
  %v3371 = vpop.f32.mrf.mxu0
  %v3372 = vadd.f32 0.0, %v3371
  %3373 = vdwg.mxu0
  %3374 = vmatpush.msra.mxu0 %v907
  %3375 = vmatpush.msra.mxu0 %v903
  %3376 = vmatpush.msra.mxu0 %v899
  %3377 = vmatpush.msra.mxu0 %v895
  %3378 = vmatpush.msra.mxu0 %v891
  %3379 = vmatpush.msra.mxu0 %v887
  %3380 = vmatpush.msra.mxu0 %v883
  %3381 = vmatpush.msra.mxu0 %v879
  %3382 = vmatpush.msra.mxu0 %v875
  %3383 = vmatpush.msra.mxu0 %v871
  %3384 = vmatpush.msra.mxu0 %v867
  %3385 = vmatpush.msra.mxu0 %v863
  %3386 = vmatpush.msra.mxu0 %v859
  %3387 = vmatpush.msra.mxu0 %v855
  %3388 = vmatpush.msra.mxu0 %v851
  %3389 = vmatpush.msra.mxu0 %v847
  %3390 = vmatmul.f32.gmra.mxu0 %v3297
  %v3391 = vpop.f32.mrf.mxu0
  %v3392 = vadd.f32 %v3372, %v3391
  %3393 = vdwg.mxu0
  %3394 = vmatpush.msra.mxu0 %v971
  %3395 = vmatpush.msra.mxu0 %v967
  %3396 = vmatpush.msra.mxu0 %v963
  %3397 = vmatpush.msra.mxu0 %v959
  %3398 = vmatpush.msra.mxu0 %v955
  %3399 = vmatpush.msra.mxu0 %v951
  %3400 = vmatpush.msra.mxu0 %v947
  %3401 = vmatpush.msra.mxu0 %v943
  %3402 = vmatpush.msra.mxu0 %v939
  %3403 = vmatpush.msra.mxu0 %v935
  %3404 = vmatpush.msra.mxu0 %v931
  %3405 = vmatpush.msra.mxu0 %v927
  %3406 = vmatpush.msra.mxu0 %v923
  %3407 = vmatpush.msra.mxu0 %v919
  %3408 = vmatpush.msra.mxu0 %v915
  %3409 = vmatpush.msra.mxu0 %v911
  %3410 = vmatmul.f32.gmra.mxu0 %v3352
  %v3411 = vpop.f32.mrf.mxu0
  %v3412 = vadd.f32 %v3392, %v3411
  %3413 = vdwg.mxu0
  %3414 = vmatpush.msra.mxu0 %v844
  %3415 = vmatpush.msra.mxu0 %v840
  %3416 = vmatpush.msra.mxu0 %v836
  %3417 = vmatpush.msra.mxu0 %v832
  %3418 = vmatpush.msra.mxu0 %v828
  %3419 = vmatpush.msra.mxu0 %v824
  %3420 = vmatpush.msra.mxu0 %v820
  %3421 = vmatpush.msra.mxu0 %v816
  %3422 = vmatpush.msra.mxu0 %v812
  %3423 = vmatpush.msra.mxu0 %v808
  %3424 = vmatpush.msra.mxu0 %v804
  %3425 = vmatpush.msra.mxu0 %v800
  %3426 = vmatpush.msra.mxu0 %v796
  %3427 = vmatpush.msra.mxu0 %v792
  %3428 = vmatpush.msra.mxu0 %v788
  %3429 = vmatpush.msra.mxu0 %v784
  %3430 = vmatmul.f32.gmra.mxu0 %v3296
  %v3431 = vpop.f32.mrf.mxu0
  %v3432 = vadd.f32 0.0, %v3431
  %3433 = vdwg.mxu0
  %3434 = vmatpush.msra.mxu0 %v908
  %3435 = vmatpush.msra.mxu0 %v904
  %3436 = vmatpush.msra.mxu0 %v900
  %3437 = vmatpush.msra.mxu0 %v896
  %3438 = vmatpush.msra.mxu0 %v892
  %3439 = vmatpush.msra.mxu0 %v888
  %3440 = vmatpush.msra.mxu0 %v884
  %3441 = vmatpush.msra.mxu0 %v880
  %3442 = vmatpush.msra.mxu0 %v876
  %3443 = vmatpush.msra.mxu0 %v872
  %3444 = vmatpush.msra.mxu0 %v868
  %3445 = vmatpush.msra.mxu0 %v864
  %3446 = vmatpush.msra.mxu0 %v860
  %3447 = vmatpush.msra.mxu0 %v856
  %3448 = vmatpush.msra.mxu0 %v852
  %3449 = vmatpush.msra.mxu0 %v848
  %3450 = vmatmul.f32.gmra.mxu0 %v3297
  %v3451 = vpop.f32.mrf.mxu0
  %v3452 = vadd.f32 %v3432, %v3451
  %3453 = vdwg.mxu0
  %3454 = vmatpush.msra.mxu0 %v972
  %3455 = vmatpush.msra.mxu0 %v968
  %3456 = vmatpush.msra.mxu0 %v964
  %3457 = vmatpush.msra.mxu0 %v960
  %3458 = vmatpush.msra.mxu0 %v956
  %3459 = vmatpush.msra.mxu0 %v952
  %3460 = vmatpush.msra.mxu0 %v948
  %3461 = vmatpush.msra.mxu0 %v944
  %3462 = vmatpush.msra.mxu0 %v940
  %3463 = vmatpush.msra.mxu0 %v936
  %3464 = vmatpush.msra.mxu0 %v932
  %3465 = vmatpush.msra.mxu0 %v928
  %3466 = vmatpush.msra.mxu0 %v924
  %3467 = vmatpush.msra.mxu0 %v920
  %3468 = vmatpush.msra.mxu0 %v916
  %3469 = vmatpush.msra.mxu0 %v912
  %3470 = vmatmul.f32.gmra.mxu0 %v3352
  %v3471 = vpop.f32.mrf.mxu0
  %v3472 = vadd.f32 %v3452, %v3471
  %3473 = vdwg.mxu0
  %3474 = vmatpush.msra.mxu0 %v845
  %3475 = vmatpush.msra.mxu0 %v841
  %3476 = vmatpush.msra.mxu0 %v837
  %3477 = vmatpush.msra.mxu0 %v833
  %3478 = vmatpush.msra.mxu0 %v829
  %3479 = vmatpush.msra.mxu0 %v825
  %3480 = vmatpush.msra.mxu0 %v821
  %3481 = vmatpush.msra.mxu0 %v817
  %3482 = vmatpush.msra.mxu0 %v813
  %3483 = vmatpush.msra.mxu0 %v809
  %3484 = vmatpush.msra.mxu0 %v805
  %3485 = vmatpush.msra.mxu0 %v801
  %3486 = vmatpush.msra.mxu0 %v797
  %3487 = vmatpush.msra.mxu0 %v793
  %3488 = vmatpush.msra.mxu0 %v789
  %3489 = vmatpush.msra.mxu0 %v785
  %3490 = vmatmul.f32.gmra.mxu0 %v3296
  %v3491 = vpop.f32.mrf.mxu0
  %v3492 = vadd.f32 0.0, %v3491
  %3493 = vdwg.mxu0
  %3494 = vmatpush.msra.mxu0 %v909
  %3495 = vmatpush.msra.mxu0 %v905
  %3496 = vmatpush.msra.mxu0 %v901
  %3497 = vmatpush.msra.mxu0 %v897
  %3498 = vmatpush.msra.mxu0 %v893
  %3499 = vmatpush.msra.mxu0 %v889
  %3500 = vmatpush.msra.mxu0 %v885
  %3501 = vmatpush.msra.mxu0 %v881
  %3502 = vmatpush.msra.mxu0 %v877
  %3503 = vmatpush.msra.mxu0 %v873
  %3504 = vmatpush.msra.mxu0 %v869
  %3505 = vmatpush.msra.mxu0 %v865
  %3506 = vmatpush.msra.mxu0 %v861
  %3507 = vmatpush.msra.mxu0 %v857
  %3508 = vmatpush.msra.mxu0 %v853
  %3509 = vmatpush.msra.mxu0 %v849
  %3510 = vmatmul.f32.gmra.mxu0 %v3297
  %v3511 = vpop.f32.mrf.mxu0
  %v3512 = vadd.f32 %v3492, %v3511
  %3513 = vdwg.mxu0
  %3514 = vmatpush.msra.mxu0 %v973
  %3515 = vmatpush.msra.mxu0 %v969
  %3516 = vmatpush.msra.mxu0 %v965
  %3517 = vmatpush.msra.mxu0 %v961
  %3518 = vmatpush.msra.mxu0 %v957
  %3519 = vmatpush.msra.mxu0 %v953
  %3520 = vmatpush.msra.mxu0 %v949
  %3521 = vmatpush.msra.mxu0 %v945
  %3522 = vmatpush.msra.mxu0 %v941
  %3523 = vmatpush.msra.mxu0 %v937
  %3524 = vmatpush.msra.mxu0 %v933
  %3525 = vmatpush.msra.mxu0 %v929
  %3526 = vmatpush.msra.mxu0 %v925
  %3527 = vmatpush.msra.mxu0 %v921
  %3528 = vmatpush.msra.mxu0 %v917
  %3529 = vmatpush.msra.mxu0 %v913
  %3530 = vmatmul.f32.gmra.mxu0 %v3352
  %v3531 = vpop.f32.mrf.mxu0
  %v3532 = vadd.f32 %v3512, %v3531
  %3533 = vdwg.mxu0
  %3534 = vmatpush.msra.mxu0 %v846
  %3535 = vmatpush.msra.mxu0 %v842
  %3536 = vmatpush.msra.mxu0 %v838
  %3537 = vmatpush.msra.mxu0 %v834
  %3538 = vmatpush.msra.mxu0 %v830
  %3539 = vmatpush.msra.mxu0 %v826
  %3540 = vmatpush.msra.mxu0 %v822
  %3541 = vmatpush.msra.mxu0 %v818
  %3542 = vmatpush.msra.mxu0 %v814
  %3543 = vmatpush.msra.mxu0 %v810
  %3544 = vmatpush.msra.mxu0 %v806
  %3545 = vmatpush.msra.mxu0 %v802
  %3546 = vmatpush.msra.mxu0 %v798
  %3547 = vmatpush.msra.mxu0 %v794
  %3548 = vmatpush.msra.mxu0 %v790
  %3549 = vmatpush.msra.mxu0 %v786
  %3550 = vmatmul.f32.gmra.mxu0 %v3296
  %v3551 = vpop.f32.mrf.mxu0
  %v3552 = vadd.f32 0.0, %v3551
  %3553 = vdwg.mxu0
  %3554 = vmatpush.msra.mxu0 %v910
  %3555 = vmatpush.msra.mxu0 %v906
  %3556 = vmatpush.msra.mxu0 %v902
  %3557 = vmatpush.msra.mxu0 %v898
  %3558 = vmatpush.msra.mxu0 %v894
  %3559 = vmatpush.msra.mxu0 %v890
  %3560 = vmatpush.msra.mxu0 %v886
  %3561 = vmatpush.msra.mxu0 %v882
  %3562 = vmatpush.msra.mxu0 %v878
  %3563 = vmatpush.msra.mxu0 %v874
  %3564 = vmatpush.msra.mxu0 %v870
  %3565 = vmatpush.msra.mxu0 %v866
  %3566 = vmatpush.msra.mxu0 %v862
  %3567 = vmatpush.msra.mxu0 %v858
  %3568 = vmatpush.msra.mxu0 %v854
  %3569 = vmatpush.msra.mxu0 %v850
  %3570 = vmatmul.f32.gmra.mxu0 %v3297
  %v3571 = vpop.f32.mrf.mxu0
  %v3572 = vadd.f32 %v3552, %v3571
  %3573 = vdwg.mxu0
  %3574 = vmatpush.msra.mxu0 %v974
  %3575 = vmatpush.msra.mxu0 %v970
  %3576 = vmatpush.msra.mxu0 %v966
  %3577 = vmatpush.msra.mxu0 %v962
  %3578 = vmatpush.msra.mxu0 %v958
  %3579 = vmatpush.msra.mxu0 %v954
  %3580 = vmatpush.msra.mxu0 %v950
  %3581 = vmatpush.msra.mxu0 %v946
  %3582 = vmatpush.msra.mxu0 %v942
  %3583 = vmatpush.msra.mxu0 %v938
  %3584 = vmatpush.msra.mxu0 %v934
  %3585 = vmatpush.msra.mxu0 %v930
  %3586 = vmatpush.msra.mxu0 %v926
  %3587 = vmatpush.msra.mxu0 %v922
  %3588 = vmatpush.msra.mxu0 %v918
  %3589 = vmatpush.msra.mxu0 %v914
  %3590 = vmatmul.f32.gmra.mxu0 %v3352
  %v3591 = vpop.f32.mrf.mxu0
  %v3592 = vadd.f32 %v3572, %v3591
  %3593 = vdwg.mxu0
  %v3594 = vadd.f32 %v3134, %v3412
  %v3595 = vadd.f32 %v3154, %v3472
  %v3596 = vadd.f32 %v3174, %v3532
  %v3597 = vadd.f32 %v3194, %v3592
  %v3598 = vadd.f32 %v3594, %v1389
  %v3599 = vadd.f32 %v3595, %v1390
  %v3600 = vadd.f32 %v3596, %v1391
  %v3601 = vadd.f32 %v3597, %v1392
  %v3602 = vxor.u32 %v3598, 2147483648
  %v3603 = vxor.u32 %v3599, 2147483648
  %v3604 = vxor.u32 %v3600, 2147483648
  %v3605 = vmul.f32 %v3602, 1.442695
  %v3606 = vpow.pop %v3605
  %v3607 = vmul.f32 %v3603, 1.442695
  %v3608 = vpow.pop %v3607
  %v3609 = vmul.f32 %v3604, 1.442695
  %v3610 = vpow.pop %v3609
  %v3611 = vadd.f32 %v3606, 1.0
  %v3612 = vadd.f32 %v3608, 1.0
  %v3613 = vadd.f32 %v3610, 1.0
  %v3614 = vrcp.pop %v3611
  %v3615 = vmul.f32 %v3611, %v3614
  %v3616 = vsub.f32 1.0, %v3615
  %v3617 = vmul.f32 %v3614, %v3616
  %v3618 = vadd.f32 %v3614, %v3617
  %vm3619 = vweird.f32 %v3611
  %vm3620 = vweird.f32 %v3614
  %vm3621 = vmor %vm3619, %vm3620
  %v3622 = vsel %vm3621, %v3614, %v3618
  %v3623 = vand.u32 2147483647, %v3611
  %vm3624 = vcmp.eq.f32.partialorder %v3623, 8.507059e+37
  %v3625 = vand.u32 %v3611, 2147483648
  %v3626 = vor.u32 1.1754944e-38, %v3625
  %v3627 = vsel %vm3624, %v3626, %v3622
  %v3628 = vmul.f32 1.0, %v3627
  %v3629 = vrcp.pop %v3612
  %v3630 = vmul.f32 %v3612, %v3629
  %v3631 = vsub.f32 1.0, %v3630
  %v3632 = vmul.f32 %v3629, %v3631
  %v3633 = vadd.f32 %v3629, %v3632
  %vm3634 = vweird.f32 %v3612
  %vm3635 = vweird.f32 %v3629
  %vm3636 = vmor %vm3634, %vm3635
  %v3637 = vsel %vm3636, %v3629, %v3633
  %v3638 = vand.u32 2147483647, %v3612
  %vm3639 = vcmp.eq.f32.partialorder %v3638, 8.507059e+37
  %v3640 = vand.u32 %v3612, 2147483648
  %v3641 = vor.u32 1.1754944e-38, %v3640
  %v3642 = vsel %vm3639, %v3641, %v3637
  %v3643 = vmul.f32 1.0, %v3642
  %v3644 = vrcp.pop %v3613
  %v3645 = vmul.f32 %v3613, %v3644
  %v3646 = vsub.f32 1.0, %v3645
  %v3647 = vmul.f32 %v3644, %v3646
  %v3648 = vadd.f32 %v3644, %v3647
  %vm3649 = vweird.f32 %v3613
  %vm3650 = vweird.f32 %v3644
  %vm3651 = vmor %vm3649, %vm3650
  %v3652 = vsel %vm3651, %v3644, %v3648
  %v3653 = vand.u32 2147483647, %v3613
  %vm3654 = vcmp.eq.f32.partialorder %v3653, 8.507059e+37
  %v3655 = vand.u32 %v3613, 2147483648
  %v3656 = vor.u32 1.1754944e-38, %v3655
  %v3657 = vsel %vm3654, %v3656, %v3652
  %v3658 = vmul.f32 1.0, %v3657
  %v3659 = vtanh.pop %v3601
  %v3660 = vmul.f32 %v3643, %v3113
  %v3661 = vmul.f32 %v3628, %v3659
  %v3662 = vadd.f32 %v3660, %v3661
  %v3663 = vtanh.pop %v3662
  %v3664 = vmul.f32 %v3658, %v3663
  %3665 = vmatpush.msra.mxu0 %v680
  %3666 = vmatpush.msra.mxu0 %v673
  %3667 = vmatpush.msra.mxu0 %v666
  %3668 = vmatpush.msra.mxu0 %v659
  %3669 = vmatpush.msra.mxu0 %v652
  %3670 = vmatpush.msra.mxu0 %v645
  %3671 = vmatpush.msra.mxu0 %v638
  %3672 = vmatpush.msra.mxu0 %v631
  %3673 = vmatpush.msra.mxu0 %v624
  %3674 = vmatpush.msra.mxu0 %v617
  %3675 = vmatpush.msra.mxu0 %v610
  %3676 = vmatpush.msra.mxu0 %v603
  %3677 = vmatpush.msra.mxu0 %v596
  %3678 = vmatpush.msra.mxu0 %v589
  %3679 = vmatpush.msra.mxu0 %v582
  %3680 = vmatpush.msra.mxu0 %v575
  %3681 = vmatmul.f32.gmra.mxu0 %v3664
  %v3682 = vpop.f32.mrf.mxu0
  %v3683 = vadd.f32 0.0, %v3682
  %3684 = vdwg.mxu0
  %3685 = vmatpush.msra.mxu0 %v681
  %3686 = vmatpush.msra.mxu0 %v674
  %3687 = vmatpush.msra.mxu0 %v667
  %3688 = vmatpush.msra.mxu0 %v660
  %3689 = vmatpush.msra.mxu0 %v653
  %3690 = vmatpush.msra.mxu0 %v646
  %3691 = vmatpush.msra.mxu0 %v639
  %3692 = vmatpush.msra.mxu0 %v632
  %3693 = vmatpush.msra.mxu0 %v625
  %3694 = vmatpush.msra.mxu0 %v618
  %3695 = vmatpush.msra.mxu0 %v611
  %3696 = vmatpush.msra.mxu0 %v604
  %3697 = vmatpush.msra.mxu0 %v597
  %3698 = vmatpush.msra.mxu0 %v590
  %3699 = vmatpush.msra.mxu0 %v583
  %3700 = vmatpush.msra.mxu0 %v576
  %3701 = vmatmul.f32.gmra.mxu0 %v3664
  %v3702 = vpop.f32.mrf.mxu0
  %v3703 = vadd.f32 0.0, %v3702
  %3704 = vdwg.mxu0
  %3705 = vmatpush.msra.mxu0 %v682
  %3706 = vmatpush.msra.mxu0 %v675
  %3707 = vmatpush.msra.mxu0 %v668
  %3708 = vmatpush.msra.mxu0 %v661
  %3709 = vmatpush.msra.mxu0 %v654
  %3710 = vmatpush.msra.mxu0 %v647
  %3711 = vmatpush.msra.mxu0 %v640
  %3712 = vmatpush.msra.mxu0 %v633
  %3713 = vmatpush.msra.mxu0 %v626
  %3714 = vmatpush.msra.mxu0 %v619
  %3715 = vmatpush.msra.mxu0 %v612
  %3716 = vmatpush.msra.mxu0 %v605
  %3717 = vmatpush.msra.mxu0 %v598
  %3718 = vmatpush.msra.mxu0 %v591
  %3719 = vmatpush.msra.mxu0 %v584
  %3720 = vmatpush.msra.mxu0 %v577
  %3721 = vmatmul.f32.gmra.mxu0 %v3664
  %v3722 = vpop.f32.mrf.mxu0
  %v3723 = vadd.f32 0.0, %v3722
  %3724 = vdwg.mxu0
  %3725 = vmatpush.msra.mxu0 %v683
  %3726 = vmatpush.msra.mxu0 %v676
  %3727 = vmatpush.msra.mxu0 %v669
  %3728 = vmatpush.msra.mxu0 %v662
  %3729 = vmatpush.msra.mxu0 %v655
  %3730 = vmatpush.msra.mxu0 %v648
  %3731 = vmatpush.msra.mxu0 %v641
  %3732 = vmatpush.msra.mxu0 %v634
  %3733 = vmatpush.msra.mxu0 %v627
  %3734 = vmatpush.msra.mxu0 %v620
  %3735 = vmatpush.msra.mxu0 %v613
  %3736 = vmatpush.msra.mxu0 %v606
  %3737 = vmatpush.msra.mxu0 %v599
  %3738 = vmatpush.msra.mxu0 %v592
  %3739 = vmatpush.msra.mxu0 %v585
  %3740 = vmatpush.msra.mxu0 %v578
  %3741 = vmatmul.f32.gmra.mxu0 %v3664
  %v3742 = vpop.f32.mrf.mxu0
  %v3743 = vadd.f32 0.0, %v3742
  %3744 = vdwg.mxu0
  %3745 = vmatpush.msra.mxu0 %v684
  %3746 = vmatpush.msra.mxu0 %v677
  %3747 = vmatpush.msra.mxu0 %v670
  %3748 = vmatpush.msra.mxu0 %v663
  %3749 = vmatpush.msra.mxu0 %v656
  %3750 = vmatpush.msra.mxu0 %v649
  %3751 = vmatpush.msra.mxu0 %v642
  %3752 = vmatpush.msra.mxu0 %v635
  %3753 = vmatpush.msra.mxu0 %v628
  %3754 = vmatpush.msra.mxu0 %v621
  %3755 = vmatpush.msra.mxu0 %v614
  %3756 = vmatpush.msra.mxu0 %v607
  %3757 = vmatpush.msra.mxu0 %v600
  %3758 = vmatpush.msra.mxu0 %v593
  %3759 = vmatpush.msra.mxu0 %v586
  %3760 = vmatpush.msra.mxu0 %v579
  %3761 = vmatmul.f32.gmra.mxu0 %v3664
  %v3762 = vpop.f32.mrf.mxu0
  %v3763 = vadd.f32 0.0, %v3762
  %3764 = vdwg.mxu0
  %3765 = vmatpush.msra.mxu0 %v685
  %3766 = vmatpush.msra.mxu0 %v678
  %3767 = vmatpush.msra.mxu0 %v671
  %3768 = vmatpush.msra.mxu0 %v664
  %3769 = vmatpush.msra.mxu0 %v657
  %3770 = vmatpush.msra.mxu0 %v650
  %3771 = vmatpush.msra.mxu0 %v643
  %3772 = vmatpush.msra.mxu0 %v636
  %3773 = vmatpush.msra.mxu0 %v629
  %3774 = vmatpush.msra.mxu0 %v622
  %3775 = vmatpush.msra.mxu0 %v615
  %3776 = vmatpush.msra.mxu0 %v608
  %3777 = vmatpush.msra.mxu0 %v601
  %3778 = vmatpush.msra.mxu0 %v594
  %3779 = vmatpush.msra.mxu0 %v587
  %3780 = vmatpush.msra.mxu0 %v580
  %3781 = vmatmul.f32.gmra.mxu0 %v3664
  %v3782 = vpop.f32.mrf.mxu0
  %v3783 = vadd.f32 0.0, %v3782
  %3784 = vdwg.mxu0
  %3785 = vmatpush.msra.mxu0 %v686
  %3786 = vmatpush.msra.mxu0 %v679
  %3787 = vmatpush.msra.mxu0 %v672
  %3788 = vmatpush.msra.mxu0 %v665
  %3789 = vmatpush.msra.mxu0 %v658
  %3790 = vmatpush.msra.mxu0 %v651
  %3791 = vmatpush.msra.mxu0 %v644
  %3792 = vmatpush.msra.mxu0 %v637
  %3793 = vmatpush.msra.mxu0 %v630
  %3794 = vmatpush.msra.mxu0 %v623
  %3795 = vmatpush.msra.mxu0 %v616
  %3796 = vmatpush.msra.mxu0 %v609
  %3797 = vmatpush.msra.mxu0 %v602
  %3798 = vmatpush.msra.mxu0 %v595
  %3799 = vmatpush.msra.mxu0 %v588
  %3800 = vmatpush.msra.mxu0 %v581
  %3801 = vmatmul.f32.gmra.mxu0 %v3664
  %v3802 = vpop.f32.mrf.mxu0
  %v3803 = vadd.f32 0.0, %v3802
  %3804 = vdwg.mxu0
  %v3805 = vadd.f32 %v3783, %v1605
  %v3806 = vadd.f32 %v3803, %v1606
  %v3809 = vrot.slane %v3806, 6
  %v3810 = vsel %vm1614, %v3805, %v3809
  %s3812 = scalar_lea.vmem %s15, 16
  %3813 = vst [vmem:[%s3812] sm:$0xf] %v3810
  %v3814 = vsel %vm1614, %v3805, -inf
  %v3815 = vsel %vm1614, %v3806, -inf
  %v3816 = vmax.f32 %v3814, %v3815
  %3817 = vmax.xlane.f32.xlu0 %v3816
  %v3818 = vpop.xlane.xlu0 %3817
  %vm3819 = vcmp.ge.f32.partialorder %v3805, %v3818
  %vm3820 = vcmp.ge.f32.partialorder %v3806, %v3818
  %v3821 = vsel %vm3819, %v979, 256
  %v3822 = vsel %vm3820, %v980, 256
  %v3823 = vsel %vm1614, %v3821, 2147483647
  %v3824 = vsel %vm1614, %v3822, 2147483647
  %vm3825 = vcmp.lt.s32.totalorder %v3823, %v3824
  %v3826 = vsel %vm3825, %v3823, %v3824
  %v3827 = vand.u32 %v3826, 65535
  %v3828 = vshra.s32 %v3826, 16
  %v3829 = vcvt.s32.f32 %v3827
  %v3830 = vcvt.s32.f32 %v3828
  %3831 = vmin.xlane.f32.xlu0 %v3830
  %v3832 = vpop.xlane.xlu0 %3831
  %vm3833 = vcmp.eq.f32.partialorder %v3830, %v3832
  %v3834 = vsel %vm3833, %v3829, inf
  %3835 = vmin.xlane.f32.xlu0 %v3834
  %v3836 = vpop.xlane.xlu0 %3835
  %v3837 = vcvt.f32.s32 %v3836
  %v3838 = vcvt.f32.s32 %v3832
  %v3839 = vshll.u32 %v3838, 16
  %v3840 = vadd.s32 %v3839, %v3837
  %vm3841 = vcmp.eq.s32.totalorder %v979, %v3840
  %vm3842 = vcmp.eq.s32.totalorder %v980, %v3840
  %v3843 = vsel %vm3841, 1, 0
  %v3844 = vsel %vm3842, 1, 0
  %v3845 = vcvt.s32.f32 %v3843
  %v3846 = vcvt.s32.f32 %v3844
  %3847 = vmatpush.xpose.msra.mxu0 0.0
  %3848 = vmatpush.xpose.msra.mxu0 0.0
  %3849 = vmatpush.xpose.msra.mxu0 0.0
  %3850 = vmatpush.xpose.msra.mxu0 0.0
  %3851 = vmatpush.xpose.msra.mxu0 0.0
  %3852 = vmatpush.xpose.msra.mxu0 0.0
  %3853 = vmatpush.xpose.msra.mxu0 0.0
  %3854 = vmatpush.xpose.msra.mxu0 0.0
  %3855 = vmatpush.xpose.msra.mxu0 0.0
  %3856 = vmatpush.xpose.msra.mxu0 0.0
  %3857 = vmatpush.xpose.msra.mxu0 0.0
  %3858 = vmatpush.xpose.msra.mxu0 0.0
  %3859 = vmatpush.xpose.msra.mxu0 0.0
  %3860 = vmatpush.xpose.msra.mxu0 0.0
  %3861 = vmatpush.xpose.msra.mxu0 %v367
  %3862 = vmatpush.xpose.msra.mxu0 %v364
  %3863 = vmatmul.f32.gmra.mxu0 %v3763
  %v3864 = vpop.f32.mrf.mxu0
  %v3865 = vadd.f32 0.0, %v3864
  %3866 = vdwg.mxu0
  %v3867 = vmul.f32 %v3865, 0.088388346
  %v3868 = vadd.f32 %v3867, %v977
  %v3869 = vsel %vm1109, %v3868, -inf
  %3870 = vmax.xlane.f32.xlu0 %v3869
  %v3871 = vpop.xlane.xlu0 %3870
  %v3872 = vsub.f32 %v3868, %v3871
  %v3873 = vmul.f32 %v3872, 1.442695
  %v3874 = vpow.pop %v3873
  %v3875 = vsel %vm1109, %v3874, 0.0
  %3876 = vadd.xlane.f32.xlu0 %v3875
  %v3877 = vpop.xlane.xlu0 %3876
  %v3878 = vrcp.pop %v3877
  %v3879 = vmul.f32 %v3874, %v3878
  %v3881 = vsel %vm393, %v3879, 0
  %3883 = vmatpush.msra.mxu0 0.0
  %3884 = vmatpush.msra.mxu0 0.0
  %3885 = vmatpush.msra.mxu0 0.0
  %3886 = vmatpush.msra.mxu0 0.0
  %3887 = vmatpush.msra.mxu0 0.0
  %3888 = vmatpush.msra.mxu0 0.0
  %3889 = vmatpush.msra.mxu0 0.0
  %3890 = vmatpush.msra.mxu0 0.0
  %3891 = vmatpush.msra.mxu0 0.0
  %3892 = vmatpush.msra.mxu0 0.0
  %3893 = vmatpush.msra.mxu0 0.0
  %3894 = vmatpush.msra.mxu0 0.0
  %3895 = vmatpush.msra.mxu0 0.0
  %3896 = vmatpush.msra.mxu0 0.0
  %3897 = vmatpush.msra.mxu0 %v390
  %3898 = vmatpush.msra.mxu0 %v387
  %3899 = vmatmul.f32.gmra.mxu0 %v3881
  %v3900 = vpop.f32.mrf.mxu0
  %v3901 = vadd.f32 0.0, %v3900
  %3902 = vdwg.mxu0
  %3903 = vmatpush.msra.mxu0 %v843
  %3904 = vmatpush.msra.mxu0 %v839
  %3905 = vmatpush.msra.mxu0 %v835
  %3906 = vmatpush.msra.mxu0 %v831
  %3907 = vmatpush.msra.mxu0 %v827
  %3908 = vmatpush.msra.mxu0 %v823
  %3909 = vmatpush.msra.mxu0 %v819
  %3910 = vmatpush.msra.mxu0 %v815
  %3911 = vmatpush.msra.mxu0 %v811
  %3912 = vmatpush.msra.mxu0 %v807
  %3913 = vmatpush.msra.mxu0 %v803
  %3914 = vmatpush.msra.mxu0 %v799
  %3915 = vmatpush.msra.mxu0 %v795
  %3916 = vmatpush.msra.mxu0 %v791
  %3917 = vmatpush.msra.mxu0 %v787
  %3918 = vmatpush.msra.mxu0 %v783
  %3919 = vmatmul.f32.gmra.mxu0 %v3845
  %v3920 = vpop.f32.mrf.mxu0
  %v3921 = vadd.f32 0.0, %v3920
  %3922 = vdwg.mxu0
  %3923 = vmatpush.msra.mxu0 %v907
  %3924 = vmatpush.msra.mxu0 %v903
  %3925 = vmatpush.msra.mxu0 %v899
  %3926 = vmatpush.msra.mxu0 %v895
  %3927 = vmatpush.msra.mxu0 %v891
  %3928 = vmatpush.msra.mxu0 %v887
  %3929 = vmatpush.msra.mxu0 %v883
  %3930 = vmatpush.msra.mxu0 %v879
  %3931 = vmatpush.msra.mxu0 %v875
  %3932 = vmatpush.msra.mxu0 %v871
  %3933 = vmatpush.msra.mxu0 %v867
  %3934 = vmatpush.msra.mxu0 %v863
  %3935 = vmatpush.msra.mxu0 %v859
  %3936 = vmatpush.msra.mxu0 %v855
  %3937 = vmatpush.msra.mxu0 %v851
  %3938 = vmatpush.msra.mxu0 %v847
  %3939 = vmatmul.f32.gmra.mxu0 %v3846
  %v3940 = vpop.f32.mrf.mxu0
  %v3941 = vadd.f32 %v3921, %v3940
  %3942 = vdwg.mxu0
  %3943 = vmatpush.msra.mxu0 %v971
  %3944 = vmatpush.msra.mxu0 %v967
  %3945 = vmatpush.msra.mxu0 %v963
  %3946 = vmatpush.msra.mxu0 %v959
  %3947 = vmatpush.msra.mxu0 %v955
  %3948 = vmatpush.msra.mxu0 %v951
  %3949 = vmatpush.msra.mxu0 %v947
  %3950 = vmatpush.msra.mxu0 %v943
  %3951 = vmatpush.msra.mxu0 %v939
  %3952 = vmatpush.msra.mxu0 %v935
  %3953 = vmatpush.msra.mxu0 %v931
  %3954 = vmatpush.msra.mxu0 %v927
  %3955 = vmatpush.msra.mxu0 %v923
  %3956 = vmatpush.msra.mxu0 %v919
  %3957 = vmatpush.msra.mxu0 %v915
  %3958 = vmatpush.msra.mxu0 %v911
  %3959 = vmatmul.f32.gmra.mxu0 %v3901
  %v3960 = vpop.f32.mrf.mxu0
  %v3961 = vadd.f32 %v3941, %v3960
  %3962 = vdwg.mxu0
  %3963 = vmatpush.msra.mxu0 %v844
  %3964 = vmatpush.msra.mxu0 %v840
  %3965 = vmatpush.msra.mxu0 %v836
  %3966 = vmatpush.msra.mxu0 %v832
  %3967 = vmatpush.msra.mxu0 %v828
  %3968 = vmatpush.msra.mxu0 %v824
  %3969 = vmatpush.msra.mxu0 %v820
  %3970 = vmatpush.msra.mxu0 %v816
  %3971 = vmatpush.msra.mxu0 %v812
  %3972 = vmatpush.msra.mxu0 %v808
  %3973 = vmatpush.msra.mxu0 %v804
  %3974 = vmatpush.msra.mxu0 %v800
  %3975 = vmatpush.msra.mxu0 %v796
  %3976 = vmatpush.msra.mxu0 %v792
  %3977 = vmatpush.msra.mxu0 %v788
  %3978 = vmatpush.msra.mxu0 %v784
  %3979 = vmatmul.f32.gmra.mxu0 %v3845
  %v3980 = vpop.f32.mrf.mxu0
  %v3981 = vadd.f32 0.0, %v3980
  %3982 = vdwg.mxu0
  %3983 = vmatpush.msra.mxu0 %v908
  %3984 = vmatpush.msra.mxu0 %v904
  %3985 = vmatpush.msra.mxu0 %v900
  %3986 = vmatpush.msra.mxu0 %v896
  %3987 = vmatpush.msra.mxu0 %v892
  %3988 = vmatpush.msra.mxu0 %v888
  %3989 = vmatpush.msra.mxu0 %v884
  %3990 = vmatpush.msra.mxu0 %v880
  %3991 = vmatpush.msra.mxu0 %v876
  %3992 = vmatpush.msra.mxu0 %v872
  %3993 = vmatpush.msra.mxu0 %v868
  %3994 = vmatpush.msra.mxu0 %v864
  %3995 = vmatpush.msra.mxu0 %v860
  %3996 = vmatpush.msra.mxu0 %v856
  %3997 = vmatpush.msra.mxu0 %v852
  %3998 = vmatpush.msra.mxu0 %v848
  %3999 = vmatmul.f32.gmra.mxu0 %v3846
  %v4000 = vpop.f32.mrf.mxu0
  %v4001 = vadd.f32 %v3981, %v4000
  %4002 = vdwg.mxu0
  %4003 = vmatpush.msra.mxu0 %v972
  %4004 = vmatpush.msra.mxu0 %v968
  %4005 = vmatpush.msra.mxu0 %v964
  %4006 = vmatpush.msra.mxu0 %v960
  %4007 = vmatpush.msra.mxu0 %v956
  %4008 = vmatpush.msra.mxu0 %v952
  %4009 = vmatpush.msra.mxu0 %v948
  %4010 = vmatpush.msra.mxu0 %v944
  %4011 = vmatpush.msra.mxu0 %v940
  %4012 = vmatpush.msra.mxu0 %v936
  %4013 = vmatpush.msra.mxu0 %v932
  %4014 = vmatpush.msra.mxu0 %v928
  %4015 = vmatpush.msra.mxu0 %v924
  %4016 = vmatpush.msra.mxu0 %v920
  %4017 = vmatpush.msra.mxu0 %v916
  %4018 = vmatpush.msra.mxu0 %v912
  %4019 = vmatmul.f32.gmra.mxu0 %v3901
  %v4020 = vpop.f32.mrf.mxu0
  %v4021 = vadd.f32 %v4001, %v4020
  %4022 = vdwg.mxu0
  %4023 = vmatpush.msra.mxu0 %v845
  %4024 = vmatpush.msra.mxu0 %v841
  %4025 = vmatpush.msra.mxu0 %v837
  %4026 = vmatpush.msra.mxu0 %v833
  %4027 = vmatpush.msra.mxu0 %v829
  %4028 = vmatpush.msra.mxu0 %v825
  %4029 = vmatpush.msra.mxu0 %v821
  %4030 = vmatpush.msra.mxu0 %v817
  %4031 = vmatpush.msra.mxu0 %v813
  %4032 = vmatpush.msra.mxu0 %v809
  %4033 = vmatpush.msra.mxu0 %v805
  %4034 = vmatpush.msra.mxu0 %v801
  %4035 = vmatpush.msra.mxu0 %v797
  %4036 = vmatpush.msra.mxu0 %v793
  %4037 = vmatpush.msra.mxu0 %v789
  %4038 = vmatpush.msra.mxu0 %v785
  %4039 = vmatmul.f32.gmra.mxu0 %v3845
  %v4040 = vpop.f32.mrf.mxu0
  %v4041 = vadd.f32 0.0, %v4040
  %4042 = vdwg.mxu0
  %4043 = vmatpush.msra.mxu0 %v909
  %4044 = vmatpush.msra.mxu0 %v905
  %4045 = vmatpush.msra.mxu0 %v901
  %4046 = vmatpush.msra.mxu0 %v897
  %4047 = vmatpush.msra.mxu0 %v893
  %4048 = vmatpush.msra.mxu0 %v889
  %4049 = vmatpush.msra.mxu0 %v885
  %4050 = vmatpush.msra.mxu0 %v881
  %4051 = vmatpush.msra.mxu0 %v877
  %4052 = vmatpush.msra.mxu0 %v873
  %4053 = vmatpush.msra.mxu0 %v869
  %4054 = vmatpush.msra.mxu0 %v865
  %4055 = vmatpush.msra.mxu0 %v861
  %4056 = vmatpush.msra.mxu0 %v857
  %4057 = vmatpush.msra.mxu0 %v853
  %4058 = vmatpush.msra.mxu0 %v849
  %4059 = vmatmul.f32.gmra.mxu0 %v3846
  %v4060 = vpop.f32.mrf.mxu0
  %v4061 = vadd.f32 %v4041, %v4060
  %4062 = vdwg.mxu0
  %4063 = vmatpush.msra.mxu0 %v973
  %4064 = vmatpush.msra.mxu0 %v969
  %4065 = vmatpush.msra.mxu0 %v965
  %4066 = vmatpush.msra.mxu0 %v961
  %4067 = vmatpush.msra.mxu0 %v957
  %4068 = vmatpush.msra.mxu0 %v953
  %4069 = vmatpush.msra.mxu0 %v949
  %4070 = vmatpush.msra.mxu0 %v945
  %4071 = vmatpush.msra.mxu0 %v941
  %4072 = vmatpush.msra.mxu0 %v937
  %4073 = vmatpush.msra.mxu0 %v933
  %4074 = vmatpush.msra.mxu0 %v929
  %4075 = vmatpush.msra.mxu0 %v925
  %4076 = vmatpush.msra.mxu0 %v921
  %4077 = vmatpush.msra.mxu0 %v917
  %4078 = vmatpush.msra.mxu0 %v913
  %4079 = vmatmul.f32.gmra.mxu0 %v3901
  %v4080 = vpop.f32.mrf.mxu0
  %v4081 = vadd.f32 %v4061, %v4080
  %4082 = vdwg.mxu0
  %4083 = vmatpush.msra.mxu0 %v846
  %4084 = vmatpush.msra.mxu0 %v842
  %4085 = vmatpush.msra.mxu0 %v838
  %4086 = vmatpush.msra.mxu0 %v834
  %4087 = vmatpush.msra.mxu0 %v830
  %4088 = vmatpush.msra.mxu0 %v826
  %4089 = vmatpush.msra.mxu0 %v822
  %4090 = vmatpush.msra.mxu0 %v818
  %4091 = vmatpush.msra.mxu0 %v814
  %4092 = vmatpush.msra.mxu0 %v810
  %4093 = vmatpush.msra.mxu0 %v806
  %4094 = vmatpush.msra.mxu0 %v802
  %4095 = vmatpush.msra.mxu0 %v798
  %4096 = vmatpush.msra.mxu0 %v794
  %4097 = vmatpush.msra.mxu0 %v790
  %4098 = vmatpush.msra.mxu0 %v786
  %4099 = vmatmul.f32.gmra.mxu0 %v3845
  %v4100 = vpop.f32.mrf.mxu0
  %v4101 = vadd.f32 0.0, %v4100
  %4102 = vdwg.mxu0
  %4103 = vmatpush.msra.mxu0 %v910
  %4104 = vmatpush.msra.mxu0 %v906
  %4105 = vmatpush.msra.mxu0 %v902
  %4106 = vmatpush.msra.mxu0 %v898
  %4107 = vmatpush.msra.mxu0 %v894
  %4108 = vmatpush.msra.mxu0 %v890
  %4109 = vmatpush.msra.mxu0 %v886
  %4110 = vmatpush.msra.mxu0 %v882
  %4111 = vmatpush.msra.mxu0 %v878
  %4112 = vmatpush.msra.mxu0 %v874
  %4113 = vmatpush.msra.mxu0 %v870
  %4114 = vmatpush.msra.mxu0 %v866
  %4115 = vmatpush.msra.mxu0 %v862
  %4116 = vmatpush.msra.mxu0 %v858
  %4117 = vmatpush.msra.mxu0 %v854
  %4118 = vmatpush.msra.mxu0 %v850
  %4119 = vmatmul.f32.gmra.mxu0 %v3846
  %v4120 = vpop.f32.mrf.mxu0
  %v4121 = vadd.f32 %v4101, %v4120
  %4122 = vdwg.mxu0
  %4123 = vmatpush.msra.mxu0 %v974
  %4124 = vmatpush.msra.mxu0 %v970
  %4125 = vmatpush.msra.mxu0 %v966
  %4126 = vmatpush.msra.mxu0 %v962
  %4127 = vmatpush.msra.mxu0 %v958
  %4128 = vmatpush.msra.mxu0 %v954
  %4129 = vmatpush.msra.mxu0 %v950
  %4130 = vmatpush.msra.mxu0 %v946
  %4131 = vmatpush.msra.mxu0 %v942
  %4132 = vmatpush.msra.mxu0 %v938
  %4133 = vmatpush.msra.mxu0 %v934
  %4134 = vmatpush.msra.mxu0 %v930
  %4135 = vmatpush.msra.mxu0 %v926
  %4136 = vmatpush.msra.mxu0 %v922
  %4137 = vmatpush.msra.mxu0 %v918
  %4138 = vmatpush.msra.mxu0 %v914
  %4139 = vmatmul.f32.gmra.mxu0 %v3901
  %v4140 = vpop.f32.mrf.mxu0
  %v4141 = vadd.f32 %v4121, %v4140
  %4142 = vdwg.mxu0
  %v4143 = vadd.f32 %v3683, %v3961
  %v4144 = vadd.f32 %v3703, %v4021
  %v4145 = vadd.f32 %v3723, %v4081
  %v4146 = vadd.f32 %v3743, %v4141
  %v4147 = vadd.f32 %v4143, %v1389
  %v4148 = vadd.f32 %v4144, %v1390
  %v4149 = vadd.f32 %v4145, %v1391
  %v4150 = vadd.f32 %v4146, %v1392
  %v4151 = vxor.u32 %v4147, 2147483648
  %v4152 = vxor.u32 %v4148, 2147483648
  %v4153 = vxor.u32 %v4149, 2147483648
  %v4154 = vmul.f32 %v4151, 1.442695
  %v4155 = vpow.pop %v4154
  %v4156 = vmul.f32 %v4152, 1.442695
  %v4157 = vpow.pop %v4156
  %v4158 = vmul.f32 %v4153, 1.442695
  %v4159 = vpow.pop %v4158
  %v4160 = vadd.f32 %v4155, 1.0
  %v4161 = vadd.f32 %v4157, 1.0
  %v4162 = vadd.f32 %v4159, 1.0
  %v4163 = vrcp.pop %v4160
  %v4164 = vmul.f32 %v4160, %v4163
  %v4165 = vsub.f32 1.0, %v4164
  %v4166 = vmul.f32 %v4163, %v4165
  %v4167 = vadd.f32 %v4163, %v4166
  %vm4168 = vweird.f32 %v4160
  %vm4169 = vweird.f32 %v4163
  %vm4170 = vmor %vm4168, %vm4169
  %v4171 = vsel %vm4170, %v4163, %v4167
  %v4172 = vand.u32 2147483647, %v4160
  %vm4173 = vcmp.eq.f32.partialorder %v4172, 8.507059e+37
  %v4174 = vand.u32 %v4160, 2147483648
  %v4175 = vor.u32 1.1754944e-38, %v4174
  %v4176 = vsel %vm4173, %v4175, %v4171
  %v4177 = vmul.f32 1.0, %v4176
  %v4178 = vrcp.pop %v4161
  %v4179 = vmul.f32 %v4161, %v4178
  %v4180 = vsub.f32 1.0, %v4179
  %v4181 = vmul.f32 %v4178, %v4180
  %v4182 = vadd.f32 %v4178, %v4181
  %vm4183 = vweird.f32 %v4161
  %vm4184 = vweird.f32 %v4178
  %vm4185 = vmor %vm4183, %vm4184
  %v4186 = vsel %vm4185, %v4178, %v4182
  %v4187 = vand.u32 2147483647, %v4161
  %vm4188 = vcmp.eq.f32.partialorder %v4187, 8.507059e+37
  %v4189 = vand.u32 %v4161, 2147483648
  %v4190 = vor.u32 1.1754944e-38, %v4189
  %v4191 = vsel %vm4188, %v4190, %v4186
  %v4192 = vmul.f32 1.0, %v4191
  %v4193 = vrcp.pop %v4162
  %v4194 = vmul.f32 %v4162, %v4193
  %v4195 = vsub.f32 1.0, %v4194
  %v4196 = vmul.f32 %v4193, %v4195
  %v4197 = vadd.f32 %v4193, %v4196
  %vm4198 = vweird.f32 %v4162
  %vm4199 = vweird.f32 %v4193
  %vm4200 = vmor %vm4198, %vm4199
  %v4201 = vsel %vm4200, %v4193, %v4197
  %v4202 = vand.u32 2147483647, %v4162
  %vm4203 = vcmp.eq.f32.partialorder %v4202, 8.507059e+37
  %v4204 = vand.u32 %v4162, 2147483648
  %v4205 = vor.u32 1.1754944e-38, %v4204
  %v4206 = vsel %vm4203, %v4205, %v4201
  %v4207 = vmul.f32 1.0, %v4206
  %v4208 = vtanh.pop %v4150
  %v4209 = vmul.f32 %v4192, %v3662
  %v4210 = vmul.f32 %v4177, %v4208
  %v4211 = vadd.f32 %v4209, %v4210
  %v4212 = vtanh.pop %v4211
  %v4213 = vmul.f32 %v4207, %v4212
  %4214 = vmatpush.msra.mxu0 %v680
  %4215 = vmatpush.msra.mxu0 %v673
  %4216 = vmatpush.msra.mxu0 %v666
  %4217 = vmatpush.msra.mxu0 %v659
  %4218 = vmatpush.msra.mxu0 %v652
  %4219 = vmatpush.msra.mxu0 %v645
  %4220 = vmatpush.msra.mxu0 %v638
  %4221 = vmatpush.msra.mxu0 %v631
  %4222 = vmatpush.msra.mxu0 %v624
  %4223 = vmatpush.msra.mxu0 %v617
  %4224 = vmatpush.msra.mxu0 %v610
  %4225 = vmatpush.msra.mxu0 %v603
  %4226 = vmatpush.msra.mxu0 %v596
  %4227 = vmatpush.msra.mxu0 %v589
  %4228 = vmatpush.msra.mxu0 %v582
  %4229 = vmatpush.msra.mxu0 %v575
  %4230 = vmatmul.f32.gmra.mxu0 %v4213
  %v4231 = vpop.f32.mrf.mxu0
  %v4232 = vadd.f32 0.0, %v4231
  %4233 = vdwg.mxu0
  %4234 = vmatpush.msra.mxu0 %v681
  %4235 = vmatpush.msra.mxu0 %v674
  %4236 = vmatpush.msra.mxu0 %v667
  %4237 = vmatpush.msra.mxu0 %v660
  %4238 = vmatpush.msra.mxu0 %v653
  %4239 = vmatpush.msra.mxu0 %v646
  %4240 = vmatpush.msra.mxu0 %v639
  %4241 = vmatpush.msra.mxu0 %v632
  %4242 = vmatpush.msra.mxu0 %v625
  %4243 = vmatpush.msra.mxu0 %v618
  %4244 = vmatpush.msra.mxu0 %v611
  %4245 = vmatpush.msra.mxu0 %v604
  %4246 = vmatpush.msra.mxu0 %v597
  %4247 = vmatpush.msra.mxu0 %v590
  %4248 = vmatpush.msra.mxu0 %v583
  %4249 = vmatpush.msra.mxu0 %v576
  %4250 = vmatmul.f32.gmra.mxu0 %v4213
  %v4251 = vpop.f32.mrf.mxu0
  %v4252 = vadd.f32 0.0, %v4251
  %4253 = vdwg.mxu0
  %4254 = vmatpush.msra.mxu0 %v682
  %4255 = vmatpush.msra.mxu0 %v675
  %4256 = vmatpush.msra.mxu0 %v668
  %4257 = vmatpush.msra.mxu0 %v661
  %4258 = vmatpush.msra.mxu0 %v654
  %4259 = vmatpush.msra.mxu0 %v647
  %4260 = vmatpush.msra.mxu0 %v640
  %4261 = vmatpush.msra.mxu0 %v633
  %4262 = vmatpush.msra.mxu0 %v626
  %4263 = vmatpush.msra.mxu0 %v619
  %4264 = vmatpush.msra.mxu0 %v612
  %4265 = vmatpush.msra.mxu0 %v605
  %4266 = vmatpush.msra.mxu0 %v598
  %4267 = vmatpush.msra.mxu0 %v591
  %4268 = vmatpush.msra.mxu0 %v584
  %4269 = vmatpush.msra.mxu0 %v577
  %4270 = vmatmul.f32.gmra.mxu0 %v4213
  %v4271 = vpop.f32.mrf.mxu0
  %v4272 = vadd.f32 0.0, %v4271
  %4273 = vdwg.mxu0
  %4274 = vmatpush.msra.mxu0 %v683
  %4275 = vmatpush.msra.mxu0 %v676
  %4276 = vmatpush.msra.mxu0 %v669
  %4277 = vmatpush.msra.mxu0 %v662
  %4278 = vmatpush.msra.mxu0 %v655
  %4279 = vmatpush.msra.mxu0 %v648
  %4280 = vmatpush.msra.mxu0 %v641
  %4281 = vmatpush.msra.mxu0 %v634
  %4282 = vmatpush.msra.mxu0 %v627
  %4283 = vmatpush.msra.mxu0 %v620
  %4284 = vmatpush.msra.mxu0 %v613
  %4285 = vmatpush.msra.mxu0 %v606
  %4286 = vmatpush.msra.mxu0 %v599
  %4287 = vmatpush.msra.mxu0 %v592
  %4288 = vmatpush.msra.mxu0 %v585
  %4289 = vmatpush.msra.mxu0 %v578
  %4290 = vmatmul.f32.gmra.mxu0 %v4213
  %v4291 = vpop.f32.mrf.mxu0
  %v4292 = vadd.f32 0.0, %v4291
  %4293 = vdwg.mxu0
  %4294 = vmatpush.msra.mxu0 %v684
  %4295 = vmatpush.msra.mxu0 %v677
  %4296 = vmatpush.msra.mxu0 %v670
  %4297 = vmatpush.msra.mxu0 %v663
  %4298 = vmatpush.msra.mxu0 %v656
  %4299 = vmatpush.msra.mxu0 %v649
  %4300 = vmatpush.msra.mxu0 %v642
  %4301 = vmatpush.msra.mxu0 %v635
  %4302 = vmatpush.msra.mxu0 %v628
  %4303 = vmatpush.msra.mxu0 %v621
  %4304 = vmatpush.msra.mxu0 %v614
  %4305 = vmatpush.msra.mxu0 %v607
  %4306 = vmatpush.msra.mxu0 %v600
  %4307 = vmatpush.msra.mxu0 %v593
  %4308 = vmatpush.msra.mxu0 %v586
  %4309 = vmatpush.msra.mxu0 %v579
  %4310 = vmatmul.f32.gmra.mxu0 %v4213
  %v4311 = vpop.f32.mrf.mxu0
  %v4312 = vadd.f32 0.0, %v4311
  %4313 = vdwg.mxu0
  %4314 = vmatpush.msra.mxu0 %v685
  %4315 = vmatpush.msra.mxu0 %v678
  %4316 = vmatpush.msra.mxu0 %v671
  %4317 = vmatpush.msra.mxu0 %v664
  %4318 = vmatpush.msra.mxu0 %v657
  %4319 = vmatpush.msra.mxu0 %v650
  %4320 = vmatpush.msra.mxu0 %v643
  %4321 = vmatpush.msra.mxu0 %v636
  %4322 = vmatpush.msra.mxu0 %v629
  %4323 = vmatpush.msra.mxu0 %v622
  %4324 = vmatpush.msra.mxu0 %v615
  %4325 = vmatpush.msra.mxu0 %v608
  %4326 = vmatpush.msra.mxu0 %v601
  %4327 = vmatpush.msra.mxu0 %v594
  %4328 = vmatpush.msra.mxu0 %v587
  %4329 = vmatpush.msra.mxu0 %v580
  %4330 = vmatmul.f32.gmra.mxu0 %v4213
  %v4331 = vpop.f32.mrf.mxu0
  %v4332 = vadd.f32 0.0, %v4331
  %4333 = vdwg.mxu0
  %4334 = vmatpush.msra.mxu0 %v686
  %4335 = vmatpush.msra.mxu0 %v679
  %4336 = vmatpush.msra.mxu0 %v672
  %4337 = vmatpush.msra.mxu0 %v665
  %4338 = vmatpush.msra.mxu0 %v658
  %4339 = vmatpush.msra.mxu0 %v651
  %4340 = vmatpush.msra.mxu0 %v644
  %4341 = vmatpush.msra.mxu0 %v637
  %4342 = vmatpush.msra.mxu0 %v630
  %4343 = vmatpush.msra.mxu0 %v623
  %4344 = vmatpush.msra.mxu0 %v616
  %4345 = vmatpush.msra.mxu0 %v609
  %4346 = vmatpush.msra.mxu0 %v602
  %4347 = vmatpush.msra.mxu0 %v595
  %4348 = vmatpush.msra.mxu0 %v588
  %4349 = vmatpush.msra.mxu0 %v581
  %4350 = vmatmul.f32.gmra.mxu0 %v4213
  %v4351 = vpop.f32.mrf.mxu0
  %v4352 = vadd.f32 0.0, %v4351
  %4353 = vdwg.mxu0
  %v4354 = vadd.f32 %v4332, %v1605
  %v4355 = vadd.f32 %v4352, %v1606
  %v4358 = vrot.slane %v4355, 6
  %v4359 = vsel %vm1614, %v4354, %v4358
  %s4361 = scalar_lea.vmem %s15, 20
  %4362 = vst [vmem:[%s4361] sm:$0xf] %v4359
  %v4363 = vsel %vm1614, %v4354, -inf
  %v4364 = vsel %vm1614, %v4355, -inf
  %v4365 = vmax.f32 %v4363, %v4364
  %4366 = vmax.xlane.f32.xlu0 %v4365
  %v4367 = vpop.xlane.xlu0 %4366
  %vm4368 = vcmp.ge.f32.partialorder %v4354, %v4367
  %vm4369 = vcmp.ge.f32.partialorder %v4355, %v4367
  %v4370 = vsel %vm4368, %v979, 256
  %v4371 = vsel %vm4369, %v980, 256
  %v4372 = vsel %vm1614, %v4370, 2147483647
  %v4373 = vsel %vm1614, %v4371, 2147483647
  %vm4374 = vcmp.lt.s32.totalorder %v4372, %v4373
  %v4375 = vsel %vm4374, %v4372, %v4373
  %v4376 = vand.u32 %v4375, 65535
  %v4377 = vshra.s32 %v4375, 16
  %v4378 = vcvt.s32.f32 %v4376
  %v4379 = vcvt.s32.f32 %v4377
  %4380 = vmin.xlane.f32.xlu0 %v4379
  %v4381 = vpop.xlane.xlu0 %4380
  %vm4382 = vcmp.eq.f32.partialorder %v4379, %v4381
  %v4383 = vsel %vm4382, %v4378, inf
  %4384 = vmin.xlane.f32.xlu0 %v4383
  %v4385 = vpop.xlane.xlu0 %4384
  %v4386 = vcvt.f32.s32 %v4385
  %v4387 = vcvt.f32.s32 %v4381
  %v4388 = vshll.u32 %v4387, 16
  %v4389 = vadd.s32 %v4388, %v4386
  %vm4390 = vcmp.eq.s32.totalorder %v979, %v4389
  %vm4391 = vcmp.eq.s32.totalorder %v980, %v4389
  %v4392 = vsel %vm4390, 1, 0
  %v4393 = vsel %vm4391, 1, 0
  %v4394 = vcvt.s32.f32 %v4392
  %v4395 = vcvt.s32.f32 %v4393
  %4396 = vmatpush.xpose.msra.mxu0 0.0
  %4397 = vmatpush.xpose.msra.mxu0 0.0
  %4398 = vmatpush.xpose.msra.mxu0 0.0
  %4399 = vmatpush.xpose.msra.mxu0 0.0
  %4400 = vmatpush.xpose.msra.mxu0 0.0
  %4401 = vmatpush.xpose.msra.mxu0 0.0
  %4402 = vmatpush.xpose.msra.mxu0 0.0
  %4403 = vmatpush.xpose.msra.mxu0 0.0
  %4404 = vmatpush.xpose.msra.mxu0 0.0
  %4405 = vmatpush.xpose.msra.mxu0 0.0
  %4406 = vmatpush.xpose.msra.mxu0 0.0
  %4407 = vmatpush.xpose.msra.mxu0 0.0
  %4408 = vmatpush.xpose.msra.mxu0 0.0
  %4409 = vmatpush.xpose.msra.mxu0 0.0
  %4410 = vmatpush.xpose.msra.mxu0 %v367
  %4411 = vmatpush.xpose.msra.mxu0 %v364
  %4412 = vmatmul.f32.gmra.mxu0 %v4312
  %v4413 = vpop.f32.mrf.mxu0
  %v4414 = vadd.f32 0.0, %v4413
  %4415 = vdwg.mxu0
  %v4416 = vmul.f32 %v4414, 0.088388346
  %v4417 = vadd.f32 %v4416, %v977
  %v4418 = vsel %vm1109, %v4417, -inf
  %4419 = vmax.xlane.f32.xlu0 %v4418
  %v4420 = vpop.xlane.xlu0 %4419
  %v4421 = vsub.f32 %v4417, %v4420
  %v4422 = vmul.f32 %v4421, 1.442695
  %v4423 = vpow.pop %v4422
  %v4424 = vsel %vm1109, %v4423, 0.0
  %4425 = vadd.xlane.f32.xlu0 %v4424
  %v4426 = vpop.xlane.xlu0 %4425
  %v4427 = vrcp.pop %v4426
  %v4428 = vmul.f32 %v4423, %v4427
  %v4430 = vsel %vm393, %v4428, 0
  %4432 = vmatpush.msra.mxu0 0.0
  %4433 = vmatpush.msra.mxu0 0.0
  %4434 = vmatpush.msra.mxu0 0.0
  %4435 = vmatpush.msra.mxu0 0.0
  %4436 = vmatpush.msra.mxu0 0.0
  %4437 = vmatpush.msra.mxu0 0.0
  %4438 = vmatpush.msra.mxu0 0.0
  %4439 = vmatpush.msra.mxu0 0.0
  %4440 = vmatpush.msra.mxu0 0.0
  %4441 = vmatpush.msra.mxu0 0.0
  %4442 = vmatpush.msra.mxu0 0.0
  %4443 = vmatpush.msra.mxu0 0.0
  %4444 = vmatpush.msra.mxu0 0.0
  %4445 = vmatpush.msra.mxu0 0.0
  %4446 = vmatpush.msra.mxu0 %v390
  %4447 = vmatpush.msra.mxu0 %v387
  %4448 = vmatmul.f32.gmra.mxu0 %v4430
  %v4449 = vpop.f32.mrf.mxu0
  %v4450 = vadd.f32 0.0, %v4449
  %4451 = vdwg.mxu0
  %4452 = vmatpush.msra.mxu0 %v843
  %4453 = vmatpush.msra.mxu0 %v839
  %4454 = vmatpush.msra.mxu0 %v835
  %4455 = vmatpush.msra.mxu0 %v831
  %4456 = vmatpush.msra.mxu0 %v827
  %4457 = vmatpush.msra.mxu0 %v823
  %4458 = vmatpush.msra.mxu0 %v819
  %4459 = vmatpush.msra.mxu0 %v815
  %4460 = vmatpush.msra.mxu0 %v811
  %4461 = vmatpush.msra.mxu0 %v807
  %4462 = vmatpush.msra.mxu0 %v803
  %4463 = vmatpush.msra.mxu0 %v799
  %4464 = vmatpush.msra.mxu0 %v795
  %4465 = vmatpush.msra.mxu0 %v791
  %4466 = vmatpush.msra.mxu0 %v787
  %4467 = vmatpush.msra.mxu0 %v783
  %4468 = vmatmul.f32.gmra.mxu0 %v4394
  %v4469 = vpop.f32.mrf.mxu0
  %v4470 = vadd.f32 0.0, %v4469
  %4471 = vdwg.mxu0
  %4472 = vmatpush.msra.mxu0 %v907
  %4473 = vmatpush.msra.mxu0 %v903
  %4474 = vmatpush.msra.mxu0 %v899
  %4475 = vmatpush.msra.mxu0 %v895
  %4476 = vmatpush.msra.mxu0 %v891
  %4477 = vmatpush.msra.mxu0 %v887
  %4478 = vmatpush.msra.mxu0 %v883
  %4479 = vmatpush.msra.mxu0 %v879
  %4480 = vmatpush.msra.mxu0 %v875
  %4481 = vmatpush.msra.mxu0 %v871
  %4482 = vmatpush.msra.mxu0 %v867
  %4483 = vmatpush.msra.mxu0 %v863
  %4484 = vmatpush.msra.mxu0 %v859
  %4485 = vmatpush.msra.mxu0 %v855
  %4486 = vmatpush.msra.mxu0 %v851
  %4487 = vmatpush.msra.mxu0 %v847
  %4488 = vmatmul.f32.gmra.mxu0 %v4395
  %v4489 = vpop.f32.mrf.mxu0
  %v4490 = vadd.f32 %v4470, %v4489
  %4491 = vdwg.mxu0
  %4492 = vmatpush.msra.mxu0 %v971
  %4493 = vmatpush.msra.mxu0 %v967
  %4494 = vmatpush.msra.mxu0 %v963
  %4495 = vmatpush.msra.mxu0 %v959
  %4496 = vmatpush.msra.mxu0 %v955
  %4497 = vmatpush.msra.mxu0 %v951
  %4498 = vmatpush.msra.mxu0 %v947
  %4499 = vmatpush.msra.mxu0 %v943
  %4500 = vmatpush.msra.mxu0 %v939
  %4501 = vmatpush.msra.mxu0 %v935
  %4502 = vmatpush.msra.mxu0 %v931
  %4503 = vmatpush.msra.mxu0 %v927
  %4504 = vmatpush.msra.mxu0 %v923
  %4505 = vmatpush.msra.mxu0 %v919
  %4506 = vmatpush.msra.mxu0 %v915
  %4507 = vmatpush.msra.mxu0 %v911
  %4508 = vmatmul.f32.gmra.mxu0 %v4450
  %v4509 = vpop.f32.mrf.mxu0
  %v4510 = vadd.f32 %v4490, %v4509
  %4511 = vdwg.mxu0
  %4512 = vmatpush.msra.mxu0 %v844
  %4513 = vmatpush.msra.mxu0 %v840
  %4514 = vmatpush.msra.mxu0 %v836
  %4515 = vmatpush.msra.mxu0 %v832
  %4516 = vmatpush.msra.mxu0 %v828
  %4517 = vmatpush.msra.mxu0 %v824
  %4518 = vmatpush.msra.mxu0 %v820
  %4519 = vmatpush.msra.mxu0 %v816
  %4520 = vmatpush.msra.mxu0 %v812
  %4521 = vmatpush.msra.mxu0 %v808
  %4522 = vmatpush.msra.mxu0 %v804
  %4523 = vmatpush.msra.mxu0 %v800
  %4524 = vmatpush.msra.mxu0 %v796
  %4525 = vmatpush.msra.mxu0 %v792
  %4526 = vmatpush.msra.mxu0 %v788
  %4527 = vmatpush.msra.mxu0 %v784
  %4528 = vmatmul.f32.gmra.mxu0 %v4394
  %v4529 = vpop.f32.mrf.mxu0
  %v4530 = vadd.f32 0.0, %v4529
  %4531 = vdwg.mxu0
  %4532 = vmatpush.msra.mxu0 %v908
  %4533 = vmatpush.msra.mxu0 %v904
  %4534 = vmatpush.msra.mxu0 %v900
  %4535 = vmatpush.msra.mxu0 %v896
  %4536 = vmatpush.msra.mxu0 %v892
  %4537 = vmatpush.msra.mxu0 %v888
  %4538 = vmatpush.msra.mxu0 %v884
  %4539 = vmatpush.msra.mxu0 %v880
  %4540 = vmatpush.msra.mxu0 %v876
  %4541 = vmatpush.msra.mxu0 %v872
  %4542 = vmatpush.msra.mxu0 %v868
  %4543 = vmatpush.msra.mxu0 %v864
  %4544 = vmatpush.msra.mxu0 %v860
  %4545 = vmatpush.msra.mxu0 %v856
  %4546 = vmatpush.msra.mxu0 %v852
  %4547 = vmatpush.msra.mxu0 %v848
  %4548 = vmatmul.f32.gmra.mxu0 %v4395
  %v4549 = vpop.f32.mrf.mxu0
  %v4550 = vadd.f32 %v4530, %v4549
  %4551 = vdwg.mxu0
  %4552 = vmatpush.msra.mxu0 %v972
  %4553 = vmatpush.msra.mxu0 %v968
  %4554 = vmatpush.msra.mxu0 %v964
  %4555 = vmatpush.msra.mxu0 %v960
  %4556 = vmatpush.msra.mxu0 %v956
  %4557 = vmatpush.msra.mxu0 %v952
  %4558 = vmatpush.msra.mxu0 %v948
  %4559 = vmatpush.msra.mxu0 %v944
  %4560 = vmatpush.msra.mxu0 %v940
  %4561 = vmatpush.msra.mxu0 %v936
  %4562 = vmatpush.msra.mxu0 %v932
  %4563 = vmatpush.msra.mxu0 %v928
  %4564 = vmatpush.msra.mxu0 %v924
  %4565 = vmatpush.msra.mxu0 %v920
  %4566 = vmatpush.msra.mxu0 %v916
  %4567 = vmatpush.msra.mxu0 %v912
  %4568 = vmatmul.f32.gmra.mxu0 %v4450
  %v4569 = vpop.f32.mrf.mxu0
  %v4570 = vadd.f32 %v4550, %v4569
  %4571 = vdwg.mxu0
  %4572 = vmatpush.msra.mxu0 %v845
  %4573 = vmatpush.msra.mxu0 %v841
  %4574 = vmatpush.msra.mxu0 %v837
  %4575 = vmatpush.msra.mxu0 %v833
  %4576 = vmatpush.msra.mxu0 %v829
  %4577 = vmatpush.msra.mxu0 %v825
  %4578 = vmatpush.msra.mxu0 %v821
  %4579 = vmatpush.msra.mxu0 %v817
  %4580 = vmatpush.msra.mxu0 %v813
  %4581 = vmatpush.msra.mxu0 %v809
  %4582 = vmatpush.msra.mxu0 %v805
  %4583 = vmatpush.msra.mxu0 %v801
  %4584 = vmatpush.msra.mxu0 %v797
  %4585 = vmatpush.msra.mxu0 %v793
  %4586 = vmatpush.msra.mxu0 %v789
  %4587 = vmatpush.msra.mxu0 %v785
  %4588 = vmatmul.f32.gmra.mxu0 %v4394
  %v4589 = vpop.f32.mrf.mxu0
  %v4590 = vadd.f32 0.0, %v4589
  %4591 = vdwg.mxu0
  %4592 = vmatpush.msra.mxu0 %v909
  %4593 = vmatpush.msra.mxu0 %v905
  %4594 = vmatpush.msra.mxu0 %v901
  %4595 = vmatpush.msra.mxu0 %v897
  %4596 = vmatpush.msra.mxu0 %v893
  %4597 = vmatpush.msra.mxu0 %v889
  %4598 = vmatpush.msra.mxu0 %v885
  %4599 = vmatpush.msra.mxu0 %v881
  %4600 = vmatpush.msra.mxu0 %v877
  %4601 = vmatpush.msra.mxu0 %v873
  %4602 = vmatpush.msra.mxu0 %v869
  %4603 = vmatpush.msra.mxu0 %v865
  %4604 = vmatpush.msra.mxu0 %v861
  %4605 = vmatpush.msra.mxu0 %v857
  %4606 = vmatpush.msra.mxu0 %v853
  %4607 = vmatpush.msra.mxu0 %v849
  %4608 = vmatmul.f32.gmra.mxu0 %v4395
  %v4609 = vpop.f32.mrf.mxu0
  %v4610 = vadd.f32 %v4590, %v4609
  %4611 = vdwg.mxu0
  %4612 = vmatpush.msra.mxu0 %v973
  %4613 = vmatpush.msra.mxu0 %v969
  %4614 = vmatpush.msra.mxu0 %v965
  %4615 = vmatpush.msra.mxu0 %v961
  %4616 = vmatpush.msra.mxu0 %v957
  %4617 = vmatpush.msra.mxu0 %v953
  %4618 = vmatpush.msra.mxu0 %v949
  %4619 = vmatpush.msra.mxu0 %v945
  %4620 = vmatpush.msra.mxu0 %v941
  %4621 = vmatpush.msra.mxu0 %v937
  %4622 = vmatpush.msra.mxu0 %v933
  %4623 = vmatpush.msra.mxu0 %v929
  %4624 = vmatpush.msra.mxu0 %v925
  %4625 = vmatpush.msra.mxu0 %v921
  %4626 = vmatpush.msra.mxu0 %v917
  %4627 = vmatpush.msra.mxu0 %v913
  %4628 = vmatmul.f32.gmra.mxu0 %v4450
  %v4629 = vpop.f32.mrf.mxu0
  %v4630 = vadd.f32 %v4610, %v4629
  %4631 = vdwg.mxu0
  %4632 = vmatpush.msra.mxu0 %v846
  %4633 = vmatpush.msra.mxu0 %v842
  %4634 = vmatpush.msra.mxu0 %v838
  %4635 = vmatpush.msra.mxu0 %v834
  %4636 = vmatpush.msra.mxu0 %v830
  %4637 = vmatpush.msra.mxu0 %v826
  %4638 = vmatpush.msra.mxu0 %v822
  %4639 = vmatpush.msra.mxu0 %v818
  %4640 = vmatpush.msra.mxu0 %v814
  %4641 = vmatpush.msra.mxu0 %v810
  %4642 = vmatpush.msra.mxu0 %v806
  %4643 = vmatpush.msra.mxu0 %v802
  %4644 = vmatpush.msra.mxu0 %v798
  %4645 = vmatpush.msra.mxu0 %v794
  %4646 = vmatpush.msra.mxu0 %v790
  %4647 = vmatpush.msra.mxu0 %v786
  %4648 = vmatmul.f32.gmra.mxu0 %v4394
  %v4649 = vpop.f32.mrf.mxu0
  %v4650 = vadd.f32 0.0, %v4649
  %4651 = vdwg.mxu0
  %4652 = vmatpush.msra.mxu0 %v910
  %4653 = vmatpush.msra.mxu0 %v906
  %4654 = vmatpush.msra.mxu0 %v902
  %4655 = vmatpush.msra.mxu0 %v898
  %4656 = vmatpush.msra.mxu0 %v894
  %4657 = vmatpush.msra.mxu0 %v890
  %4658 = vmatpush.msra.mxu0 %v886
  %4659 = vmatpush.msra.mxu0 %v882
  %4660 = vmatpush.msra.mxu0 %v878
  %4661 = vmatpush.msra.mxu0 %v874
  %4662 = vmatpush.msra.mxu0 %v870
  %4663 = vmatpush.msra.mxu0 %v866
  %4664 = vmatpush.msra.mxu0 %v862
  %4665 = vmatpush.msra.mxu0 %v858
  %4666 = vmatpush.msra.mxu0 %v854
  %4667 = vmatpush.msra.mxu0 %v850
  %4668 = vmatmul.f32.gmra.mxu0 %v4395
  %v4669 = vpop.f32.mrf.mxu0
  %v4670 = vadd.f32 %v4650, %v4669
  %4671 = vdwg.mxu0
  %4672 = vmatpush.msra.mxu0 %v974
  %4673 = vmatpush.msra.mxu0 %v970
  %4674 = vmatpush.msra.mxu0 %v966
  %4675 = vmatpush.msra.mxu0 %v962
  %4676 = vmatpush.msra.mxu0 %v958
  %4677 = vmatpush.msra.mxu0 %v954
  %4678 = vmatpush.msra.mxu0 %v950
  %4679 = vmatpush.msra.mxu0 %v946
  %4680 = vmatpush.msra.mxu0 %v942
  %4681 = vmatpush.msra.mxu0 %v938
  %4682 = vmatpush.msra.mxu0 %v934
  %4683 = vmatpush.msra.mxu0 %v930
  %4684 = vmatpush.msra.mxu0 %v926
  %4685 = vmatpush.msra.mxu0 %v922
  %4686 = vmatpush.msra.mxu0 %v918
  %4687 = vmatpush.msra.mxu0 %v914
  %4688 = vmatmul.f32.gmra.mxu0 %v4450
  %v4689 = vpop.f32.mrf.mxu0
  %v4690 = vadd.f32 %v4670, %v4689
  %4691 = vdwg.mxu0
  %v4692 = vadd.f32 %v4232, %v4510
  %v4693 = vadd.f32 %v4252, %v4570
  %v4694 = vadd.f32 %v4272, %v4630
  %v4695 = vadd.f32 %v4292, %v4690
  %v4696 = vadd.f32 %v4692, %v1389
  %v4697 = vadd.f32 %v4693, %v1390
  %v4698 = vadd.f32 %v4694, %v1391
  %v4699 = vadd.f32 %v4695, %v1392
  %v4700 = vxor.u32 %v4696, 2147483648
  %v4701 = vxor.u32 %v4697, 2147483648
  %v4702 = vxor.u32 %v4698, 2147483648
  %v4703 = vmul.f32 %v4700, 1.442695
  %v4704 = vpow.pop %v4703
  %v4705 = vmul.f32 %v4701, 1.442695
  %v4706 = vpow.pop %v4705
  %v4707 = vmul.f32 %v4702, 1.442695
  %v4708 = vpow.pop %v4707
  %v4709 = vadd.f32 %v4704, 1.0
  %v4710 = vadd.f32 %v4706, 1.0
  %v4711 = vadd.f32 %v4708, 1.0
  %v4712 = vrcp.pop %v4709
  %v4713 = vmul.f32 %v4709, %v4712
  %v4714 = vsub.f32 1.0, %v4713
  %v4715 = vmul.f32 %v4712, %v4714
  %v4716 = vadd.f32 %v4712, %v4715
  %vm4717 = vweird.f32 %v4709
  %vm4718 = vweird.f32 %v4712
  %vm4719 = vmor %vm4717, %vm4718
  %v4720 = vsel %vm4719, %v4712, %v4716
  %v4721 = vand.u32 2147483647, %v4709
  %vm4722 = vcmp.eq.f32.partialorder %v4721, 8.507059e+37
  %v4723 = vand.u32 %v4709, 2147483648
  %v4724 = vor.u32 1.1754944e-38, %v4723
  %v4725 = vsel %vm4722, %v4724, %v4720
  %v4726 = vmul.f32 1.0, %v4725
  %v4727 = vrcp.pop %v4710
  %v4728 = vmul.f32 %v4710, %v4727
  %v4729 = vsub.f32 1.0, %v4728
  %v4730 = vmul.f32 %v4727, %v4729
  %v4731 = vadd.f32 %v4727, %v4730
  %vm4732 = vweird.f32 %v4710
  %vm4733 = vweird.f32 %v4727
  %vm4734 = vmor %vm4732, %vm4733
  %v4735 = vsel %vm4734, %v4727, %v4731
  %v4736 = vand.u32 2147483647, %v4710
  %vm4737 = vcmp.eq.f32.partialorder %v4736, 8.507059e+37
  %v4738 = vand.u32 %v4710, 2147483648
  %v4739 = vor.u32 1.1754944e-38, %v4738
  %v4740 = vsel %vm4737, %v4739, %v4735
  %v4741 = vmul.f32 1.0, %v4740
  %v4742 = vrcp.pop %v4711
  %v4743 = vmul.f32 %v4711, %v4742
  %v4744 = vsub.f32 1.0, %v4743
  %v4745 = vmul.f32 %v4742, %v4744
  %v4746 = vadd.f32 %v4742, %v4745
  %vm4747 = vweird.f32 %v4711
  %vm4748 = vweird.f32 %v4742
  %vm4749 = vmor %vm4747, %vm4748
  %v4750 = vsel %vm4749, %v4742, %v4746
  %v4751 = vand.u32 2147483647, %v4711
  %vm4752 = vcmp.eq.f32.partialorder %v4751, 8.507059e+37
  %v4753 = vand.u32 %v4711, 2147483648
  %v4754 = vor.u32 1.1754944e-38, %v4753
  %v4755 = vsel %vm4752, %v4754, %v4750
  %v4756 = vmul.f32 1.0, %v4755
  %v4757 = vtanh.pop %v4699
  %v4758 = vmul.f32 %v4741, %v4211
  %v4759 = vmul.f32 %v4726, %v4757
  %v4760 = vadd.f32 %v4758, %v4759
  %v4761 = vtanh.pop %v4760
  %v4762 = vmul.f32 %v4756, %v4761
  %4763 = vmatpush.msra.mxu0 %v680
  %4764 = vmatpush.msra.mxu0 %v673
  %4765 = vmatpush.msra.mxu0 %v666
  %4766 = vmatpush.msra.mxu0 %v659
  %4767 = vmatpush.msra.mxu0 %v652
  %4768 = vmatpush.msra.mxu0 %v645
  %4769 = vmatpush.msra.mxu0 %v638
  %4770 = vmatpush.msra.mxu0 %v631
  %4771 = vmatpush.msra.mxu0 %v624
  %4772 = vmatpush.msra.mxu0 %v617
  %4773 = vmatpush.msra.mxu0 %v610
  %4774 = vmatpush.msra.mxu0 %v603
  %4775 = vmatpush.msra.mxu0 %v596
  %4776 = vmatpush.msra.mxu0 %v589
  %4777 = vmatpush.msra.mxu0 %v582
  %4778 = vmatpush.msra.mxu0 %v575
  %4779 = vmatmul.f32.gmra.mxu0 %v4762
  %v4780 = vpop.f32.mrf.mxu0
  %v4781 = vadd.f32 0.0, %v4780
  %4782 = vdwg.mxu0
  %4783 = vmatpush.msra.mxu0 %v681
  %4784 = vmatpush.msra.mxu0 %v674
  %4785 = vmatpush.msra.mxu0 %v667
  %4786 = vmatpush.msra.mxu0 %v660
  %4787 = vmatpush.msra.mxu0 %v653
  %4788 = vmatpush.msra.mxu0 %v646
  %4789 = vmatpush.msra.mxu0 %v639
  %4790 = vmatpush.msra.mxu0 %v632
  %4791 = vmatpush.msra.mxu0 %v625
  %4792 = vmatpush.msra.mxu0 %v618
  %4793 = vmatpush.msra.mxu0 %v611
  %4794 = vmatpush.msra.mxu0 %v604
  %4795 = vmatpush.msra.mxu0 %v597
  %4796 = vmatpush.msra.mxu0 %v590
  %4797 = vmatpush.msra.mxu0 %v583
  %4798 = vmatpush.msra.mxu0 %v576
  %4799 = vmatmul.f32.gmra.mxu0 %v4762
  %v4800 = vpop.f32.mrf.mxu0
  %v4801 = vadd.f32 0.0, %v4800
  %4802 = vdwg.mxu0
  %4803 = vmatpush.msra.mxu0 %v682
  %4804 = vmatpush.msra.mxu0 %v675
  %4805 = vmatpush.msra.mxu0 %v668
  %4806 = vmatpush.msra.mxu0 %v661
  %4807 = vmatpush.msra.mxu0 %v654
  %4808 = vmatpush.msra.mxu0 %v647
  %4809 = vmatpush.msra.mxu0 %v640
  %4810 = vmatpush.msra.mxu0 %v633
  %4811 = vmatpush.msra.mxu0 %v626
  %4812 = vmatpush.msra.mxu0 %v619
  %4813 = vmatpush.msra.mxu0 %v612
  %4814 = vmatpush.msra.mxu0 %v605
  %4815 = vmatpush.msra.mxu0 %v598
  %4816 = vmatpush.msra.mxu0 %v591
  %4817 = vmatpush.msra.mxu0 %v584
  %4818 = vmatpush.msra.mxu0 %v577
  %4819 = vmatmul.f32.gmra.mxu0 %v4762
  %v4820 = vpop.f32.mrf.mxu0
  %v4821 = vadd.f32 0.0, %v4820
  %4822 = vdwg.mxu0
  %4823 = vmatpush.msra.mxu0 %v683
  %4824 = vmatpush.msra.mxu0 %v676
  %4825 = vmatpush.msra.mxu0 %v669
  %4826 = vmatpush.msra.mxu0 %v662
  %4827 = vmatpush.msra.mxu0 %v655
  %4828 = vmatpush.msra.mxu0 %v648
  %4829 = vmatpush.msra.mxu0 %v641
  %4830 = vmatpush.msra.mxu0 %v634
  %4831 = vmatpush.msra.mxu0 %v627
  %4832 = vmatpush.msra.mxu0 %v620
  %4833 = vmatpush.msra.mxu0 %v613
  %4834 = vmatpush.msra.mxu0 %v606
  %4835 = vmatpush.msra.mxu0 %v599
  %4836 = vmatpush.msra.mxu0 %v592
  %4837 = vmatpush.msra.mxu0 %v585
  %4838 = vmatpush.msra.mxu0 %v578
  %4839 = vmatmul.f32.gmra.mxu0 %v4762
  %v4840 = vpop.f32.mrf.mxu0
  %v4841 = vadd.f32 0.0, %v4840
  %4842 = vdwg.mxu0
  %4843 = vmatpush.msra.mxu0 %v684
  %4844 = vmatpush.msra.mxu0 %v677
  %4845 = vmatpush.msra.mxu0 %v670
  %4846 = vmatpush.msra.mxu0 %v663
  %4847 = vmatpush.msra.mxu0 %v656
  %4848 = vmatpush.msra.mxu0 %v649
  %4849 = vmatpush.msra.mxu0 %v642
  %4850 = vmatpush.msra.mxu0 %v635
  %4851 = vmatpush.msra.mxu0 %v628
  %4852 = vmatpush.msra.mxu0 %v621
  %4853 = vmatpush.msra.mxu0 %v614
  %4854 = vmatpush.msra.mxu0 %v607
  %4855 = vmatpush.msra.mxu0 %v600
  %4856 = vmatpush.msra.mxu0 %v593
  %4857 = vmatpush.msra.mxu0 %v586
  %4858 = vmatpush.msra.mxu0 %v579
  %4859 = vmatmul.f32.gmra.mxu0 %v4762
  %v4860 = vpop.f32.mrf.mxu0
  %v4861 = vadd.f32 0.0, %v4860
  %4862 = vdwg.mxu0
  %4863 = vmatpush.msra.mxu0 %v685
  %4864 = vmatpush.msra.mxu0 %v678
  %4865 = vmatpush.msra.mxu0 %v671
  %4866 = vmatpush.msra.mxu0 %v664
  %4867 = vmatpush.msra.mxu0 %v657
  %4868 = vmatpush.msra.mxu0 %v650
  %4869 = vmatpush.msra.mxu0 %v643
  %4870 = vmatpush.msra.mxu0 %v636
  %4871 = vmatpush.msra.mxu0 %v629
  %4872 = vmatpush.msra.mxu0 %v622
  %4873 = vmatpush.msra.mxu0 %v615
  %4874 = vmatpush.msra.mxu0 %v608
  %4875 = vmatpush.msra.mxu0 %v601
  %4876 = vmatpush.msra.mxu0 %v594
  %4877 = vmatpush.msra.mxu0 %v587
  %4878 = vmatpush.msra.mxu0 %v580
  %4879 = vmatmul.f32.gmra.mxu0 %v4762
  %v4880 = vpop.f32.mrf.mxu0
  %v4881 = vadd.f32 0.0, %v4880
  %4882 = vdwg.mxu0
  %4883 = vmatpush.msra.mxu0 %v686
  %4884 = vmatpush.msra.mxu0 %v679
  %4885 = vmatpush.msra.mxu0 %v672
  %4886 = vmatpush.msra.mxu0 %v665
  %4887 = vmatpush.msra.mxu0 %v658
  %4888 = vmatpush.msra.mxu0 %v651
  %4889 = vmatpush.msra.mxu0 %v644
  %4890 = vmatpush.msra.mxu0 %v637
  %4891 = vmatpush.msra.mxu0 %v630
  %4892 = vmatpush.msra.mxu0 %v623
  %4893 = vmatpush.msra.mxu0 %v616
  %4894 = vmatpush.msra.mxu0 %v609
  %4895 = vmatpush.msra.mxu0 %v602
  %4896 = vmatpush.msra.mxu0 %v595
  %4897 = vmatpush.msra.mxu0 %v588
  %4898 = vmatpush.msra.mxu0 %v581
  %4899 = vmatmul.f32.gmra.mxu0 %v4762
  %v4900 = vpop.f32.mrf.mxu0
  %v4901 = vadd.f32 0.0, %v4900
  %4902 = vdwg.mxu0
  %v4903 = vadd.f32 %v4881, %v1605
  %v4904 = vadd.f32 %v4901, %v1606
  %v4907 = vrot.slane %v4904, 6
  %v4908 = vsel %vm1614, %v4903, %v4907
  %s4910 = scalar_lea.vmem %s15, 24
  %4911 = vst [vmem:[%s4910] sm:$0xf] %v4908
  %v4912 = vsel %vm1614, %v4903, -inf
  %v4913 = vsel %vm1614, %v4904, -inf
  %v4914 = vmax.f32 %v4912, %v4913
  %4915 = vmax.xlane.f32.xlu0 %v4914
  %v4916 = vpop.xlane.xlu0 %4915
  %vm4917 = vcmp.ge.f32.partialorder %v4903, %v4916
  %vm4918 = vcmp.ge.f32.partialorder %v4904, %v4916
  %v4919 = vsel %vm4917, %v979, 256
  %v4920 = vsel %vm4918, %v980, 256
  %v4921 = vsel %vm1614, %v4919, 2147483647
  %v4922 = vsel %vm1614, %v4920, 2147483647
  %vm4923 = vcmp.lt.s32.totalorder %v4921, %v4922
  %v4924 = vsel %vm4923, %v4921, %v4922
  %v4925 = vand.u32 %v4924, 65535
  %v4926 = vshra.s32 %v4924, 16
  %v4927 = vcvt.s32.f32 %v4925
  %v4928 = vcvt.s32.f32 %v4926
  %4929 = vmin.xlane.f32.xlu0 %v4928
  %v4930 = vpop.xlane.xlu0 %4929
  %vm4931 = vcmp.eq.f32.partialorder %v4928, %v4930
  %v4932 = vsel %vm4931, %v4927, inf
  %4933 = vmin.xlane.f32.xlu0 %v4932
  %v4934 = vpop.xlane.xlu0 %4933
  %v4935 = vcvt.f32.s32 %v4934
  %v4936 = vcvt.f32.s32 %v4930
  %v4937 = vshll.u32 %v4936, 16
  %v4938 = vadd.s32 %v4937, %v4935
  %vm4939 = vcmp.eq.s32.totalorder %v979, %v4938
  %vm4940 = vcmp.eq.s32.totalorder %v980, %v4938
  %v4941 = vsel %vm4939, 1, 0
  %v4942 = vsel %vm4940, 1, 0
  %v4943 = vcvt.s32.f32 %v4941
  %v4944 = vcvt.s32.f32 %v4942
  %4945 = vmatpush.xpose.msra.mxu0 0.0
  %4946 = vmatpush.xpose.msra.mxu0 0.0
  %4947 = vmatpush.xpose.msra.mxu0 0.0
  %4948 = vmatpush.xpose.msra.mxu0 0.0
  %4949 = vmatpush.xpose.msra.mxu0 0.0
  %4950 = vmatpush.xpose.msra.mxu0 0.0
  %4951 = vmatpush.xpose.msra.mxu0 0.0
  %4952 = vmatpush.xpose.msra.mxu0 0.0
  %4953 = vmatpush.xpose.msra.mxu0 0.0
  %4954 = vmatpush.xpose.msra.mxu0 0.0
  %4955 = vmatpush.xpose.msra.mxu0 0.0
  %4956 = vmatpush.xpose.msra.mxu0 0.0
  %4957 = vmatpush.xpose.msra.mxu0 0.0
  %4958 = vmatpush.xpose.msra.mxu0 0.0
  %4959 = vmatpush.xpose.msra.mxu0 %v367
  %4960 = vmatpush.xpose.msra.mxu0 %v364
  %4961 = vmatmul.f32.gmra.mxu0 %v4861
  %v4962 = vpop.f32.mrf.mxu0
  %v4963 = vadd.f32 0.0, %v4962
  %4964 = vdwg.mxu0
  %v4965 = vmul.f32 %v4963, 0.088388346
  %v4966 = vadd.f32 %v4965, %v977
  %v4967 = vsel %vm1109, %v4966, -inf
  %4968 = vmax.xlane.f32.xlu0 %v4967
  %v4969 = vpop.xlane.xlu0 %4968
  %v4970 = vsub.f32 %v4966, %v4969
  %v4971 = vmul.f32 %v4970, 1.442695
  %v4972 = vpow.pop %v4971
  %v4973 = vsel %vm1109, %v4972, 0.0
  %4974 = vadd.xlane.f32.xlu0 %v4973
  %v4975 = vpop.xlane.xlu0 %4974
  %v4976 = vrcp.pop %v4975
  %v4977 = vmul.f32 %v4972, %v4976
  %v4979 = vsel %vm393, %v4977, 0
  %4981 = vmatpush.msra.mxu0 0.0
  %4982 = vmatpush.msra.mxu0 0.0
  %4983 = vmatpush.msra.mxu0 0.0
  %4984 = vmatpush.msra.mxu0 0.0
  %4985 = vmatpush.msra.mxu0 0.0
  %4986 = vmatpush.msra.mxu0 0.0
  %4987 = vmatpush.msra.mxu0 0.0
  %4988 = vmatpush.msra.mxu0 0.0
  %4989 = vmatpush.msra.mxu0 0.0
  %4990 = vmatpush.msra.mxu0 0.0
  %4991 = vmatpush.msra.mxu0 0.0
  %4992 = vmatpush.msra.mxu0 0.0
  %4993 = vmatpush.msra.mxu0 0.0
  %4994 = vmatpush.msra.mxu0 0.0
  %4995 = vmatpush.msra.mxu0 %v390
  %4996 = vmatpush.msra.mxu0 %v387
  %4997 = vmatmul.f32.gmra.mxu0 %v4979
  %v4998 = vpop.f32.mrf.mxu0
  %v4999 = vadd.f32 0.0, %v4998
  %5000 = vdwg.mxu0
  %5001 = vmatpush.msra.mxu0 %v843
  %5002 = vmatpush.msra.mxu0 %v839
  %5003 = vmatpush.msra.mxu0 %v835
  %5004 = vmatpush.msra.mxu0 %v831
  %5005 = vmatpush.msra.mxu0 %v827
  %5006 = vmatpush.msra.mxu0 %v823
  %5007 = vmatpush.msra.mxu0 %v819
  %5008 = vmatpush.msra.mxu0 %v815
  %5009 = vmatpush.msra.mxu0 %v811
  %5010 = vmatpush.msra.mxu0 %v807
  %5011 = vmatpush.msra.mxu0 %v803
  %5012 = vmatpush.msra.mxu0 %v799
  %5013 = vmatpush.msra.mxu0 %v795
  %5014 = vmatpush.msra.mxu0 %v791
  %5015 = vmatpush.msra.mxu0 %v787
  %5016 = vmatpush.msra.mxu0 %v783
  %5017 = vmatmul.f32.gmra.mxu0 %v4943
  %v5018 = vpop.f32.mrf.mxu0
  %v5019 = vadd.f32 0.0, %v5018
  %5020 = vdwg.mxu0
  %5021 = vmatpush.msra.mxu0 %v907
  %5022 = vmatpush.msra.mxu0 %v903
  %5023 = vmatpush.msra.mxu0 %v899
  %5024 = vmatpush.msra.mxu0 %v895
  %5025 = vmatpush.msra.mxu0 %v891
  %5026 = vmatpush.msra.mxu0 %v887
  %5027 = vmatpush.msra.mxu0 %v883
  %5028 = vmatpush.msra.mxu0 %v879
  %5029 = vmatpush.msra.mxu0 %v875
  %5030 = vmatpush.msra.mxu0 %v871
  %5031 = vmatpush.msra.mxu0 %v867
  %5032 = vmatpush.msra.mxu0 %v863
  %5033 = vmatpush.msra.mxu0 %v859
  %5034 = vmatpush.msra.mxu0 %v855
  %5035 = vmatpush.msra.mxu0 %v851
  %5036 = vmatpush.msra.mxu0 %v847
  %5037 = vmatmul.f32.gmra.mxu0 %v4944
  %v5038 = vpop.f32.mrf.mxu0
  %v5039 = vadd.f32 %v5019, %v5038
  %5040 = vdwg.mxu0
  %5041 = vmatpush.msra.mxu0 %v971
  %5042 = vmatpush.msra.mxu0 %v967
  %5043 = vmatpush.msra.mxu0 %v963
  %5044 = vmatpush.msra.mxu0 %v959
  %5045 = vmatpush.msra.mxu0 %v955
  %5046 = vmatpush.msra.mxu0 %v951
  %5047 = vmatpush.msra.mxu0 %v947
  %5048 = vmatpush.msra.mxu0 %v943
  %5049 = vmatpush.msra.mxu0 %v939
  %5050 = vmatpush.msra.mxu0 %v935
  %5051 = vmatpush.msra.mxu0 %v931
  %5052 = vmatpush.msra.mxu0 %v927
  %5053 = vmatpush.msra.mxu0 %v923
  %5054 = vmatpush.msra.mxu0 %v919
  %5055 = vmatpush.msra.mxu0 %v915
  %5056 = vmatpush.msra.mxu0 %v911
  %5057 = vmatmul.f32.gmra.mxu0 %v4999
  %v5058 = vpop.f32.mrf.mxu0
  %v5059 = vadd.f32 %v5039, %v5058
  %5060 = vdwg.mxu0
  %5061 = vmatpush.msra.mxu0 %v844
  %5062 = vmatpush.msra.mxu0 %v840
  %5063 = vmatpush.msra.mxu0 %v836
  %5064 = vmatpush.msra.mxu0 %v832
  %5065 = vmatpush.msra.mxu0 %v828
  %5066 = vmatpush.msra.mxu0 %v824
  %5067 = vmatpush.msra.mxu0 %v820
  %5068 = vmatpush.msra.mxu0 %v816
  %5069 = vmatpush.msra.mxu0 %v812
  %5070 = vmatpush.msra.mxu0 %v808
  %5071 = vmatpush.msra.mxu0 %v804
  %5072 = vmatpush.msra.mxu0 %v800
  %5073 = vmatpush.msra.mxu0 %v796
  %5074 = vmatpush.msra.mxu0 %v792
  %5075 = vmatpush.msra.mxu0 %v788
  %5076 = vmatpush.msra.mxu0 %v784
  %5077 = vmatmul.f32.gmra.mxu0 %v4943
  %v5078 = vpop.f32.mrf.mxu0
  %v5079 = vadd.f32 0.0, %v5078
  %5080 = vdwg.mxu0
  %5081 = vmatpush.msra.mxu0 %v908
  %5082 = vmatpush.msra.mxu0 %v904
  %5083 = vmatpush.msra.mxu0 %v900
  %5084 = vmatpush.msra.mxu0 %v896
  %5085 = vmatpush.msra.mxu0 %v892
  %5086 = vmatpush.msra.mxu0 %v888
  %5087 = vmatpush.msra.mxu0 %v884
  %5088 = vmatpush.msra.mxu0 %v880
  %5089 = vmatpush.msra.mxu0 %v876
  %5090 = vmatpush.msra.mxu0 %v872
  %5091 = vmatpush.msra.mxu0 %v868
  %5092 = vmatpush.msra.mxu0 %v864
  %5093 = vmatpush.msra.mxu0 %v860
  %5094 = vmatpush.msra.mxu0 %v856
  %5095 = vmatpush.msra.mxu0 %v852
  %5096 = vmatpush.msra.mxu0 %v848
  %5097 = vmatmul.f32.gmra.mxu0 %v4944
  %v5098 = vpop.f32.mrf.mxu0
  %v5099 = vadd.f32 %v5079, %v5098
  %5100 = vdwg.mxu0
  %5101 = vmatpush.msra.mxu0 %v972
  %5102 = vmatpush.msra.mxu0 %v968
  %5103 = vmatpush.msra.mxu0 %v964
  %5104 = vmatpush.msra.mxu0 %v960
  %5105 = vmatpush.msra.mxu0 %v956
  %5106 = vmatpush.msra.mxu0 %v952
  %5107 = vmatpush.msra.mxu0 %v948
  %5108 = vmatpush.msra.mxu0 %v944
  %5109 = vmatpush.msra.mxu0 %v940
  %5110 = vmatpush.msra.mxu0 %v936
  %5111 = vmatpush.msra.mxu0 %v932
  %5112 = vmatpush.msra.mxu0 %v928
  %5113 = vmatpush.msra.mxu0 %v924
  %5114 = vmatpush.msra.mxu0 %v920
  %5115 = vmatpush.msra.mxu0 %v916
  %5116 = vmatpush.msra.mxu0 %v912
  %5117 = vmatmul.f32.gmra.mxu0 %v4999
  %v5118 = vpop.f32.mrf.mxu0
  %v5119 = vadd.f32 %v5099, %v5118
  %5120 = vdwg.mxu0
  %5121 = vmatpush.msra.mxu0 %v845
  %5122 = vmatpush.msra.mxu0 %v841
  %5123 = vmatpush.msra.mxu0 %v837
  %5124 = vmatpush.msra.mxu0 %v833
  %5125 = vmatpush.msra.mxu0 %v829
  %5126 = vmatpush.msra.mxu0 %v825
  %5127 = vmatpush.msra.mxu0 %v821
  %5128 = vmatpush.msra.mxu0 %v817
  %5129 = vmatpush.msra.mxu0 %v813
  %5130 = vmatpush.msra.mxu0 %v809
  %5131 = vmatpush.msra.mxu0 %v805
  %5132 = vmatpush.msra.mxu0 %v801
  %5133 = vmatpush.msra.mxu0 %v797
  %5134 = vmatpush.msra.mxu0 %v793
  %5135 = vmatpush.msra.mxu0 %v789
  %5136 = vmatpush.msra.mxu0 %v785
  %5137 = vmatmul.f32.gmra.mxu0 %v4943
  %v5138 = vpop.f32.mrf.mxu0
  %v5139 = vadd.f32 0.0, %v5138
  %5140 = vdwg.mxu0
  %5141 = vmatpush.msra.mxu0 %v909
  %5142 = vmatpush.msra.mxu0 %v905
  %5143 = vmatpush.msra.mxu0 %v901
  %5144 = vmatpush.msra.mxu0 %v897
  %5145 = vmatpush.msra.mxu0 %v893
  %5146 = vmatpush.msra.mxu0 %v889
  %5147 = vmatpush.msra.mxu0 %v885
  %5148 = vmatpush.msra.mxu0 %v881
  %5149 = vmatpush.msra.mxu0 %v877
  %5150 = vmatpush.msra.mxu0 %v873
  %5151 = vmatpush.msra.mxu0 %v869
  %5152 = vmatpush.msra.mxu0 %v865
  %5153 = vmatpush.msra.mxu0 %v861
  %5154 = vmatpush.msra.mxu0 %v857
  %5155 = vmatpush.msra.mxu0 %v853
  %5156 = vmatpush.msra.mxu0 %v849
  %5157 = vmatmul.f32.gmra.mxu0 %v4944
  %v5158 = vpop.f32.mrf.mxu0
  %v5159 = vadd.f32 %v5139, %v5158
  %5160 = vdwg.mxu0
  %5161 = vmatpush.msra.mxu0 %v973
  %5162 = vmatpush.msra.mxu0 %v969
  %5163 = vmatpush.msra.mxu0 %v965
  %5164 = vmatpush.msra.mxu0 %v961
  %5165 = vmatpush.msra.mxu0 %v957
  %5166 = vmatpush.msra.mxu0 %v953
  %5167 = vmatpush.msra.mxu0 %v949
  %5168 = vmatpush.msra.mxu0 %v945
  %5169 = vmatpush.msra.mxu0 %v941
  %5170 = vmatpush.msra.mxu0 %v937
  %5171 = vmatpush.msra.mxu0 %v933
  %5172 = vmatpush.msra.mxu0 %v929
  %5173 = vmatpush.msra.mxu0 %v925
  %5174 = vmatpush.msra.mxu0 %v921
  %5175 = vmatpush.msra.mxu0 %v917
  %5176 = vmatpush.msra.mxu0 %v913
  %5177 = vmatmul.f32.gmra.mxu0 %v4999
  %v5178 = vpop.f32.mrf.mxu0
  %v5179 = vadd.f32 %v5159, %v5178
  %5180 = vdwg.mxu0
  %5181 = vmatpush.msra.mxu0 %v846
  %5182 = vmatpush.msra.mxu0 %v842
  %5183 = vmatpush.msra.mxu0 %v838
  %5184 = vmatpush.msra.mxu0 %v834
  %5185 = vmatpush.msra.mxu0 %v830
  %5186 = vmatpush.msra.mxu0 %v826
  %5187 = vmatpush.msra.mxu0 %v822
  %5188 = vmatpush.msra.mxu0 %v818
  %5189 = vmatpush.msra.mxu0 %v814
  %5190 = vmatpush.msra.mxu0 %v810
  %5191 = vmatpush.msra.mxu0 %v806
  %5192 = vmatpush.msra.mxu0 %v802
  %5193 = vmatpush.msra.mxu0 %v798
  %5194 = vmatpush.msra.mxu0 %v794
  %5195 = vmatpush.msra.mxu0 %v790
  %5196 = vmatpush.msra.mxu0 %v786
  %5197 = vmatmul.f32.gmra.mxu0 %v4943
  %v5198 = vpop.f32.mrf.mxu0
  %v5199 = vadd.f32 0.0, %v5198
  %5200 = vdwg.mxu0
  %5201 = vmatpush.msra.mxu0 %v910
  %5202 = vmatpush.msra.mxu0 %v906
  %5203 = vmatpush.msra.mxu0 %v902
  %5204 = vmatpush.msra.mxu0 %v898
  %5205 = vmatpush.msra.mxu0 %v894
  %5206 = vmatpush.msra.mxu0 %v890
  %5207 = vmatpush.msra.mxu0 %v886
  %5208 = vmatpush.msra.mxu0 %v882
  %5209 = vmatpush.msra.mxu0 %v878
  %5210 = vmatpush.msra.mxu0 %v874
  %5211 = vmatpush.msra.mxu0 %v870
  %5212 = vmatpush.msra.mxu0 %v866
  %5213 = vmatpush.msra.mxu0 %v862
  %5214 = vmatpush.msra.mxu0 %v858
  %5215 = vmatpush.msra.mxu0 %v854
  %5216 = vmatpush.msra.mxu0 %v850
  %5217 = vmatmul.f32.gmra.mxu0 %v4944
  %v5218 = vpop.f32.mrf.mxu0
  %v5219 = vadd.f32 %v5199, %v5218
  %5220 = vdwg.mxu0
  %5221 = vmatpush.msra.mxu0 %v974
  %5222 = vmatpush.msra.mxu0 %v970
  %5223 = vmatpush.msra.mxu0 %v966
  %5224 = vmatpush.msra.mxu0 %v962
  %5225 = vmatpush.msra.mxu0 %v958
  %5226 = vmatpush.msra.mxu0 %v954
  %5227 = vmatpush.msra.mxu0 %v950
  %5228 = vmatpush.msra.mxu0 %v946
  %5229 = vmatpush.msra.mxu0 %v942
  %5230 = vmatpush.msra.mxu0 %v938
  %5231 = vmatpush.msra.mxu0 %v934
  %5232 = vmatpush.msra.mxu0 %v930
  %5233 = vmatpush.msra.mxu0 %v926
  %5234 = vmatpush.msra.mxu0 %v922
  %5235 = vmatpush.msra.mxu0 %v918
  %5236 = vmatpush.msra.mxu0 %v914
  %5237 = vmatmul.f32.gmra.mxu0 %v4999
  %v5238 = vpop.f32.mrf.mxu0
  %v5239 = vadd.f32 %v5219, %v5238
  %5240 = vdwg.mxu0
  %v5241 = vadd.f32 %v4781, %v5059
  %v5242 = vadd.f32 %v4801, %v5119
  %v5243 = vadd.f32 %v4821, %v5179
  %v5244 = vadd.f32 %v4841, %v5239
  %v5245 = vadd.f32 %v5241, %v1389
  %v5246 = vadd.f32 %v5242, %v1390
  %v5247 = vadd.f32 %v5243, %v1391
  %v5248 = vadd.f32 %v5244, %v1392
  %v5249 = vxor.u32 %v5245, 2147483648
  %v5250 = vxor.u32 %v5246, 2147483648
  %v5251 = vxor.u32 %v5247, 2147483648
  %v5252 = vmul.f32 %v5249, 1.442695
  %v5253 = vpow.pop %v5252
  %v5254 = vmul.f32 %v5250, 1.442695
  %v5255 = vpow.pop %v5254
  %v5256 = vmul.f32 %v5251, 1.442695
  %v5257 = vpow.pop %v5256
  %v5258 = vadd.f32 %v5253, 1.0
  %v5259 = vadd.f32 %v5255, 1.0
  %v5260 = vadd.f32 %v5257, 1.0
  %v5261 = vrcp.pop %v5258
  %v5262 = vmul.f32 %v5258, %v5261
  %v5263 = vsub.f32 1.0, %v5262
  %v5264 = vmul.f32 %v5261, %v5263
  %v5265 = vadd.f32 %v5261, %v5264
  %vm5266 = vweird.f32 %v5258
  %vm5267 = vweird.f32 %v5261
  %vm5268 = vmor %vm5266, %vm5267
  %v5269 = vsel %vm5268, %v5261, %v5265
  %v5270 = vand.u32 2147483647, %v5258
  %vm5271 = vcmp.eq.f32.partialorder %v5270, 8.507059e+37
  %v5272 = vand.u32 %v5258, 2147483648
  %v5273 = vor.u32 1.1754944e-38, %v5272
  %v5274 = vsel %vm5271, %v5273, %v5269
  %v5275 = vmul.f32 1.0, %v5274
  %v5276 = vrcp.pop %v5259
  %v5277 = vmul.f32 %v5259, %v5276
  %v5278 = vsub.f32 1.0, %v5277
  %v5279 = vmul.f32 %v5276, %v5278
  %v5280 = vadd.f32 %v5276, %v5279
  %vm5281 = vweird.f32 %v5259
  %vm5282 = vweird.f32 %v5276
  %vm5283 = vmor %vm5281, %vm5282
  %v5284 = vsel %vm5283, %v5276, %v5280
  %v5285 = vand.u32 2147483647, %v5259
  %vm5286 = vcmp.eq.f32.partialorder %v5285, 8.507059e+37
  %v5287 = vand.u32 %v5259, 2147483648
  %v5288 = vor.u32 1.1754944e-38, %v5287
  %v5289 = vsel %vm5286, %v5288, %v5284
  %v5290 = vmul.f32 1.0, %v5289
  %v5291 = vrcp.pop %v5260
  %v5292 = vmul.f32 %v5260, %v5291
  %v5293 = vsub.f32 1.0, %v5292
  %v5294 = vmul.f32 %v5291, %v5293
  %v5295 = vadd.f32 %v5291, %v5294
  %vm5296 = vweird.f32 %v5260
  %vm5297 = vweird.f32 %v5291
  %vm5298 = vmor %vm5296, %vm5297
  %v5299 = vsel %vm5298, %v5291, %v5295
  %v5300 = vand.u32 2147483647, %v5260
  %vm5301 = vcmp.eq.f32.partialorder %v5300, 8.507059e+37
  %v5302 = vand.u32 %v5260, 2147483648
  %v5303 = vor.u32 1.1754944e-38, %v5302
  %v5304 = vsel %vm5301, %v5303, %v5299
  %v5305 = vmul.f32 1.0, %v5304
  %v5306 = vtanh.pop %v5248
  %v5307 = vmul.f32 %v5290, %v4760
  %v5308 = vmul.f32 %v5275, %v5306
  %v5309 = vadd.f32 %v5307, %v5308
  %v5310 = vtanh.pop %v5309
  %v5311 = vmul.f32 %v5305, %v5310
  %5312 = vmatpush.msra.mxu0 %v685
  %5313 = vmatpush.msra.mxu0 %v678
  %5314 = vmatpush.msra.mxu0 %v671
  %5315 = vmatpush.msra.mxu0 %v664
  %5316 = vmatpush.msra.mxu0 %v657
  %5317 = vmatpush.msra.mxu0 %v650
  %5318 = vmatpush.msra.mxu0 %v643
  %5319 = vmatpush.msra.mxu0 %v636
  %5320 = vmatpush.msra.mxu0 %v629
  %5321 = vmatpush.msra.mxu0 %v622
  %5322 = vmatpush.msra.mxu0 %v615
  %5323 = vmatpush.msra.mxu0 %v608
  %5324 = vmatpush.msra.mxu0 %v601
  %5325 = vmatpush.msra.mxu0 %v594
  %5326 = vmatpush.msra.mxu0 %v587
  %5327 = vmatpush.msra.mxu0 %v580
  %5328 = vmatmul.f32.gmra.mxu0 %v5311
  %v5329 = vpop.f32.mrf.mxu0
  %v5330 = vadd.f32 0.0, %v5329
  %5331 = vdwg.mxu0
  %5332 = vmatpush.msra.mxu0 %v686
  %5333 = vmatpush.msra.mxu0 %v679
  %5334 = vmatpush.msra.mxu0 %v672
  %5335 = vmatpush.msra.mxu0 %v665
  %5336 = vmatpush.msra.mxu0 %v658
  %5337 = vmatpush.msra.mxu0 %v651
  %5338 = vmatpush.msra.mxu0 %v644
  %5339 = vmatpush.msra.mxu0 %v637
  %5340 = vmatpush.msra.mxu0 %v630
  %5341 = vmatpush.msra.mxu0 %v623
  %5342 = vmatpush.msra.mxu0 %v616
  %5343 = vmatpush.msra.mxu0 %v609
  %5344 = vmatpush.msra.mxu0 %v602
  %5345 = vmatpush.msra.mxu0 %v595
  %5346 = vmatpush.msra.mxu0 %v588
  %5347 = vmatpush.msra.mxu0 %v581
  %5348 = vmatmul.f32.gmra.mxu0 %v5311
  %v5349 = vpop.f32.mrf.mxu0
  %v5350 = vadd.f32 0.0, %v5349
  %5351 = vdwg.mxu0
  %v5352 = vadd.f32 %v5330, %v1605
  %v5353 = vadd.f32 %v5350, %v1606
  %v5356 = vrot.slane %v5353, 6
  %v5357 = vsel %vm1614, %v5352, %v5356
  %s5359 = scalar_lea.vmem %s15, 28
  %5360 = vst [vmem:[%s5359] sm:$0xf] %v5357
  // Predicated region
  $region62: #{image2text_forward.1} parent=0 // pred_check
    _
  $region63: #{image2text_forward.1} parent=0 // pred_check_branch
    %5362 = sbr.rel (0) target = $region65
  $region64: #{image2text_forward.1} parent=0 // pred_region
    _
  $region65: #{image2text_forward.1} parent=0 // pred_fallthru
    _
  // Predicated region
  $region66: #{image2text_forward.1} parent=0 // pred_check
    _
  $region67: #{image2text_forward.1} parent=0 // pred_check_branch
    %5364 = sbr.rel (0) target = $region69
  $region68: #{image2text_forward.1} parent=0 // pred_region
    _
  $region69: #{image2text_forward.1} parent=0 // pred_fallthru
    _

</llo_original>
